<compile_context>
chip_gen: v7x
topology: tpu7x:2x2x1
jax: 0.10.0
libtpu: 0.0.40
codegen_flags: <defaults>
</compile_context>

<pallas_src>
import math

import jax
import jax.numpy as jnp
from jax.experimental import pallas as pl
from jax.experimental.pallas import tpu as pltpu

# ----------------------------- configuration --------------------------------
BATCH = 2
SEQ = 16
HIDDEN = 128
NUM_HEADS = 4
HEAD_DIM = HIDDEN // NUM_HEADS
INTER = 256
NUM_LAYERS = 2
VOCAB = 64
MAX_POS = 64
TYPE_VOCAB = 1
NUM_LABELS = 6
PAD_ID = 1
LN_EPS = 1e-5            # roberta-base layer_norm_eps
MASK_BIAS = -1e9         # stands in for torch.finfo(float32).min in the extended mask
CLS_PAD = 128            # lane-dense padding for the classifier logits
IGNORE_INDEX = -100      # PyTorch CrossEntropyLoss default

# packed small-parameter layout: one (N_SMALL_ROWS, 1, SMALL_W) f32 array
SMALL_W = 3 * HIDDEN
ROW_EMB_LN_G = 0
ROW_EMB_LN_B = 1
ROW_LAYER_BASE = 2
ROWS_PER_LAYER = 8       # bqkv, bo, ln1_g, ln1_b, bi, bo2, ln2_g, ln2_b
ROW_CLS_B = ROW_LAYER_BASE + NUM_LAYERS * ROWS_PER_LAYER
N_SMALL_ROWS = ROW_CLS_B + 1


# ------------------------------- helpers -------------------------------------
def _layer_norm(x, g, b):
    mu = jnp.mean(x, axis=-1, keepdims=True)
    var = jnp.mean((x - mu) ** 2, axis=-1, keepdims=True)
    return (x - mu) * jax.lax.rsqrt(var + LN_EPS) * g + b


def _gelu(x):
    # TODO(synk): HF "gelu" is the exact erf form; tanh approximation used for robust Mosaic lowering.
    return 0.5 * x * (1.0 + jnp.tanh(0.7978845608028654 * (x + 0.044715 * x * x * x)))


# ------------------------------ fused Pallas kernel ---------------------------
def fused_forward_kernel(
        emb_ref, attn_bias_ref, head_mask_ref, labels_ref, small_ref,
        wqkv_ref, wo_ref, wi_ref, wo2_ref, cls_w_ref,
        logits_ref, loss_ref):

    def small(row, width):
        # static leading-axis index + aligned lane slice of the packed params
        return small_ref[row][:, :width]            # (1, width)

    # ---- embeddings LayerNorm ------------------------------------------------
    x = _layer_norm(emb_ref[...], small(ROW_EMB_LN_G, HIDDEN), small(ROW_EMB_LN_B, HIDDEN))

    # Hoisted once: prebuilt additive key/batch mask and head-block 0/1 mask.
    attn_bias = attn_bias_ref[...]       # (N, NH*N)  0 / -1e9
    head_mask = head_mask_ref[...]       # (NH*N, H)  row h*N+m selects head-h channels

    # ---- encoder layers (NUM_LAYERS=2 -> fully unrolled, weights VMEM resident)
    for li in range(NUM_LAYERS):
        base = ROW_LAYER_BASE + li * ROWS_PER_LAYER

        # fused QKV projection (1/sqrt(head_dim) prefolded into the Q columns)
        qkv = jnp.dot(x, wqkv_ref[li],
                      preferred_element_type=jnp.float32) + small(base + 0, 3 * HIDDEN)
        q = qkv[:, :HIDDEN]                 # 128-lane aligned slices
        k = qkv[:, HIDDEN:2 * HIDDEN]
        v = qkv[:, 2 * HIDDEN:]

        # head-stacked, head-masked K / V operands: two sublane concats + VPU masks
        k_rep = jnp.concatenate([k] * NUM_HEADS, axis=0) * head_mask     # (NH*N, H)
        v_rep = jnp.concatenate([v] * NUM_HEADS, axis=0) * head_mask     # (NH*N, H)

        # all heads' scores in ONE matmul: s[n, h*N + m] = Q_h[n] . K_h[m]
        s = jax.lax.dot_general(q, k_rep, (((1,), (1,)), ((), ())),
                                preferred_element_type=jnp.float32) + attn_bias
        s = s - jnp.max(s, axis=-1, keepdims=True)
        p = jnp.exp(s)                                                    # (N, NH*N)

        # context already lands in the natural (N, H) concat-heads layout
        ctx = jnp.dot(p, v_rep, preferred_element_type=jnp.float32)       # (N, H)
        denom = jnp.dot(p, head_mask, preferred_element_type=jnp.float32) # per-head sums
        ctx = ctx * pl.reciprocal(jnp.maximum(denom, 1e-30), approx=True)

        # flat output projection: one (N,H)x(H,H) matmul
        attn = jnp.dot(ctx, wo_ref[li],
                       preferred_element_type=jnp.float32) + small(base + 1, HIDDEN)
        # attention / hidden dropout are identity at inference
        h1 = _layer_norm(attn + x, small(base + 2, HIDDEN), small(base + 3, HIDDEN))

        inter = _gelu(jnp.dot(h1, wi_ref[li],
                              preferred_element_type=jnp.float32) + small(base + 4, INTER))
        ffn = jnp.dot(inter, wo2_ref[li],
                      preferred_element_type=jnp.float32) + small(base + 5, HIDDEN)
        x = _layer_norm(ffn + h1, small(base + 6, HIDDEN), small(base + 7, HIDDEN))

    # ---- classifier (lane-dense padded output; dropout identity at eval) -----
    logits = jnp.dot(x, cls_w_ref[...],
                     preferred_element_type=jnp.float32) + small(ROW_CLS_B, CLS_PAD)
    logits_ref[...] = logits

    # ---- token-level cross entropy (mean over labels != -100) ----------------
    lane = jax.lax.broadcasted_iota(jnp.int32, logits.shape, 1)
    valid_lane = lane < NUM_LABELS
    masked_logits = jnp.where(valid_lane, logits, jnp.float32(-1e30))
    m = jnp.max(masked_logits, axis=-1, keepdims=True)
    lse = jnp.log(jnp.sum(jnp.exp(masked_logits - m), axis=-1, keepdims=True)) + m  # (N,1)
    lbl = labels_ref[...]                                                           # (N,1) int32
    picked = jnp.sum(jnp.where(lane == lbl, logits, 0.0), axis=-1, keepdims=True)   # (N,1)
    token_w = (lbl >= 0).astype(jnp.float32)              # ignore_index = -100 -> weight 0
    loss_sum = jnp.sum((lse - picked) * token_w, axis=0, keepdims=True)             # (1,1)
    count = jnp.sum(token_w, axis=0, keepdims=True)                                  # (1,1)
    # sum / count (no clamp): all-ignored batch -> NaN, matching torch CrossEntropyLoss
    loss_ref[...] = loss_sum / count


# ------------------------------ model forward ---------------------------------
@jax.jit
def roberta_token_classifier_forward(params, input_ids, attention_mask, labels):
    B, S = input_ids.shape
    N = B * S

    # --- embeddings (gather = plain-JAX glue) ---
    mask_pos = (input_ids != PAD_ID).astype(jnp.int32)
    position_ids = jnp.cumsum(mask_pos, axis=1) * mask_pos + PAD_ID   # RoBERTa position ids
    emb = (params["word_emb"][input_ids]
           + params["pos_emb"][position_ids]
           + params["type_emb"][jnp.zeros_like(input_ids)]).reshape(N, HIDDEN)

    # --- prebuilt additive bias: batch block-diagonal AND key padding, tiled per head ---
    att = attention_mask.reshape(N).astype(jnp.float32)
    batch_id = jnp.repeat(jnp.arange(B, dtype=jnp.int32), S)
    bias_nn = jnp.where(
        (batch_id[:, None] == batch_id[None, :]) & (att[None, :] > 0),
        0.0, MASK_BIAS).astype(jnp.float32)                       # (N, N)
    attn_bias_wide = jnp.tile(bias_nn, (1, NUM_HEADS))            # (N, NH*N)

    # --- 0/1 head-block mask for the head-stacked K/V contraction ---
    chan_head = jnp.arange(HIDDEN, dtype=jnp.int32) // HEAD_DIM          # head of hidden channel
    row_head = jnp.arange(NUM_HEADS * N, dtype=jnp.int32) // N           # head of stacked key row
    head_mask = (row_head[:, None] == chan_head[None, :]).astype(jnp.float32)   # (NH*N, H)

    labels_flat = labels.reshape(N, 1).astype(jnp.int32)

    # --- fold 1/sqrt(head_dim) into the Q columns of the fused QKV weight/bias ---
    scale = 1.0 / math.sqrt(HEAD_DIM)
    col_scale = jnp.concatenate([jnp.full((HIDDEN,), scale, jnp.float32),
                                 jnp.ones((2 * HIDDEN,), jnp.float32)])
    wqkv_s = params["wqkv"] * col_scale                            # (L, H, 3H)
    bqkv_s = params["bqkv"] * col_scale                            # (L, 3H)

    # --- lane-dense classifier weight (first NUM_LABELS columns valid) ---
    cls_w_pad = jnp.zeros((HIDDEN, CLS_PAD), jnp.float32).at[:, :NUM_LABELS].set(params["cls_w"])
    cls_b_pad = jnp.zeros((CLS_PAD,), jnp.float32).at[:NUM_LABELS].set(params["cls_b"])

    # --- pack every small bias / LayerNorm vector into ONE array (fewer prologue DMAs) ---
    def pad_row(vec):
        vec = vec.reshape(-1).astype(jnp.float32)
        return jnp.zeros((SMALL_W,), jnp.float32).at[:vec.shape[0]].set(vec)

    rows = [pad_row(params["emb_ln_g"]), pad_row(params["emb_ln_b"])]
    for li in range(NUM_LAYERS):
        rows += [pad_row(bqkv_s[li]),
                 pad_row(params["bo"][li]),
                 pad_row(params["ln1_g"][li]), pad_row(params["ln1_b"][li]),
                 pad_row(params["bi"][li]),
                 pad_row(params["bo2"][li]),
                 pad_row(params["ln2_g"][li]), pad_row(params["ln2_b"][li])]
    rows.append(pad_row(cls_b_pad))
    small_packed = jnp.stack(rows).reshape(N_SMALL_ROWS, 1, SMALL_W)

    logits_pad, loss = pl.pallas_call(
        fused_forward_kernel,
        out_shape=(jax.ShapeDtypeStruct((N, CLS_PAD), jnp.float32),
                   jax.ShapeDtypeStruct((1, 1), jnp.float32)),
        # explicit VMEM budget (working set < 2 MiB; fits v5e/v6e/v7x easily)
        compiler_params=pltpu.CompilerParams(vmem_limit_bytes=32 * 1024 * 1024),
    )(emb, attn_bias_wide, head_mask, labels_flat, small_packed,
      wqkv_s, params["wo"], params["wi"], params["wo2"], cls_w_pad)

    logits = logits_pad[:, :NUM_LABELS].reshape(B, S, NUM_LABELS)
    return {"loss": loss[0, 0], "logits": logits}


# ------------------------------ parameter init ----------------------------------
def init_params(key):
    ks = jax.random.split(key, 4 + NUM_LAYERS)

    def nrm(k, shape):
        return jax.random.normal(k, shape, jnp.float32) * 0.02

    word_emb = nrm(ks[0], (VOCAB, HIDDEN)).at[PAD_ID].set(0.0)   # padding_idx zeroed
    pos_emb = nrm(ks[1], (MAX_POS, HIDDEN)).at[PAD_ID].set(0.0)
    type_emb = nrm(ks[2], (TYPE_VOCAB, HIDDEN))

    wqkv, wo, wi, wo2 = [], [], [], []
    for li in range(NUM_LAYERS):
        lk = jax.random.split(ks[3 + li], 6)
        wq = nrm(lk[0], (HIDDEN, HIDDEN))
        wk = nrm(lk[1], (HIDDEN, HIDDEN))
        wv = nrm(lk[2], (HIDDEN, HIDDEN))
        wqkv.append(jnp.concatenate([wq, wk, wv], axis=1))        # (H, 3H) fused QKV
        wo.append(nrm(lk[3], (HIDDEN, HIDDEN)))                   # flat (H, H) output proj
        wi.append(nrm(lk[4], (HIDDEN, INTER)))
        wo2.append(nrm(lk[5], (INTER, HIDDEN)))

    return {
        "word_emb": word_emb, "pos_emb": pos_emb, "type_emb": type_emb,
        "emb_ln_g": jnp.ones((HIDDEN,), jnp.float32),
        "emb_ln_b": jnp.zeros((HIDDEN,), jnp.float32),
        # per-layer weights stacked along a leading NUM_LAYERS axis
        "wqkv": jnp.stack(wqkv), "bqkv": jnp.zeros((NUM_LAYERS, 3 * HIDDEN), jnp.float32),
        "wo": jnp.stack(wo),     "bo": jnp.zeros((NUM_LAYERS, HIDDEN), jnp.float32),
        "ln1_g": jnp.ones((NUM_LAYERS, HIDDEN), jnp.float32),
        "ln1_b": jnp.zeros((NUM_LAYERS, HIDDEN), jnp.float32),
        "wi": jnp.stack(wi),     "bi": jnp.zeros((NUM_LAYERS, INTER), jnp.float32),
        "wo2": jnp.stack(wo2),   "bo2": jnp.zeros((NUM_LAYERS, HIDDEN), jnp.float32),
        "ln2_g": jnp.ones((NUM_LAYERS, HIDDEN), jnp.float32),
        "ln2_b": jnp.zeros((NUM_LAYERS, HIDDEN), jnp.float32),
        "cls_w": nrm(ks[3 + NUM_LAYERS], (HIDDEN, NUM_LABELS)),
        "cls_b": jnp.zeros((NUM_LABELS,), jnp.float32),
    }


# ------------------------------------ main ---------------------------------------
if __name__ == "__main__":
    root = jax.random.PRNGKey(0)
    k_params, k_ids, k_labels = jax.random.split(root, 3)

    params = init_params(k_params)

    # deterministic example inputs
    raw_ids = jax.random.randint(k_ids, (BATCH, SEQ), 3, VOCAB, dtype=jnp.int32)
    attention_mask = jnp.ones((BATCH, SEQ), jnp.int32).at[1, SEQ - 4:].set(0)   # pad tail of 2nd example
    input_ids = jnp.where(attention_mask == 1, raw_ids, PAD_ID)
    raw_labels = jax.random.randint(k_labels, (BATCH, SEQ), 0, NUM_LABELS, dtype=jnp.int32)
    labels = jnp.where(attention_mask == 1, raw_labels, IGNORE_INDEX)           # -100 on padding

    out = roberta_token_classifier_forward(params, input_ids, attention_mask, labels)
    jax.block_until_ready(out)

    assert out["logits"].shape == (BATCH, SEQ, NUM_LABELS)
    assert out["loss"].shape == ()
    assert bool(jnp.isfinite(out["loss"]))
    print("KERNEL_OK")
</pallas_src>

<mosaic_0001>
module attributes {stable_mosaic.version = 11 : i64} {
  func.func @fused_forward_kernel(%arg0: memref<32x128xf32, #tpu.memory_space<vmem>>, %arg1: memref<32x128xf32, #tpu.memory_space<vmem>>, %arg2: memref<128x128xf32, #tpu.memory_space<vmem>>, %arg3: memref<32x1xi32, #tpu.memory_space<vmem>>, %arg4: memref<19x1x384xf32, #tpu.memory_space<vmem>>, %arg5: memref<2x128x384xf32, #tpu.memory_space<vmem>>, %arg6: memref<2x128x128xf32, #tpu.memory_space<vmem>>, %arg7: memref<2x128x256xf32, #tpu.memory_space<vmem>>, %arg8: memref<2x256x128xf32, #tpu.memory_space<vmem>>, %arg9: memref<128x128xf32, #tpu.memory_space<vmem>>, %arg10: memref<32x128xf32, #tpu.memory_space<vmem>>, %arg11: memref<1x1xf32, #tpu.memory_space<vmem>>) attributes {dimension_semantics = [], scalar_prefetch = 0 : i64, scratch_operands = 0 : i64, tpu.core_type = #tpu.core_type<tc>} {
    %c0 = arith.constant 0 : index
    %c0_0 = arith.constant 0 : index
    %0 = vector.load %arg0[%c0, %c0_0] : memref<32x128xf32, #tpu.memory_space<vmem>>, vector<32x128xf32>
    %c0_1 = arith.constant 0 : index
    %c0_2 = arith.constant 0 : index
    %c0_3 = arith.constant 0 : index
    %1 = vector.load %arg4[%c0_1, %c0_2, %c0_3] : memref<19x1x384xf32, #tpu.memory_space<vmem>>, vector<1x1x384xf32>
    %2 = vector.shape_cast %1 : vector<1x1x384xf32> to vector<1x384xf32>
    %3 = vector.extract_strided_slice %2 {offsets = [0, 0], sizes = [1, 128], strides = [1, 1]} : vector<1x384xf32> to vector<1x128xf32>
    %c1 = arith.constant 1 : index
    %c0_4 = arith.constant 0 : index
    %c0_5 = arith.constant 0 : index
    %4 = vector.load %arg4[%c1, %c0_4, %c0_5] : memref<19x1x384xf32, #tpu.memory_space<vmem>>, vector<1x1x384xf32>
    %5 = vector.shape_cast %4 : vector<1x1x384xf32> to vector<1x384xf32>
    %6 = vector.extract_strided_slice %5 {offsets = [0, 0], sizes = [1, 128], strides = [1, 1]} : vector<1x384xf32> to vector<1x128xf32>
    %cst = arith.constant dense<0.000000e+00> : vector<32xf32>
    %7 = vector.multi_reduction <add>, %0, %cst [1] : vector<32x128xf32> to vector<32xf32>
    %8 = vector.shape_cast %7 : vector<32xf32> to vector<32x1xf32>
    %cst_6 = arith.constant 1.280000e+02 : f32
    %9 = vector.broadcast %cst_6 : f32 to vector<32x1xf32>
    %10 = arith.divf %8, %9 : vector<32x1xf32>
    %11 = vector.broadcast %10 : vector<32x1xf32> to vector<32x128xf32>
    %12 = arith.subf %0, %11 : vector<32x128xf32>
    %13 = arith.mulf %12, %12 : vector<32x128xf32>
    %cst_7 = arith.constant dense<0.000000e+00> : vector<32xf32>
    %14 = vector.multi_reduction <add>, %13, %cst_7 [1] : vector<32x128xf32> to vector<32xf32>
    %15 = vector.shape_cast %14 : vector<32xf32> to vector<32x1xf32>
    %cst_8 = arith.constant 1.280000e+02 : f32
    %16 = vector.broadcast %cst_8 : f32 to vector<32x1xf32>
    %17 = arith.divf %15, %16 : vector<32x1xf32>
    %18 = vector.broadcast %10 : vector<32x1xf32> to vector<32x128xf32>
    %19 = arith.subf %0, %18 : vector<32x128xf32>
    %cst_9 = arith.constant 9.99999974E-6 : f32
    %20 = vector.broadcast %cst_9 : f32 to vector<32x1xf32>
    %21 = arith.addf %17, %20 : vector<32x1xf32>
    %22 = math.rsqrt %21 : vector<32x1xf32>
    %23 = vector.broadcast %22 : vector<32x1xf32> to vector<32x128xf32>
    %24 = arith.mulf %19, %23 : vector<32x128xf32>
    %25 = vector.broadcast %3 : vector<1x128xf32> to vector<32x128xf32>
    %26 = arith.mulf %24, %25 : vector<32x128xf32>
    %27 = vector.broadcast %6 : vector<1x128xf32> to vector<32x128xf32>
    %28 = arith.addf %26, %27 : vector<32x128xf32>
    %c0_10 = arith.constant 0 : index
    %c0_11 = arith.constant 0 : index
    %29 = vector.load %arg1[%c0_10, %c0_11] : memref<32x128xf32, #tpu.memory_space<vmem>>, vector<32x128xf32>
    %c0_12 = arith.constant 0 : index
    %c0_13 = arith.constant 0 : index
    %30 = vector.load %arg2[%c0_12, %c0_13] : memref<128x128xf32, #tpu.memory_space<vmem>>, vector<128x128xf32>
    %c0_14 = arith.constant 0 : index
    %c0_15 = arith.constant 0 : index
    %c0_16 = arith.constant 0 : index
    %31 = vector.load %arg5[%c0_14, %c0_15, %c0_16] : memref<2x128x384xf32, #tpu.memory_space<vmem>>, vector<1x128x384xf32>
    %32 = vector.shape_cast %31 : vector<1x128x384xf32> to vector<128x384xf32>
    %cst_17 = arith.constant dense<0.000000e+00> : vector<32x384xf32>
    %33 = tpu.matmul %28, %32, %cst_17 {dimension_numbers = #tpu.dot_dimension_numbers<[1], [0], [0], [1], [0, 0, 1, 1], [], []>} : vector<32x128xf32>, vector<128x384xf32>, vector<32x384xf32> -> vector<32x384xf32>
    %c2 = arith.constant 2 : index
    %c0_18 = arith.constant 0 : index
    %c0_19 = arith.constant 0 : index
    %34 = vector.load %arg4[%c2, %c0_18, %c0_19] : memref<19x1x384xf32, #tpu.memory_space<vmem>>, vector<1x1x384xf32>
    %35 = vector.shape_cast %34 : vector<1x1x384xf32> to vector<1x384xf32>
    %36 = vector.broadcast %35 : vector<1x384xf32> to vector<32x384xf32>
    %37 = arith.addf %33, %36 : vector<32x384xf32>
    %38 = vector.extract_strided_slice %37 {offsets = [0, 0], sizes = [32, 128], strides = [1, 1]} : vector<32x384xf32> to vector<32x128xf32>
    %39 = vector.extract_strided_slice %37 {offsets = [0, 128], sizes = [32, 128], strides = [1, 1]} : vector<32x384xf32> to vector<32x128xf32>
    %40 = vector.extract_strided_slice %37 {offsets = [0, 256], sizes = [32, 128], strides = [1, 1]} : vector<32x384xf32> to vector<32x128xf32>
    %41 = tpu.concatenate %39, %39, %39, %39 in 0 : vector<32x128xf32>, vector<32x128xf32>, vector<32x128xf32>, vector<32x128xf32> -> vector<128x128xf32>
    %42 = arith.mulf %41, %30 : vector<128x128xf32>
    %43 = tpu.concatenate %40, %40, %40, %40 in 0 : vector<32x128xf32>, vector<32x128xf32>, vector<32x128xf32>, vector<32x128xf32> -> vector<128x128xf32>
    %44 = arith.mulf %43, %30 : vector<128x128xf32>
    %cst_20 = arith.constant dense<0.000000e+00> : vector<32x128xf32>
    %45 = tpu.matmul %38, %42, %cst_20 {dimension_numbers = #tpu.dot_dimension_numbers<[1], [1], [0], [0], [0, 0, 1, 0], [], []>} : vector<32x128xf32>, vector<128x128xf32>, vector<32x128xf32> -> vector<32x128xf32>
    %46 = arith.addf %45, %29 : vector<32x128xf32>
    %cst_21 = arith.constant dense<0xFF800000> : vector<32xf32>
    %47 = vector.multi_reduction <maximumf>, %46, %cst_21 [1] : vector<32x128xf32> to vector<32xf32>
    %48 = vector.shape_cast %47 : vector<32xf32> to vector<32x1xf32>
    %49 = vector.broadcast %48 : vector<32x1xf32> to vector<32x128xf32>
    %50 = arith.subf %46, %49 : vector<32x128xf32>
    %51 = math.exp %50 : vector<32x128xf32>
    %cst_22 = arith.constant dense<0.000000e+00> : vector<32x128xf32>
    %52 = tpu.matmul %51, %44, %cst_22 {dimension_numbers = #tpu.dot_dimension_numbers<[1], [0], [0], [1], [0, 0, 1, 1], [], []>} : vector<32x128xf32>, vector<128x128xf32>, vector<32x128xf32> -> vector<32x128xf32>
    %cst_23 = arith.constant dense<0.000000e+00> : vector<32x128xf32>
    %53 = tpu.matmul %51, %30, %cst_23 {dimension_numbers = #tpu.dot_dimension_numbers<[1], [0], [0], [1], [0, 0, 1, 1], [], []>} : vector<32x128xf32>, vector<128x128xf32>, vector<32x128xf32> -> vector<32x128xf32>
    %cst_24 = arith.constant 1.000000e-30 : f32
    %54 = vector.broadcast %cst_24 : f32 to vector<32x128xf32>
    %55 = arith.maximumf %53, %54 : vector<32x128xf32>
    %56 = tpu.reciprocal %55 {approx = true} : vector<32x128xf32> -> vector<32x128xf32>
    %57 = arith.mulf %52, %56 : vector<32x128xf32>
    %c0_25 = arith.constant 0 : index
    %c0_26 = arith.constant 0 : index
    %c0_27 = arith.constant 0 : index
    %58 = vector.load %arg6[%c0_25, %c0_26, %c0_27] : memref<2x128x128xf32, #tpu.memory_space<vmem>>, vector<1x128x128xf32>
    %59 = vector.shape_cast %58 : vector<1x128x128xf32> to vector<128x128xf32>
    %cst_28 = arith.constant dense<0.000000e+00> : vector<32x128xf32>
    %60 = tpu.matmul %57, %59, %cst_28 {dimension_numbers = #tpu.dot_dimension_numbers<[1], [0], [0], [1], [0, 0, 1, 1], [], []>} : vector<32x128xf32>, vector<128x128xf32>, vector<32x128xf32> -> vector<32x128xf32>
    %c3 = arith.constant 3 : index
    %c0_29 = arith.constant 0 : index
    %c0_30 = arith.constant 0 : index
    %61 = vector.load %arg4[%c3, %c0_29, %c0_30] : memref<19x1x384xf32, #tpu.memory_space<vmem>>, vector<1x1x384xf32>
    %62 = vector.shape_cast %61 : vector<1x1x384xf32> to vector<1x384xf32>
    %63 = vector.extract_strided_slice %62 {offsets = [0, 0], sizes = [1, 128], strides = [1, 1]} : vector<1x384xf32> to vector<1x128xf32>
    %64 = vector.broadcast %63 : vector<1x128xf32> to vector<32x128xf32>
    %65 = arith.addf %60, %64 : vector<32x128xf32>
    %66 = arith.addf %65, %28 : vector<32x128xf32>
    %c4 = arith.constant 4 : index
    %c0_31 = arith.constant 0 : index
    %c0_32 = arith.constant 0 : index
    %67 = vector.load %arg4[%c4, %c0_31, %c0_32] : memref<19x1x384xf32, #tpu.memory_space<vmem>>, vector<1x1x384xf32>
    %68 = vector.shape_cast %67 : vector<1x1x384xf32> to vector<1x384xf32>
    %69 = vector.extract_strided_slice %68 {offsets = [0, 0], sizes = [1, 128], strides = [1, 1]} : vector<1x384xf32> to vector<1x128xf32>
    %c5 = arith.constant 5 : index
    %c0_33 = arith.constant 0 : index
    %c0_34 = arith.constant 0 : index
    %70 = vector.load %arg4[%c5, %c0_33, %c0_34] : memref<19x1x384xf32, #tpu.memory_space<vmem>>, vector<1x1x384xf32>
    %71 = vector.shape_cast %70 : vector<1x1x384xf32> to vector<1x384xf32>
    %72 = vector.extract_strided_slice %71 {offsets = [0, 0], sizes = [1, 128], strides = [1, 1]} : vector<1x384xf32> to vector<1x128xf32>
    %cst_35 = arith.constant dense<0.000000e+00> : vector<32xf32>
    %73 = vector.multi_reduction <add>, %66, %cst_35 [1] : vector<32x128xf32> to vector<32xf32>
    %74 = vector.shape_cast %73 : vector<32xf32> to vector<32x1xf32>
    %cst_36 = arith.constant 1.280000e+02 : f32
    %75 = vector.broadcast %cst_36 : f32 to vector<32x1xf32>
    %76 = arith.divf %74, %75 : vector<32x1xf32>
    %77 = vector.broadcast %76 : vector<32x1xf32> to vector<32x128xf32>
    %78 = arith.subf %66, %77 : vector<32x128xf32>
    %79 = arith.mulf %78, %78 : vector<32x128xf32>
    %cst_37 = arith.constant dense<0.000000e+00> : vector<32xf32>
    %80 = vector.multi_reduction <add>, %79, %cst_37 [1] : vector<32x128xf32> to vector<32xf32>
    %81 = vector.shape_cast %80 : vector<32xf32> to vector<32x1xf32>
    %cst_38 = arith.constant 1.280000e+02 : f32
    %82 = vector.broadcast %cst_38 : f32 to vector<32x1xf32>
    %83 = arith.divf %81, %82 : vector<32x1xf32>
    %84 = vector.broadcast %76 : vector<32x1xf32> to vector<32x128xf32>
    %85 = arith.subf %66, %84 : vector<32x128xf32>
    %cst_39 = arith.constant 9.99999974E-6 : f32
    %86 = vector.broadcast %cst_39 : f32 to vector<32x1xf32>
    %87 = arith.addf %83, %86 : vector<32x1xf32>
    %88 = math.rsqrt %87 : vector<32x1xf32>
    %89 = vector.broadcast %88 : vector<32x1xf32> to vector<32x128xf32>
    %90 = arith.mulf %85, %89 : vector<32x128xf32>
    %91 = vector.broadcast %69 : vector<1x128xf32> to vector<32x128xf32>
    %92 = arith.mulf %90, %91 : vector<32x128xf32>
    %93 = vector.broadcast %72 : vector<1x128xf32> to vector<32x128xf32>
    %94 = arith.addf %92, %93 : vector<32x128xf32>
    %c0_40 = arith.constant 0 : index
    %c0_41 = arith.constant 0 : index
    %c0_42 = arith.constant 0 : index
    %95 = vector.load %arg7[%c0_40, %c0_41, %c0_42] : memref<2x128x256xf32, #tpu.memory_space<vmem>>, vector<1x128x256xf32>
    %96 = vector.shape_cast %95 : vector<1x128x256xf32> to vector<128x256xf32>
    %cst_43 = arith.constant dense<0.000000e+00> : vector<32x256xf32>
    %97 = tpu.matmul %94, %96, %cst_43 {dimension_numbers = #tpu.dot_dimension_numbers<[1], [0], [0], [1], [0, 0, 1, 1], [], []>} : vector<32x128xf32>, vector<128x256xf32>, vector<32x256xf32> -> vector<32x256xf32>
    %c6 = arith.constant 6 : index
    %c0_44 = arith.constant 0 : index
    %c0_45 = arith.constant 0 : index
    %98 = vector.load %arg4[%c6, %c0_44, %c0_45] : memref<19x1x384xf32, #tpu.memory_space<vmem>>, vector<1x1x384xf32>
    %99 = vector.shape_cast %98 : vector<1x1x384xf32> to vector<1x384xf32>
    %100 = vector.extract_strided_slice %99 {offsets = [0, 0], sizes = [1, 256], strides = [1, 1]} : vector<1x384xf32> to vector<1x256xf32>
    %101 = vector.broadcast %100 : vector<1x256xf32> to vector<32x256xf32>
    %102 = arith.addf %97, %101 : vector<32x256xf32>
    %cst_46 = arith.constant 5.000000e-01 : f32
    %103 = vector.broadcast %cst_46 : f32 to vector<32x256xf32>
    %104 = arith.mulf %103, %102 : vector<32x256xf32>
    %cst_47 = arith.constant 4.471500e-02 : f32
    %105 = vector.broadcast %cst_47 : f32 to vector<32x256xf32>
    %106 = arith.mulf %105, %102 : vector<32x256xf32>
    %107 = arith.mulf %106, %102 : vector<32x256xf32>
    %108 = arith.mulf %107, %102 : vector<32x256xf32>
    %109 = arith.addf %102, %108 : vector<32x256xf32>
    %cst_48 = arith.constant 0.797884583 : f32
    %110 = vector.broadcast %cst_48 : f32 to vector<32x256xf32>
    %111 = arith.mulf %110, %109 : vector<32x256xf32>
    %112 = math.tanh %111 : vector<32x256xf32>
    %cst_49 = arith.constant 1.000000e+00 : f32
    %113 = vector.broadcast %cst_49 : f32 to vector<32x256xf32>
    %114 = arith.addf %113, %112 : vector<32x256xf32>
    %115 = arith.mulf %104, %114 : vector<32x256xf32>
    %c0_50 = arith.constant 0 : index
    %c0_51 = arith.constant 0 : index
    %c0_52 = arith.constant 0 : index
    %116 = vector.load %arg8[%c0_50, %c0_51, %c0_52] : memref<2x256x128xf32, #tpu.memory_space<vmem>>, vector<1x256x128xf32>
    %117 = vector.shape_cast %116 : vector<1x256x128xf32> to vector<256x128xf32>
    %cst_53 = arith.constant dense<0.000000e+00> : vector<32x128xf32>
    %118 = tpu.matmul %115, %117, %cst_53 {dimension_numbers = #tpu.dot_dimension_numbers<[1], [0], [0], [1], [0, 0, 1, 1], [], []>} : vector<32x256xf32>, vector<256x128xf32>, vector<32x128xf32> -> vector<32x128xf32>
    %c7 = arith.constant 7 : index
    %c0_54 = arith.constant 0 : index
    %c0_55 = arith.constant 0 : index
    %119 = vector.load %arg4[%c7, %c0_54, %c0_55] : memref<19x1x384xf32, #tpu.memory_space<vmem>>, vector<1x1x384xf32>
    %120 = vector.shape_cast %119 : vector<1x1x384xf32> to vector<1x384xf32>
    %121 = vector.extract_strided_slice %120 {offsets = [0, 0], sizes = [1, 128], strides = [1, 1]} : vector<1x384xf32> to vector<1x128xf32>
    %122 = vector.broadcast %121 : vector<1x128xf32> to vector<32x128xf32>
    %123 = arith.addf %118, %122 : vector<32x128xf32>
    %124 = arith.addf %123, %94 : vector<32x128xf32>
    %c8 = arith.constant 8 : index
    %c0_56 = arith.constant 0 : index
    %c0_57 = arith.constant 0 : index
    %125 = vector.load %arg4[%c8, %c0_56, %c0_57] : memref<19x1x384xf32, #tpu.memory_space<vmem>>, vector<1x1x384xf32>
    %126 = vector.shape_cast %125 : vector<1x1x384xf32> to vector<1x384xf32>
    %127 = vector.extract_strided_slice %126 {offsets = [0, 0], sizes = [1, 128], strides = [1, 1]} : vector<1x384xf32> to vector<1x128xf32>
    %c9 = arith.constant 9 : index
    %c0_58 = arith.constant 0 : index
    %c0_59 = arith.constant 0 : index
    %128 = vector.load %arg4[%c9, %c0_58, %c0_59] : memref<19x1x384xf32, #tpu.memory_space<vmem>>, vector<1x1x384xf32>
    %129 = vector.shape_cast %128 : vector<1x1x384xf32> to vector<1x384xf32>
    %130 = vector.extract_strided_slice %129 {offsets = [0, 0], sizes = [1, 128], strides = [1, 1]} : vector<1x384xf32> to vector<1x128xf32>
    %cst_60 = arith.constant dense<0.000000e+00> : vector<32xf32>
    %131 = vector.multi_reduction <add>, %124, %cst_60 [1] : vector<32x128xf32> to vector<32xf32>
    %132 = vector.shape_cast %131 : vector<32xf32> to vector<32x1xf32>
    %cst_61 = arith.constant 1.280000e+02 : f32
    %133 = vector.broadcast %cst_61 : f32 to vector<32x1xf32>
    %134 = arith.divf %132, %133 : vector<32x1xf32>
    %135 = vector.broadcast %134 : vector<32x1xf32> to vector<32x128xf32>
    %136 = arith.subf %124, %135 : vector<32x128xf32>
    %137 = arith.mulf %136, %136 : vector<32x128xf32>
    %cst_62 = arith.constant dense<0.000000e+00> : vector<32xf32>
    %138 = vector.multi_reduction <add>, %137, %cst_62 [1] : vector<32x128xf32> to vector<32xf32>
    %139 = vector.shape_cast %138 : vector<32xf32> to vector<32x1xf32>
    %cst_63 = arith.constant 1.280000e+02 : f32
    %140 = vector.broadcast %cst_63 : f32 to vector<32x1xf32>
    %141 = arith.divf %139, %140 : vector<32x1xf32>
    %142 = vector.broadcast %134 : vector<32x1xf32> to vector<32x128xf32>
    %143 = arith.subf %124, %142 : vector<32x128xf32>
    %cst_64 = arith.constant 9.99999974E-6 : f32
    %144 = vector.broadcast %cst_64 : f32 to vector<32x1xf32>
    %145 = arith.addf %141, %144 : vector<32x1xf32>
    %146 = math.rsqrt %145 : vector<32x1xf32>
    %147 = vector.broadcast %146 : vector<32x1xf32> to vector<32x128xf32>
    %148 = arith.mulf %143, %147 : vector<32x128xf32>
    %149 = vector.broadcast %127 : vector<1x128xf32> to vector<32x128xf32>
    %150 = arith.mulf %148, %149 : vector<32x128xf32>
    %151 = vector.broadcast %130 : vector<1x128xf32> to vector<32x128xf32>
    %152 = arith.addf %150, %151 : vector<32x128xf32>
    %c1_65 = arith.constant 1 : index
    %c0_66 = arith.constant 0 : index
    %c0_67 = arith.constant 0 : index
    %153 = vector.load %arg5[%c1_65, %c0_66, %c0_67] : memref<2x128x384xf32, #tpu.memory_space<vmem>>, vector<1x128x384xf32>
    %154 = vector.shape_cast %153 : vector<1x128x384xf32> to vector<128x384xf32>
    %cst_68 = arith.constant dense<0.000000e+00> : vector<32x384xf32>
    %155 = tpu.matmul %152, %154, %cst_68 {dimension_numbers = #tpu.dot_dimension_numbers<[1], [0], [0], [1], [0, 0, 1, 1], [], []>} : vector<32x128xf32>, vector<128x384xf32>, vector<32x384xf32> -> vector<32x384xf32>
    %c10 = arith.constant 10 : index
    %c0_69 = arith.constant 0 : index
    %c0_70 = arith.constant 0 : index
    %156 = vector.load %arg4[%c10, %c0_69, %c0_70] : memref<19x1x384xf32, #tpu.memory_space<vmem>>, vector<1x1x384xf32>
    %157 = vector.shape_cast %156 : vector<1x1x384xf32> to vector<1x384xf32>
    %158 = vector.broadcast %157 : vector<1x384xf32> to vector<32x384xf32>
    %159 = arith.addf %155, %158 : vector<32x384xf32>
    %160 = vector.extract_strided_slice %159 {offsets = [0, 0], sizes = [32, 128], strides = [1, 1]} : vector<32x384xf32> to vector<32x128xf32>
    %161 = vector.extract_strided_slice %159 {offsets = [0, 128], sizes = [32, 128], strides = [1, 1]} : vector<32x384xf32> to vector<32x128xf32>
    %162 = vector.extract_strided_slice %159 {offsets = [0, 256], sizes = [32, 128], strides = [1, 1]} : vector<32x384xf32> to vector<32x128xf32>
    %163 = tpu.concatenate %161, %161, %161, %161 in 0 : vector<32x128xf32>, vector<32x128xf32>, vector<32x128xf32>, vector<32x128xf32> -> vector<128x128xf32>
    %164 = arith.mulf %163, %30 : vector<128x128xf32>
    %165 = tpu.concatenate %162, %162, %162, %162 in 0 : vector<32x128xf32>, vector<32x128xf32>, vector<32x128xf32>, vector<32x128xf32> -> vector<128x128xf32>
    %166 = arith.mulf %165, %30 : vector<128x128xf32>
    %cst_71 = arith.constant dense<0.000000e+00> : vector<32x128xf32>
    %167 = tpu.matmul %160, %164, %cst_71 {dimension_numbers = #tpu.dot_dimension_numbers<[1], [1], [0], [0], [0, 0, 1, 0], [], []>} : vector<32x128xf32>, vector<128x128xf32>, vector<32x128xf32> -> vector<32x128xf32>
    %168 = arith.addf %167, %29 : vector<32x128xf32>
    %cst_72 = arith.constant dense<0xFF800000> : vector<32xf32>
    %169 = vector.multi_reduction <maximumf>, %168, %cst_72 [1] : vector<32x128xf32> to vector<32xf32>
    %170 = vector.shape_cast %169 : vector<32xf32> to vector<32x1xf32>
    %171 = vector.broadcast %170 : vector<32x1xf32> to vector<32x128xf32>
    %172 = arith.subf %168, %171 : vector<32x128xf32>
    %173 = math.exp %172 : vector<32x128xf32>
    %cst_73 = arith.constant dense<0.000000e+00> : vector<32x128xf32>
    %174 = tpu.matmul %173, %166, %cst_73 {dimension_numbers = #tpu.dot_dimension_numbers<[1], [0], [0], [1], [0, 0, 1, 1], [], []>} : vector<32x128xf32>, vector<128x128xf32>, vector<32x128xf32> -> vector<32x128xf32>
    %cst_74 = arith.constant dense<0.000000e+00> : vector<32x128xf32>
    %175 = tpu.matmul %173, %30, %cst_74 {dimension_numbers = #tpu.dot_dimension_numbers<[1], [0], [0], [1], [0, 0, 1, 1], [], []>} : vector<32x128xf32>, vector<128x128xf32>, vector<32x128xf32> -> vector<32x128xf32>
    %cst_75 = arith.constant 1.000000e-30 : f32
    %176 = vector.broadcast %cst_75 : f32 to vector<32x128xf32>
    %177 = arith.maximumf %175, %176 : vector<32x128xf32>
    %178 = tpu.reciprocal %177 {approx = true} : vector<32x128xf32> -> vector<32x128xf32>
    %179 = arith.mulf %174, %178 : vector<32x128xf32>
    %c1_76 = arith.constant 1 : index
    %c0_77 = arith.constant 0 : index
    %c0_78 = arith.constant 0 : index
    %180 = vector.load %arg6[%c1_76, %c0_77, %c0_78] : memref<2x128x128xf32, #tpu.memory_space<vmem>>, vector<1x128x128xf32>
    %181 = vector.shape_cast %180 : vector<1x128x128xf32> to vector<128x128xf32>
    %cst_79 = arith.constant dense<0.000000e+00> : vector<32x128xf32>
    %182 = tpu.matmul %179, %181, %cst_79 {dimension_numbers = #tpu.dot_dimension_numbers<[1], [0], [0], [1], [0, 0, 1, 1], [], []>} : vector<32x128xf32>, vector<128x128xf32>, vector<32x128xf32> -> vector<32x128xf32>
    %c11 = arith.constant 11 : index
    %c0_80 = arith.constant 0 : index
    %c0_81 = arith.constant 0 : index
    %183 = vector.load %arg4[%c11, %c0_80, %c0_81] : memref<19x1x384xf32, #tpu.memory_space<vmem>>, vector<1x1x384xf32>
    %184 = vector.shape_cast %183 : vector<1x1x384xf32> to vector<1x384xf32>
    %185 = vector.extract_strided_slice %184 {offsets = [0, 0], sizes = [1, 128], strides = [1, 1]} : vector<1x384xf32> to vector<1x128xf32>
    %186 = vector.broadcast %185 : vector<1x128xf32> to vector<32x128xf32>
    %187 = arith.addf %182, %186 : vector<32x128xf32>
    %188 = arith.addf %187, %152 : vector<32x128xf32>
    %c12 = arith.constant 12 : index
    %c0_82 = arith.constant 0 : index
    %c0_83 = arith.constant 0 : index
    %189 = vector.load %arg4[%c12, %c0_82, %c0_83] : memref<19x1x384xf32, #tpu.memory_space<vmem>>, vector<1x1x384xf32>
    %190 = vector.shape_cast %189 : vector<1x1x384xf32> to vector<1x384xf32>
    %191 = vector.extract_strided_slice %190 {offsets = [0, 0], sizes = [1, 128], strides = [1, 1]} : vector<1x384xf32> to vector<1x128xf32>
    %c13 = arith.constant 13 : index
    %c0_84 = arith.constant 0 : index
    %c0_85 = arith.constant 0 : index
    %192 = vector.load %arg4[%c13, %c0_84, %c0_85] : memref<19x1x384xf32, #tpu.memory_space<vmem>>, vector<1x1x384xf32>
    %193 = vector.shape_cast %192 : vector<1x1x384xf32> to vector<1x384xf32>
    %194 = vector.extract_strided_slice %193 {offsets = [0, 0], sizes = [1, 128], strides = [1, 1]} : vector<1x384xf32> to vector<1x128xf32>
    %cst_86 = arith.constant dense<0.000000e+00> : vector<32xf32>
    %195 = vector.multi_reduction <add>, %188, %cst_86 [1] : vector<32x128xf32> to vector<32xf32>
    %196 = vector.shape_cast %195 : vector<32xf32> to vector<32x1xf32>
    %cst_87 = arith.constant 1.280000e+02 : f32
    %197 = vector.broadcast %cst_87 : f32 to vector<32x1xf32>
    %198 = arith.divf %196, %197 : vector<32x1xf32>
    %199 = vector.broadcast %198 : vector<32x1xf32> to vector<32x128xf32>
    %200 = arith.subf %188, %199 : vector<32x128xf32>
    %201 = arith.mulf %200, %200 : vector<32x128xf32>
    %cst_88 = arith.constant dense<0.000000e+00> : vector<32xf32>
    %202 = vector.multi_reduction <add>, %201, %cst_88 [1] : vector<32x128xf32> to vector<32xf32>
    %203 = vector.shape_cast %202 : vector<32xf32> to vector<32x1xf32>
    %cst_89 = arith.constant 1.280000e+02 : f32
    %204 = vector.broadcast %cst_89 : f32 to vector<32x1xf32>
    %205 = arith.divf %203, %204 : vector<32x1xf32>
    %206 = vector.broadcast %198 : vector<32x1xf32> to vector<32x128xf32>
    %207 = arith.subf %188, %206 : vector<32x128xf32>
    %cst_90 = arith.constant 9.99999974E-6 : f32
    %208 = vector.broadcast %cst_90 : f32 to vector<32x1xf32>
    %209 = arith.addf %205, %208 : vector<32x1xf32>
    %210 = math.rsqrt %209 : vector<32x1xf32>
    %211 = vector.broadcast %210 : vector<32x1xf32> to vector<32x128xf32>
    %212 = arith.mulf %207, %211 : vector<32x128xf32>
    %213 = vector.broadcast %191 : vector<1x128xf32> to vector<32x128xf32>
    %214 = arith.mulf %212, %213 : vector<32x128xf32>
    %215 = vector.broadcast %194 : vector<1x128xf32> to vector<32x128xf32>
    %216 = arith.addf %214, %215 : vector<32x128xf32>
    %c1_91 = arith.constant 1 : index
    %c0_92 = arith.constant 0 : index
    %c0_93 = arith.constant 0 : index
    %217 = vector.load %arg7[%c1_91, %c0_92, %c0_93] : memref<2x128x256xf32, #tpu.memory_space<vmem>>, vector<1x128x256xf32>
    %218 = vector.shape_cast %217 : vector<1x128x256xf32> to vector<128x256xf32>
    %cst_94 = arith.constant dense<0.000000e+00> : vector<32x256xf32>
    %219 = tpu.matmul %216, %218, %cst_94 {dimension_numbers = #tpu.dot_dimension_numbers<[1], [0], [0], [1], [0, 0, 1, 1], [], []>} : vector<32x128xf32>, vector<128x256xf32>, vector<32x256xf32> -> vector<32x256xf32>
    %c14 = arith.constant 14 : index
    %c0_95 = arith.constant 0 : index
    %c0_96 = arith.constant 0 : index
    %220 = vector.load %arg4[%c14, %c0_95, %c0_96] : memref<19x1x384xf32, #tpu.memory_space<vmem>>, vector<1x1x384xf32>
    %221 = vector.shape_cast %220 : vector<1x1x384xf32> to vector<1x384xf32>
    %222 = vector.extract_strided_slice %221 {offsets = [0, 0], sizes = [1, 256], strides = [1, 1]} : vector<1x384xf32> to vector<1x256xf32>
    %223 = vector.broadcast %222 : vector<1x256xf32> to vector<32x256xf32>
    %224 = arith.addf %219, %223 : vector<32x256xf32>
    %cst_97 = arith.constant 5.000000e-01 : f32
    %225 = vector.broadcast %cst_97 : f32 to vector<32x256xf32>
    %226 = arith.mulf %225, %224 : vector<32x256xf32>
    %cst_98 = arith.constant 4.471500e-02 : f32
    %227 = vector.broadcast %cst_98 : f32 to vector<32x256xf32>
    %228 = arith.mulf %227, %224 : vector<32x256xf32>
    %229 = arith.mulf %228, %224 : vector<32x256xf32>
    %230 = arith.mulf %229, %224 : vector<32x256xf32>
    %231 = arith.addf %224, %230 : vector<32x256xf32>
    %cst_99 = arith.constant 0.797884583 : f32
    %232 = vector.broadcast %cst_99 : f32 to vector<32x256xf32>
    %233 = arith.mulf %232, %231 : vector<32x256xf32>
    %234 = math.tanh %233 : vector<32x256xf32>
    %cst_100 = arith.constant 1.000000e+00 : f32
    %235 = vector.broadcast %cst_100 : f32 to vector<32x256xf32>
    %236 = arith.addf %235, %234 : vector<32x256xf32>
    %237 = arith.mulf %226, %236 : vector<32x256xf32>
    %c1_101 = arith.constant 1 : index
    %c0_102 = arith.constant 0 : index
    %c0_103 = arith.constant 0 : index
    %238 = vector.load %arg8[%c1_101, %c0_102, %c0_103] : memref<2x256x128xf32, #tpu.memory_space<vmem>>, vector<1x256x128xf32>
    %239 = vector.shape_cast %238 : vector<1x256x128xf32> to vector<256x128xf32>
    %cst_104 = arith.constant dense<0.000000e+00> : vector<32x128xf32>
    %240 = tpu.matmul %237, %239, %cst_104 {dimension_numbers = #tpu.dot_dimension_numbers<[1], [0], [0], [1], [0, 0, 1, 1], [], []>} : vector<32x256xf32>, vector<256x128xf32>, vector<32x128xf32> -> vector<32x128xf32>
    %c15 = arith.constant 15 : index
    %c0_105 = arith.constant 0 : index
    %c0_106 = arith.constant 0 : index
    %241 = vector.load %arg4[%c15, %c0_105, %c0_106] : memref<19x1x384xf32, #tpu.memory_space<vmem>>, vector<1x1x384xf32>
    %242 = vector.shape_cast %241 : vector<1x1x384xf32> to vector<1x384xf32>
    %243 = vector.extract_strided_slice %242 {offsets = [0, 0], sizes = [1, 128], strides = [1, 1]} : vector<1x384xf32> to vector<1x128xf32>
    %244 = vector.broadcast %243 : vector<1x128xf32> to vector<32x128xf32>
    %245 = arith.addf %240, %244 : vector<32x128xf32>
    %246 = arith.addf %245, %216 : vector<32x128xf32>
    %c16 = arith.constant 16 : index
    %c0_107 = arith.constant 0 : index
    %c0_108 = arith.constant 0 : index
    %247 = vector.load %arg4[%c16, %c0_107, %c0_108] : memref<19x1x384xf32, #tpu.memory_space<vmem>>, vector<1x1x384xf32>
    %248 = vector.shape_cast %247 : vector<1x1x384xf32> to vector<1x384xf32>
    %249 = vector.extract_strided_slice %248 {offsets = [0, 0], sizes = [1, 128], strides = [1, 1]} : vector<1x384xf32> to vector<1x128xf32>
    %c17 = arith.constant 17 : index
    %c0_109 = arith.constant 0 : index
    %c0_110 = arith.constant 0 : index
    %250 = vector.load %arg4[%c17, %c0_109, %c0_110] : memref<19x1x384xf32, #tpu.memory_space<vmem>>, vector<1x1x384xf32>
    %251 = vector.shape_cast %250 : vector<1x1x384xf32> to vector<1x384xf32>
    %252 = vector.extract_strided_slice %251 {offsets = [0, 0], sizes = [1, 128], strides = [1, 1]} : vector<1x384xf32> to vector<1x128xf32>
    %cst_111 = arith.constant dense<0.000000e+00> : vector<32xf32>
    %253 = vector.multi_reduction <add>, %246, %cst_111 [1] : vector<32x128xf32> to vector<32xf32>
    %254 = vector.shape_cast %253 : vector<32xf32> to vector<32x1xf32>
    %cst_112 = arith.constant 1.280000e+02 : f32
    %255 = vector.broadcast %cst_112 : f32 to vector<32x1xf32>
    %256 = arith.divf %254, %255 : vector<32x1xf32>
    %257 = vector.broadcast %256 : vector<32x1xf32> to vector<32x128xf32>
    %258 = arith.subf %246, %257 : vector<32x128xf32>
    %259 = arith.mulf %258, %258 : vector<32x128xf32>
    %cst_113 = arith.constant dense<0.000000e+00> : vector<32xf32>
    %260 = vector.multi_reduction <add>, %259, %cst_113 [1] : vector<32x128xf32> to vector<32xf32>
    %261 = vector.shape_cast %260 : vector<32xf32> to vector<32x1xf32>
    %cst_114 = arith.constant 1.280000e+02 : f32
    %262 = vector.broadcast %cst_114 : f32 to vector<32x1xf32>
    %263 = arith.divf %261, %262 : vector<32x1xf32>
    %264 = vector.broadcast %256 : vector<32x1xf32> to vector<32x128xf32>
    %265 = arith.subf %246, %264 : vector<32x128xf32>
    %cst_115 = arith.constant 9.99999974E-6 : f32
    %266 = vector.broadcast %cst_115 : f32 to vector<32x1xf32>
    %267 = arith.addf %263, %266 : vector<32x1xf32>
    %268 = math.rsqrt %267 : vector<32x1xf32>
    %269 = vector.broadcast %268 : vector<32x1xf32> to vector<32x128xf32>
    %270 = arith.mulf %265, %269 : vector<32x128xf32>
    %271 = vector.broadcast %249 : vector<1x128xf32> to vector<32x128xf32>
    %272 = arith.mulf %270, %271 : vector<32x128xf32>
    %273 = vector.broadcast %252 : vector<1x128xf32> to vector<32x128xf32>
    %274 = arith.addf %272, %273 : vector<32x128xf32>
    %c0_116 = arith.constant 0 : index
    %c0_117 = arith.constant 0 : index
    %275 = vector.load %arg9[%c0_116, %c0_117] : memref<128x128xf32, #tpu.memory_space<vmem>>, vector<128x128xf32>
    %cst_118 = arith.constant dense<0.000000e+00> : vector<32x128xf32>
    %276 = tpu.matmul %274, %275, %cst_118 {dimension_numbers = #tpu.dot_dimension_numbers<[1], [0], [0], [1], [0, 0, 1, 1], [], []>} : vector<32x128xf32>, vector<128x128xf32>, vector<32x128xf32> -> vector<32x128xf32>
    %c18 = arith.constant 18 : index
    %c0_119 = arith.constant 0 : index
    %c0_120 = arith.constant 0 : index
    %277 = vector.load %arg4[%c18, %c0_119, %c0_120] : memref<19x1x384xf32, #tpu.memory_space<vmem>>, vector<1x1x384xf32>
    %278 = vector.shape_cast %277 : vector<1x1x384xf32> to vector<1x384xf32>
    %279 = vector.extract_strided_slice %278 {offsets = [0, 0], sizes = [1, 128], strides = [1, 1]} : vector<1x384xf32> to vector<1x128xf32>
    %280 = vector.broadcast %279 : vector<1x128xf32> to vector<32x128xf32>
    %281 = arith.addf %276, %280 : vector<32x128xf32>
    %c0_121 = arith.constant 0 : index
    %c0_122 = arith.constant 0 : index
    %282 = vector.load %arg10[%c0_121, %c0_122] : memref<32x128xf32, #tpu.memory_space<vmem>>, vector<32x128xf32>
    tpu.vector_store %arg10[%c0_121, %c0_122], %281 {strides = array<i32>} : memref<32x128xf32, #tpu.memory_space<vmem>>, vector<32x128xf32>,
    %283 = tpu.iota {dimensions = array<i32: 1>} : vector<32x128xi32>
    %c6_i32 = arith.constant 6 : i32
    %284 = vector.broadcast %c6_i32 : i32 to vector<32x128xi32>
    %285 = arith.cmpi slt, %283, %284 : vector<32x128xi32>
    %cst_123 = arith.constant -1.000000e+30 : f32
    %286 = vector.broadcast %cst_123 : f32 to vector<32x128xf32>
    %287 = arith.select %285, %281, %286 : vector<32x128xi1>, vector<32x128xf32>
    %cst_124 = arith.constant dense<0xFF800000> : vector<32xf32>
    %288 = vector.multi_reduction <maximumf>, %287, %cst_124 [1] : vector<32x128xf32> to vector<32xf32>
    %289 = vector.shape_cast %288 : vector<32xf32> to vector<32x1xf32>
    %290 = vector.broadcast %289 : vector<32x1xf32> to vector<32x128xf32>
    %291 = arith.subf %287, %290 : vector<32x128xf32>
    %292 = math.exp %291 : vector<32x128xf32>
    %cst_125 = arith.constant dense<0.000000e+00> : vector<32xf32>
    %293 = vector.multi_reduction <add>, %292, %cst_125 [1] : vector<32x128xf32> to vector<32xf32>
    %294 = vector.shape_cast %293 : vector<32xf32> to vector<32x1xf32>
    %295 = math.log %294 : vector<32x1xf32>
    %296 = arith.addf %295, %289 : vector<32x1xf32>
    %c0_126 = arith.constant 0 : index
    %c0_127 = arith.constant 0 : index
    %297 = vector.load %arg3[%c0_126, %c0_127] : memref<32x1xi32, #tpu.memory_space<vmem>>, vector<32x1xi32>
    %298 = vector.broadcast %297 : vector<32x1xi32> to vector<32x128xi32>
    %299 = arith.cmpi eq, %283, %298 : vector<32x128xi32>
    %cst_128 = arith.constant 0.000000e+00 : f32
    %300 = vector.broadcast %cst_128 : f32 to vector<32x128xf32>
    %301 = arith.select %299, %281, %300 : vector<32x128xi1>, vector<32x128xf32>
    %cst_129 = arith.constant dense<0.000000e+00> : vector<32xf32>
    %302 = vector.multi_reduction <add>, %301, %cst_129 [1] : vector<32x128xf32> to vector<32xf32>
    %303 = vector.shape_cast %302 : vector<32xf32> to vector<32x1xf32>
    %c0_i32 = arith.constant 0 : i32
    %304 = vector.broadcast %c0_i32 : i32 to vector<32x1xi32>
    %305 = arith.cmpi sge, %297, %304 : vector<32x1xi32>
    %306 = arith.extui %305 : vector<32x1xi1> to vector<32x1xi32>
    %307 = arith.sitofp %306 : vector<32x1xi32> to vector<32x1xf32>
    %308 = arith.subf %296, %303 : vector<32x1xf32>
    %309 = arith.mulf %308, %307 : vector<32x1xf32>
    %cst_130 = arith.constant dense<0.000000e+00> : vector<1xf32>
    %310 = vector.multi_reduction <add>, %309, %cst_130 [0] : vector<32x1xf32> to vector<1xf32>
    %311 = vector.shape_cast %310 : vector<1xf32> to vector<1x1xf32>
    %cst_131 = arith.constant dense<0.000000e+00> : vector<1xf32>
    %312 = vector.multi_reduction <add>, %307, %cst_131 [0] : vector<32x1xf32> to vector<1xf32>
    %313 = vector.shape_cast %312 : vector<1xf32> to vector<1x1xf32>
    %314 = arith.divf %311, %313 : vector<1x1xf32>
    %c0_132 = arith.constant 0 : index
    %c0_133 = arith.constant 0 : index
    %315 = vector.load %arg11[%c0_132, %c0_133] : memref<1x1xf32, #tpu.memory_space<vmem>>, vector<1x1xf32>
    tpu.vector_store %arg11[%c0_132, %c0_133], %314 {strides = array<i32>} : memref<1x1xf32, #tpu.memory_space<vmem>>, vector<1x1xf32>,
    return
  }
}

</mosaic_0001>

<llo_original>
// kernel: tile.9
$region0: #{tile.9}
  %s0 = inlined_call_operand.vmem [shape: f32[32,4,32], index: 0, kind: input, shape index: {}]
  %s1 = inlined_call_operand.vmem [shape: f32[32,128], index: 1, kind: output, shape index: {}]
  $region1: #{tile.9} parent=0
    #allocation0 [shape = 'u8[131072]{0}', space=vmem, size = 0x20000, scoped, tag = 'scoped mem for input reshape']
    %s3 = sshllo.u32 0, 4
    %s4 = smul.addr 4, 31
    %s5 = scalar_lea.vmem %s0, %s4
    %v6 = vld [vmem:[%s5] sm:%s3]
    %s7 = scalar_lea.vmem [#allocation0], 248
    %8 = vst [vmem:[%s7] sm:%s3] %v6
    %s9 = smul.addr 4, 30
    %s10 = scalar_lea.vmem %s0, %s9
    %v11 = vld [vmem:[%s10] sm:%s3]
    %s12 = scalar_lea.vmem [#allocation0], 240
    %13 = vst [vmem:[%s12] sm:%s3] %v11
    %s14 = smul.addr 4, 29
    %s15 = scalar_lea.vmem %s0, %s14
    %v16 = vld [vmem:[%s15] sm:%s3]
    %s17 = scalar_lea.vmem [#allocation0], 232
    %18 = vst [vmem:[%s17] sm:%s3] %v16
    %s19 = smul.addr 4, 28
    %s20 = scalar_lea.vmem %s0, %s19
    %v21 = vld [vmem:[%s20] sm:%s3]
    %s22 = scalar_lea.vmem [#allocation0], 224
    %23 = vst [vmem:[%s22] sm:%s3] %v21
    %s24 = smul.addr 4, 27
    %s25 = scalar_lea.vmem %s0, %s24
    %v26 = vld [vmem:[%s25] sm:%s3]
    %s27 = scalar_lea.vmem [#allocation0], 216
    %28 = vst [vmem:[%s27] sm:%s3] %v26
    %s29 = smul.addr 4, 26
    %s30 = scalar_lea.vmem %s0, %s29
    %v31 = vld [vmem:[%s30] sm:%s3]
    %s32 = scalar_lea.vmem [#allocation0], 208
    %33 = vst [vmem:[%s32] sm:%s3] %v31
    %s34 = smul.addr 4, 25
    %s35 = scalar_lea.vmem %s0, %s34
    %v36 = vld [vmem:[%s35] sm:%s3]
    %s37 = scalar_lea.vmem [#allocation0], 200
    %38 = vst [vmem:[%s37] sm:%s3] %v36
    %s39 = smul.addr 4, 24
    %s40 = scalar_lea.vmem %s0, %s39
    %v41 = vld [vmem:[%s40] sm:%s3]
    %s42 = scalar_lea.vmem [#allocation0], 192
    %43 = vst [vmem:[%s42] sm:%s3] %v41
    %s44 = smul.addr 4, 23
    %s45 = scalar_lea.vmem %s0, %s44
    %v46 = vld [vmem:[%s45] sm:%s3]
    %s47 = scalar_lea.vmem [#allocation0], 184
    %48 = vst [vmem:[%s47] sm:%s3] %v46
    %s49 = smul.addr 4, 22
    %s50 = scalar_lea.vmem %s0, %s49
    %v51 = vld [vmem:[%s50] sm:%s3]
    %s52 = scalar_lea.vmem [#allocation0], 176
    %53 = vst [vmem:[%s52] sm:%s3] %v51
    %s54 = smul.addr 4, 21
    %s55 = scalar_lea.vmem %s0, %s54
    %v56 = vld [vmem:[%s55] sm:%s3]
    %s57 = scalar_lea.vmem [#allocation0], 168
    %58 = vst [vmem:[%s57] sm:%s3] %v56
    %s59 = smul.addr 4, 20
    %s60 = scalar_lea.vmem %s0, %s59
    %v61 = vld [vmem:[%s60] sm:%s3]
    %s62 = scalar_lea.vmem [#allocation0], 160
    %63 = vst [vmem:[%s62] sm:%s3] %v61
    %s64 = smul.addr 4, 19
    %s65 = scalar_lea.vmem %s0, %s64
    %v66 = vld [vmem:[%s65] sm:%s3]
    %s67 = scalar_lea.vmem [#allocation0], 152
    %68 = vst [vmem:[%s67] sm:%s3] %v66
    %s69 = smul.addr 4, 18
    %s70 = scalar_lea.vmem %s0, %s69
    %v71 = vld [vmem:[%s70] sm:%s3]
    %s72 = scalar_lea.vmem [#allocation0], 144
    %73 = vst [vmem:[%s72] sm:%s3] %v71
    %s74 = smul.addr 4, 17
    %s75 = scalar_lea.vmem %s0, %s74
    %v76 = vld [vmem:[%s75] sm:%s3]
    %s77 = scalar_lea.vmem [#allocation0], 136
    %78 = vst [vmem:[%s77] sm:%s3] %v76
    %s79 = smul.addr 4, 16
    %s80 = scalar_lea.vmem %s0, %s79
    %v81 = vld [vmem:[%s80] sm:%s3]
    %s82 = scalar_lea.vmem [#allocation0], 128
    %83 = vst [vmem:[%s82] sm:%s3] %v81
    %s84 = smul.addr 4, 15
    %s85 = scalar_lea.vmem %s0, %s84
    %v86 = vld [vmem:[%s85] sm:%s3]
    %s87 = scalar_lea.vmem [#allocation0], 120
    %88 = vst [vmem:[%s87] sm:%s3] %v86
    %s89 = smul.addr 4, 14
    %s90 = scalar_lea.vmem %s0, %s89
    %v91 = vld [vmem:[%s90] sm:%s3]
    %s92 = scalar_lea.vmem [#allocation0], 112
    %93 = vst [vmem:[%s92] sm:%s3] %v91
    %s94 = smul.addr 4, 13
    %s95 = scalar_lea.vmem %s0, %s94
    %v96 = vld [vmem:[%s95] sm:%s3]
    %s97 = scalar_lea.vmem [#allocation0], 104
    %98 = vst [vmem:[%s97] sm:%s3] %v96
    %s99 = smul.addr 4, 12
    %s100 = scalar_lea.vmem %s0, %s99
    %v101 = vld [vmem:[%s100] sm:%s3]
    %s102 = scalar_lea.vmem [#allocation0], 96
    %103 = vst [vmem:[%s102] sm:%s3] %v101
    %s104 = smul.addr 4, 11
    %s105 = scalar_lea.vmem %s0, %s104
    %v106 = vld [vmem:[%s105] sm:%s3]
    %s107 = scalar_lea.vmem [#allocation0], 88
    %108 = vst [vmem:[%s107] sm:%s3] %v106
    %s109 = smul.addr 4, 10
    %s110 = scalar_lea.vmem %s0, %s109
    %v111 = vld [vmem:[%s110] sm:%s3]
    %s112 = scalar_lea.vmem [#allocation0], 80
    %113 = vst [vmem:[%s112] sm:%s3] %v111
    %s114 = smul.addr 4, 9
    %s115 = scalar_lea.vmem %s0, %s114
    %v116 = vld [vmem:[%s115] sm:%s3]
    %s117 = scalar_lea.vmem [#allocation0], 72
    %118 = vst [vmem:[%s117] sm:%s3] %v116
    %s119 = smul.addr 4, 8
    %s120 = scalar_lea.vmem %s0, %s119
    %v121 = vld [vmem:[%s120] sm:%s3]
    %s122 = scalar_lea.vmem [#allocation0], 64
    %123 = vst [vmem:[%s122] sm:%s3] %v121
    %s124 = smul.addr 4, 7
    %s125 = scalar_lea.vmem %s0, %s124
    %v126 = vld [vmem:[%s125] sm:%s3]
    %s127 = scalar_lea.vmem [#allocation0], 56
    %128 = vst [vmem:[%s127] sm:%s3] %v126
    %s129 = smul.addr 4, 6
    %s130 = scalar_lea.vmem %s0, %s129
    %v131 = vld [vmem:[%s130] sm:%s3]
    %s132 = scalar_lea.vmem [#allocation0], 48
    %133 = vst [vmem:[%s132] sm:%s3] %v131
    %s134 = smul.addr 4, 5
    %s135 = scalar_lea.vmem %s0, %s134
    %v136 = vld [vmem:[%s135] sm:%s3]
    %s137 = scalar_lea.vmem [#allocation0], 40
    %138 = vst [vmem:[%s137] sm:%s3] %v136
    %s139 = smul.addr 4, 4
    %s140 = scalar_lea.vmem %s0, %s139
    %v141 = vld [vmem:[%s140] sm:%s3]
    %s142 = scalar_lea.vmem [#allocation0], 32
    %143 = vst [vmem:[%s142] sm:%s3] %v141
    %s144 = smul.addr 4, 3
    %s145 = scalar_lea.vmem %s0, %s144
    %v146 = vld [vmem:[%s145] sm:%s3]
    %s147 = scalar_lea.vmem [#allocation0], 24
    %148 = vst [vmem:[%s147] sm:%s3] %v146
    %s149 = smul.addr 4, 2
    %s150 = scalar_lea.vmem %s0, %s149
    %v151 = vld [vmem:[%s150] sm:%s3]
    %s152 = scalar_lea.vmem [#allocation0], 16
    %153 = vst [vmem:[%s152] sm:%s3] %v151
    %s154 = scalar_lea.vmem %s0, 4
    %v155 = vld [vmem:[%s154] sm:%s3]
    %s156 = scalar_lea.vmem [#allocation0], 8
    %157 = vst [vmem:[%s156] sm:%s3] %v155
    %v158 = vld [vmem:[%s0] sm:%s3]
    %159 = vst [vmem:[#allocation0] sm:%s3] %v158
    %v160 = vld [vmem:[#allocation0] ss:$8 sm:$0xf]
    %v161 = vld [vmem:[#allocation0] ss:$8 sm:$0xf0]
    %vm162 = vcmask 1047556
    %v163 = vsel %vm162, %v161, %v160
    %vm164 = vcmask 261120
    %165 = vst.msk [vmem:[%s1] sm:$0xff] %vm164, %v163
    %s166 = scalar_lea.vmem [#allocation0], 64
    %v167 = vld [vmem:[%s166] ss:$8 sm:$0xf]
    %s168 = scalar_lea.vmem [#allocation0], 64
    %v169 = vld [vmem:[%s168] ss:$8 sm:$0xf0]
    %vm170 = vcmask 1047556
    %v171 = vsel %vm170, %v169, %v167
    %vm172 = vcmask 261120
    %s173 = scalar_lea.vmem %s1, 8
    %174 = vst.msk [vmem:[%s173] sm:$0xff] %vm172, %v171
    %s175 = scalar_lea.vmem [#allocation0], 128
    %v176 = vld [vmem:[%s175] ss:$8 sm:$0xf]
    %s177 = scalar_lea.vmem [#allocation0], 128
    %v178 = vld [vmem:[%s177] ss:$8 sm:$0xf0]
    %vm179 = vcmask 1047556
    %v180 = vsel %vm179, %v178, %v176
    %vm181 = vcmask 261120
    %s182 = scalar_lea.vmem %s1, 16
    %183 = vst.msk [vmem:[%s182] sm:$0xff] %vm181, %v180
    %s184 = scalar_lea.vmem [#allocation0], 192
    %v185 = vld [vmem:[%s184] ss:$8 sm:$0xf]
    %s186 = scalar_lea.vmem [#allocation0], 192
    %v187 = vld [vmem:[%s186] ss:$8 sm:$0xf0]
    %vm188 = vcmask 1047556
    %v189 = vsel %vm188, %v187, %v185
    %vm190 = vcmask 261120
    %s191 = scalar_lea.vmem %s1, 24
    %192 = vst.msk [vmem:[%s191] sm:$0xff] %vm190, %v189
    %s193 = scalar_lea.vmem [#allocation0], 3
    %v194 = vld [vmem:[%s193] ss:$8 sm:$0xf]
    %s195 = scalar_lea.vmem [#allocation0], 3
    %v196 = vld [vmem:[%s195] ss:$8 sm:$0xf0]
    %vm197 = vcmask 1047556
    %v198 = vsel %vm197, %v196, %v194
    %199 = vrot.lane.b32.xlu0 %v198, 96
    %v200 = vpop.permute.xlu0 %199
    %vm201 = vcmask 1048320
    %202 = vst.msk [vmem:[%s1] sm:$0xff] %vm201, %v200
    %s203 = scalar_lea.vmem [#allocation0], 67
    %v204 = vld [vmem:[%s203] ss:$8 sm:$0xf]
    %s205 = scalar_lea.vmem [#allocation0], 67
    %v206 = vld [vmem:[%s205] ss:$8 sm:$0xf0]
    %vm207 = vcmask 1047556
    %v208 = vsel %vm207, %v206, %v204
    %209 = vrot.lane.b32.xlu0 %v208, 96
    %v210 = vpop.permute.xlu0 %209
    %vm211 = vcmask 1048320
    %s212 = scalar_lea.vmem %s1, 8
    %213 = vst.msk [vmem:[%s212] sm:$0xff] %vm211, %v210
    %s214 = scalar_lea.vmem [#allocation0], 131
    %v215 = vld [vmem:[%s214] ss:$8 sm:$0xf]
    %s216 = scalar_lea.vmem [#allocation0], 131
    %v217 = vld [vmem:[%s216] ss:$8 sm:$0xf0]
    %vm218 = vcmask 1047556
    %v219 = vsel %vm218, %v217, %v215
    %220 = vrot.lane.b32.xlu0 %v219, 96
    %v221 = vpop.permute.xlu0 %220
    %vm222 = vcmask 1048320
    %s223 = scalar_lea.vmem %s1, 16
    %224 = vst.msk [vmem:[%s223] sm:$0xff] %vm222, %v221
    %s225 = scalar_lea.vmem [#allocation0], 195
    %v226 = vld [vmem:[%s225] ss:$8 sm:$0xf]
    %s227 = scalar_lea.vmem [#allocation0], 195
    %v228 = vld [vmem:[%s227] ss:$8 sm:$0xf0]
    %vm229 = vcmask 1047556
    %v230 = vsel %vm229, %v228, %v226
    %231 = vrot.lane.b32.xlu0 %v230, 96
    %v232 = vpop.permute.xlu0 %231
    %vm233 = vcmask 1048320
    %s234 = scalar_lea.vmem %s1, 24
    %235 = vst.msk [vmem:[%s234] sm:$0xff] %vm233, %v232
    %s236 = scalar_lea.vmem [#allocation0], 2
    %v237 = vld [vmem:[%s236] ss:$8 sm:$0xf]
    %s238 = scalar_lea.vmem [#allocation0], 2
    %v239 = vld [vmem:[%s238] ss:$8 sm:$0xf0]
    %vm240 = vcmask 1047556
    %v241 = vsel %vm240, %v239, %v237
    %242 = vrot.lane.b32.xlu0 %v241, 64
    %v243 = vpop.permute.xlu0 %242
    %vm244 = vcmask 785920
    %245 = vst.msk [vmem:[%s1] sm:$0xff] %vm244, %v243
    %s246 = scalar_lea.vmem [#allocation0], 66
    %v247 = vld [vmem:[%s246] ss:$8 sm:$0xf]
    %s248 = scalar_lea.vmem [#allocation0], 66
    %v249 = vld [vmem:[%s248] ss:$8 sm:$0xf0]
    %vm250 = vcmask 1047556
    %v251 = vsel %vm250, %v249, %v247
    %252 = vrot.lane.b32.xlu0 %v251, 64
    %v253 = vpop.permute.xlu0 %252
    %vm254 = vcmask 785920
    %s255 = scalar_lea.vmem %s1, 8
    %256 = vst.msk [vmem:[%s255] sm:$0xff] %vm254, %v253
    %s257 = scalar_lea.vmem [#allocation0], 130
    %v258 = vld [vmem:[%s257] ss:$8 sm:$0xf]
    %s259 = scalar_lea.vmem [#allocation0], 130
    %v260 = vld [vmem:[%s259] ss:$8 sm:$0xf0]
    %vm261 = vcmask 1047556
    %v262 = vsel %vm261, %v260, %v258
    %263 = vrot.lane.b32.xlu0 %v262, 64
    %v264 = vpop.permute.xlu0 %263
    %vm265 = vcmask 785920
    %s266 = scalar_lea.vmem %s1, 16
    %267 = vst.msk [vmem:[%s266] sm:$0xff] %vm265, %v264
    %s268 = scalar_lea.vmem [#allocation0], 194
    %v269 = vld [vmem:[%s268] ss:$8 sm:$0xf]
    %s270 = scalar_lea.vmem [#allocation0], 194
    %v271 = vld [vmem:[%s270] ss:$8 sm:$0xf0]
    %vm272 = vcmask 1047556
    %v273 = vsel %vm272, %v271, %v269
    %274 = vrot.lane.b32.xlu0 %v273, 64
    %v275 = vpop.permute.xlu0 %274
    %vm276 = vcmask 785920
    %s277 = scalar_lea.vmem %s1, 24
    %278 = vst.msk [vmem:[%s277] sm:$0xff] %vm276, %v275
    %s279 = scalar_lea.vmem [#allocation0], 1
    %v280 = vld [vmem:[%s279] ss:$8 sm:$0xf]
    %s281 = scalar_lea.vmem [#allocation0], 1
    %v282 = vld [vmem:[%s281] ss:$8 sm:$0xf0]
    %vm283 = vcmask 1047556
    %v284 = vsel %vm283, %v282, %v280
    %285 = vrot.lane.b32.xlu0 %v284, 32
    %v286 = vpop.permute.xlu0 %285
    %vm287 = vcmask 523520
    %288 = vst.msk [vmem:[%s1] sm:$0xff] %vm287, %v286
    %s289 = scalar_lea.vmem [#allocation0], 65
    %v290 = vld [vmem:[%s289] ss:$8 sm:$0xf]
    %s291 = scalar_lea.vmem [#allocation0], 65
    %v292 = vld [vmem:[%s291] ss:$8 sm:$0xf0]
    %vm293 = vcmask 1047556
    %v294 = vsel %vm293, %v292, %v290
    %295 = vrot.lane.b32.xlu0 %v294, 32
    %v296 = vpop.permute.xlu0 %295
    %vm297 = vcmask 523520
    %s298 = scalar_lea.vmem %s1, 8
    %299 = vst.msk [vmem:[%s298] sm:$0xff] %vm297, %v296
    %s300 = scalar_lea.vmem [#allocation0], 129
    %v301 = vld [vmem:[%s300] ss:$8 sm:$0xf]
    %s302 = scalar_lea.vmem [#allocation0], 129
    %v303 = vld [vmem:[%s302] ss:$8 sm:$0xf0]
    %vm304 = vcmask 1047556
    %v305 = vsel %vm304, %v303, %v301
    %306 = vrot.lane.b32.xlu0 %v305, 32
    %v307 = vpop.permute.xlu0 %306
    %vm308 = vcmask 523520
    %s309 = scalar_lea.vmem %s1, 16
    %310 = vst.msk [vmem:[%s309] sm:$0xff] %vm308, %v307
    %s311 = scalar_lea.vmem [#allocation0], 193
    %v312 = vld [vmem:[%s311] ss:$8 sm:$0xf]
    %s313 = scalar_lea.vmem [#allocation0], 193
    %v314 = vld [vmem:[%s313] ss:$8 sm:$0xf0]
    %vm315 = vcmask 1047556
    %v316 = vsel %vm315, %v314, %v312
    %317 = vrot.lane.b32.xlu0 %v316, 32
    %v318 = vpop.permute.xlu0 %317
    %vm319 = vcmask 523520
    %s320 = scalar_lea.vmem %s1, 24
    %321 = vst.msk [vmem:[%s320] sm:$0xff] %vm319, %v318

// kernel: roberta_token_classifier_forward.1
$region0: #{roberta_token_classifier_forward.1}
  #allocation0 [shape = 'u32[]', space=smem, size = 0x4, offset = 0x4, fixed_abs, tag = 'smem constant byte address 0x4 - core index']
  #allocation1 [shape = 'u32[144,128]{1,0:T(1,128)}', space=vmem, size = 0x12000, scoped, tag = 'internal scratch']
  %s0 = inlined_call_operand.vmem [shape: f32[32,128], index: 0, kind: input, shape index: {}]
  %s1 = inlined_call_operand.vmem [shape: f32[32,128], index: 1, kind: input, shape index: {}]
  %s2 = inlined_call_operand.vmem [shape: f32[128,128], index: 2, kind: input, shape index: {}]
  %s3 = inlined_call_operand.vmem [shape: s32[32,1], index: 3, kind: input, shape index: {}]
  %s4 = inlined_call_operand.vmem [shape: f32[19,1,384], index: 4, kind: input, shape index: {}]
  %s5 = inlined_call_operand.vmem [shape: f32[2,128,384], index: 5, kind: input, shape index: {}]
  %s6 = inlined_call_operand.vmem [shape: f32[2,128,128], index: 6, kind: input, shape index: {}]
  %s7 = inlined_call_operand.vmem [shape: f32[2,128,256], index: 7, kind: input, shape index: {}]
  %s8 = inlined_call_operand.vmem [shape: f32[2,256,128], index: 8, kind: input, shape index: {}]
  %s9 = inlined_call_operand.vmem [shape: f32[128,128], index: 9, kind: input, shape index: {}]
  %s10 = inlined_call_operand.vmem [shape: f32[32,128], index: 10, kind: output, shape index: {0}]
  %s11 = inlined_call_operand.hbm [shape: f32[1,1], index: 11, kind: output, shape index: {1}]
  %12 = xla_tuple %s10, %s11
  %s13 = sld [smem:[#allocation0]]
  $region58: #{roberta_token_classifier_forward.1} parent=0
    _
  %s15 = ssub.s32 1, %s13
  %s16 = scalar_select 0, %s15, %s13
  $region1: #{roberta_token_classifier_forward.1} parent=0
    #allocation2 [shape = 'u8[512]{0}', space=vmem, size = 0x400, scoped, tag = 'output window, operand 1, single buffered']
    #allocation3 [shape = 's32[1]{0}', space=sflag, size = 0x4, scoped, tag = 'scoped memory for roberta_token_classifier_forward.1']
    %17 = vsyncpa [#allocation3], 0
    // Predicated region
    $region2: #{roberta_token_classifier_forward.1} parent=1 // pred_check
      _
    $region3: #{roberta_token_classifier_forward.1} parent=1 // pred_check_branch
      %19 = sbr.rel (0) target = $region5
    $region4: #{roberta_token_classifier_forward.1} parent=1 // pred_region
      _
    $region5: #{roberta_token_classifier_forward.1} parent=1 // pred_fallthru
      _
    // Predicated region
    $region6: #{roberta_token_classifier_forward.1} parent=1 // pred_check
      _
    $region7: #{roberta_token_classifier_forward.1} parent=1 // pred_check_branch
      %21 = sbr.rel (0) target = $region9
    $region8: #{roberta_token_classifier_forward.1} parent=1 // pred_region
      _
    $region9: #{roberta_token_classifier_forward.1} parent=1 // pred_fallthru
      _
    // Predicated region
    $region10: #{roberta_token_classifier_forward.1} parent=1 // pred_check
      _
    $region11: #{roberta_token_classifier_forward.1} parent=1 // pred_check_branch
      %23 = sbr.rel (0) target = $region13
    $region12: #{roberta_token_classifier_forward.1} parent=1 // pred_region
      _
    $region13: #{roberta_token_classifier_forward.1} parent=1 // pred_fallthru
      _
    // Predicated region
    $region14: #{roberta_token_classifier_forward.1} parent=1 // pred_check
      _
    $region15: #{roberta_token_classifier_forward.1} parent=1 // pred_check_branch
      %25 = sbr.rel (0) target = $region17
    $region16: #{roberta_token_classifier_forward.1} parent=1 // pred_region
      _
    $region17: #{roberta_token_classifier_forward.1} parent=1 // pred_fallthru
      _
    // Predicated region
    $region18: #{roberta_token_classifier_forward.1} parent=1 // pred_check
      _
    $region19: #{roberta_token_classifier_forward.1} parent=1 // pred_check_branch
      %27 = sbr.rel (0) target = $region21
    $region20: #{roberta_token_classifier_forward.1} parent=1 // pred_region
      _
    $region21: #{roberta_token_classifier_forward.1} parent=1 // pred_fallthru
      _
    // Predicated region
    $region22: #{roberta_token_classifier_forward.1} parent=1 // pred_check
      _
    $region23: #{roberta_token_classifier_forward.1} parent=1 // pred_check_branch
      %29 = sbr.rel (0) target = $region25
    $region24: #{roberta_token_classifier_forward.1} parent=1 // pred_region
      _
    $region25: #{roberta_token_classifier_forward.1} parent=1 // pred_fallthru
      _
    // Predicated region
    $region26: #{roberta_token_classifier_forward.1} parent=1 // pred_check
      _
    $region27: #{roberta_token_classifier_forward.1} parent=1 // pred_check_branch
      %31 = sbr.rel (0) target = $region29
    $region28: #{roberta_token_classifier_forward.1} parent=1 // pred_region
      _
    $region29: #{roberta_token_classifier_forward.1} parent=1 // pred_fallthru
      _
    // Predicated region
    $region30: #{roberta_token_classifier_forward.1} parent=1 // pred_check
      _
    $region31: #{roberta_token_classifier_forward.1} parent=1 // pred_check_branch
      %33 = sbr.rel (0) target = $region33
    $region32: #{roberta_token_classifier_forward.1} parent=1 // pred_region
      _
    $region33: #{roberta_token_classifier_forward.1} parent=1 // pred_fallthru
      _
    // Predicated region
    $region34: #{roberta_token_classifier_forward.1} parent=1 // pred_check
      _
    $region35: #{roberta_token_classifier_forward.1} parent=1 // pred_check_branch
      %35 = sbr.rel (0) target = $region37
    $region36: #{roberta_token_classifier_forward.1} parent=1 // pred_region
      _
    $region37: #{roberta_token_classifier_forward.1} parent=1 // pred_fallthru
      _
    // Predicated region
    $region38: #{roberta_token_classifier_forward.1} parent=1 // pred_check
      _
    $region39: #{roberta_token_classifier_forward.1} parent=1 // pred_check_branch
      %37 = sbr.rel (0) target = $region41
    $region40: #{roberta_token_classifier_forward.1} parent=1 // pred_region
      _
    $region41: #{roberta_token_classifier_forward.1} parent=1 // pred_fallthru
      _
    %v38 = vld [vmem:[%s0] sm:$0xff]
    %v39 = vld [vmem:[%s0 + $0x8] sm:$0xff]
    %v40 = vld [vmem:[%s0 + $0x10] sm:$0xff]
    %v41 = vld [vmem:[%s0 + $0x18] sm:$0xff]
    %v42 = vld [vmem:[%s4] sm:$0x7]
    %s43 = scalar_lea.vmem %s4, 3
    %v44 = vld [vmem:[%s43] sm:$0x7]
    %45 = vadd.xlane.f32.xlu0 %v38
    %v46 = vpop.xlane.xlu0 %45
    %47 = vadd.xlane.f32.xlu0 %v39
    %v48 = vpop.xlane.xlu0 %47
    %49 = vadd.xlane.f32.xlu0 %v40
    %v50 = vpop.xlane.xlu0 %49
    %51 = vadd.xlane.f32.xlu0 %v41
    %v52 = vpop.xlane.xlu0 %51
    %v53 = vrcp.pop 128.0
    %v54 = vmul.f32 %v46, %v53
    %v55 = vmul.f32 %v48, %v53
    %v56 = vmul.f32 %v50, %v53
    %v57 = vmul.f32 %v52, %v53
    %v58 = vsub.f32 %v38, %v54
    %v59 = vsub.f32 %v39, %v55
    %v60 = vsub.f32 %v40, %v56
    %v61 = vsub.f32 %v41, %v57
    %v62 = vmul.f32 %v58, %v58
    %v63 = vmul.f32 %v59, %v59
    %v64 = vmul.f32 %v60, %v60
    %v65 = vmul.f32 %v61, %v61
    %66 = vadd.xlane.f32.xlu0 %v62
    %v67 = vpop.xlane.xlu0 %66
    %68 = vadd.xlane.f32.xlu0 %v63
    %v69 = vpop.xlane.xlu0 %68
    %70 = vadd.xlane.f32.xlu0 %v64
    %v71 = vpop.xlane.xlu0 %70
    %72 = vadd.xlane.f32.xlu0 %v65
    %v73 = vpop.xlane.xlu0 %72
    %v74 = vmul.f32 %v67, %v53
    %v75 = vmul.f32 %v69, %v53
    %v76 = vmul.f32 %v71, %v53
    %v77 = vmul.f32 %v73, %v53
    %v78 = vadd.f32 %v74, 1e-05
    %v79 = vadd.f32 %v75, 1e-05
    %v80 = vadd.f32 %v76, 1e-05
    %v81 = vadd.f32 %v77, 1e-05
    %v82 = vrsqrt.pop %v78
    %v83 = vrsqrt.pop %v79
    %v84 = vrsqrt.pop %v80
    %v85 = vrsqrt.pop %v81
    %v86 = vmul.f32 %v58, %v82
    %v87 = vmul.f32 %v59, %v83
    %v88 = vmul.f32 %v60, %v84
    %v89 = vmul.f32 %v61, %v85
    %v91 = vlaneseq
    %v92 = vshrl.u32 %v91, 7
    %v93 = vsub.s32 0, %v92
    %v94 = vrot.slane %v42, %v93
    %v96 = vmul.f32 %v86, %v94
    %v97 = vmul.f32 %v87, %v94
    %v98 = vmul.f32 %v88, %v94
    %v99 = vmul.f32 %v89, %v94
    %v101 = vlaneseq
    %v102 = vshrl.u32 %v101, 7
    %v103 = vsub.s32 0, %v102
    %v104 = vrot.slane %v44, %v103
    %v106 = vadd.f32 %v96, %v104
    %v107 = vadd.f32 %v97, %v104
    %v108 = vadd.f32 %v98, %v104
    %v109 = vadd.f32 %v99, %v104
    %v110 = vld [vmem:[%s1] sm:$0xff]
    %v111 = vld [vmem:[%s1 + $0x8] sm:$0xff]
    %v112 = vld [vmem:[%s1 + $0x10] sm:$0xff]
    %v113 = vld [vmem:[%s1 + $0x18] sm:$0xff]
    %v114 = vld [vmem:[%s2] sm:$0xff]
    %v115 = vld [vmem:[%s2 + $0x8] sm:$0xff]
    %v116 = vld [vmem:[%s2 + $0x10] sm:$0xff]
    %v117 = vld [vmem:[%s2 + $0x18] sm:$0xff]
    %v118 = vld [vmem:[%s2 + $0x20] sm:$0xff]
    %v119 = vld [vmem:[%s2 + $0x28] sm:$0xff]
    %v120 = vld [vmem:[%s2 + $0x30] sm:$0xff]
    %v121 = vld [vmem:[%s2 + $0x38] sm:$0xff]
    %v122 = vld [vmem:[%s2 + $0x40] sm:$0xff]
    %v123 = vld [vmem:[%s2 + $0x48] sm:$0xff]
    %v124 = vld [vmem:[%s2 + $0x50] sm:$0xff]
    %v125 = vld [vmem:[%s2 + $0x58] sm:$0xff]
    %v126 = vld [vmem:[%s2 + $0x60] sm:$0xff]
    %v127 = vld [vmem:[%s2 + $0x68] sm:$0xff]
    %v128 = vld [vmem:[%s2 + $0x70] sm:$0xff]
    %v129 = vld [vmem:[%s2 + $0x78] sm:$0xff]
    %v130 = vld [vmem:[%s5] sm:$0xff]
    %v131 = vld [vmem:[%s5 + $0x8] sm:$0xff]
    %v132 = vld [vmem:[%s5 + $0x10] sm:$0xff]
    %v133 = vld [vmem:[%s5 + $0x18] sm:$0xff]
    %v134 = vld [vmem:[%s5 + $0x20] sm:$0xff]
    %v135 = vld [vmem:[%s5 + $0x28] sm:$0xff]
    %v136 = vld [vmem:[%s5 + $0x30] sm:$0xff]
    %v137 = vld [vmem:[%s5 + $0x38] sm:$0xff]
    %v138 = vld [vmem:[%s5 + $0x40] sm:$0xff]
    %v139 = vld [vmem:[%s5 + $0x48] sm:$0xff]
    %v140 = vld [vmem:[%s5 + $0x50] sm:$0xff]
    %v141 = vld [vmem:[%s5 + $0x58] sm:$0xff]
    %v142 = vld [vmem:[%s5 + $0x60] sm:$0xff]
    %v143 = vld [vmem:[%s5 + $0x68] sm:$0xff]
    %v144 = vld [vmem:[%s5 + $0x70] sm:$0xff]
    %v145 = vld [vmem:[%s5 + $0x78] sm:$0xff]
    %v146 = vld [vmem:[%s5 + $0x80] sm:$0xff]
    %v147 = vld [vmem:[%s5 + $0x88] sm:$0xff]
    %v148 = vld [vmem:[%s5 + $0x90] sm:$0xff]
    %v149 = vld [vmem:[%s5 + $0x98] sm:$0xff]
    %v150 = vld [vmem:[%s5 + $0xa0] sm:$0xff]
    %v151 = vld [vmem:[%s5 + $0xa8] sm:$0xff]
    %v152 = vld [vmem:[%s5 + $0xb0] sm:$0xff]
    %v153 = vld [vmem:[%s5 + $0xb8] sm:$0xff]
    %v154 = vld [vmem:[%s5 + $0xc0] sm:$0xff]
    %v155 = vld [vmem:[%s5 + $0xc8] sm:$0xff]
    %v156 = vld [vmem:[%s5 + $0xd0] sm:$0xff]
    %v157 = vld [vmem:[%s5 + $0xd8] sm:$0xff]
    %v158 = vld [vmem:[%s5 + $0xe0] sm:$0xff]
    %v159 = vld [vmem:[%s5 + $0xe8] sm:$0xff]
    %v160 = vld [vmem:[%s5 + $0xf0] sm:$0xff]
    %v161 = vld [vmem:[%s5 + $0xf8] sm:$0xff]
    %v162 = vld [vmem:[%s5 + $0x100] sm:$0xff]
    %v163 = vld [vmem:[%s5 + $0x108] sm:$0xff]
    %v164 = vld [vmem:[%s5 + $0x110] sm:$0xff]
    %v165 = vld [vmem:[%s5 + $0x118] sm:$0xff]
    %v166 = vld [vmem:[%s5 + $0x120] sm:$0xff]
    %v167 = vld [vmem:[%s5 + $0x128] sm:$0xff]
    %v168 = vld [vmem:[%s5 + $0x130] sm:$0xff]
    %v169 = vld [vmem:[%s5 + $0x138] sm:$0xff]
    %v170 = vld [vmem:[%s5 + $0x140] sm:$0xff]
    %v171 = vld [vmem:[%s5 + $0x148] sm:$0xff]
    %v172 = vld [vmem:[%s5 + $0x150] sm:$0xff]
    %v173 = vld [vmem:[%s5 + $0x158] sm:$0xff]
    %v174 = vld [vmem:[%s5 + $0x160] sm:$0xff]
    %v175 = vld [vmem:[%s5 + $0x168] sm:$0xff]
    %v176 = vld [vmem:[%s5 + $0x170] sm:$0xff]
    %v177 = vld [vmem:[%s5 + $0x178] sm:$0xff]
    %s178 = scalar_lea.vmem %s4, 6
    %v179 = vld [vmem:[%s178] sm:$0x7]
    %v181 = vlaneseq
    %v182 = vshrl.u32 %v181, 7
    %v183 = vsub.s32 0, %v182
    %v184 = vrot.slane %v179, %v183
    %v185 = vlaneseq
    %v186 = vshrl.u32 %v185, 7
    %v187 = vsub.s32 1, %v186
    %v188 = vrot.slane %v179, %v187
    %v189 = vlaneseq
    %v190 = vshrl.u32 %v189, 7
    %v191 = vsub.s32 2, %v190
    %v192 = vrot.slane %v179, %v191
    %196 = vmatprep.subr.mxu0 %v131
    %197 = vmatpush1.msra.mxu0 %v130
    %198 = vmatprep.subr.mxu0 %v134
    %199 = vmatpush1.msra.mxu0 %v133
    %200 = vmatprep.subr.mxu0 %v137
    %201 = vmatpush1.msra.mxu0 %v136
    %202 = vmatprep.subr.mxu0 %v140
    %203 = vmatpush1.msra.mxu0 %v139
    %204 = vmatprep.subr.mxu0 %v143
    %205 = vmatpush1.msra.mxu0 %v142
    %206 = vmatprep.subr.mxu0 %v146
    %207 = vmatpush1.msra.mxu0 %v145
    %208 = vmatprep.subr.mxu0 %v149
    %209 = vmatpush1.msra.mxu0 %v148
    %210 = vmatprep.subr.mxu0 %v152
    %211 = vmatpush1.msra.mxu0 %v151
    %212 = vmatprep.subr.mxu0 %v155
    %213 = vmatpush1.msra.mxu0 %v154
    %214 = vmatprep.subr.mxu0 %v158
    %215 = vmatpush1.msra.mxu0 %v157
    %216 = vmatprep.subr.mxu0 %v161
    %217 = vmatpush1.msra.mxu0 %v160
    %218 = vmatprep.subr.mxu0 %v164
    %219 = vmatpush1.msra.mxu0 %v163
    %220 = vmatprep.subr.mxu0 %v167
    %221 = vmatpush1.msra.mxu0 %v166
    %222 = vmatprep.subr.mxu0 %v170
    %223 = vmatpush1.msra.mxu0 %v169
    %224 = vmatprep.subr.mxu0 %v173
    %225 = vmatpush1.msra.mxu0 %v172
    %226 = vmatprep.subr.mxu0 %v176
    %227 = vmatpush1.msra.mxu0 %v175
    %228 = vmatprep.subr.mxu0 0.0
    %229 = vmatpush1.msra.mxu0 0.0
    %230 = vmatprep.subr.mxu0 0.0
    %231 = vmatpush1.msra.mxu0 0.0
    %232 = vmatprep.subr.mxu0 0.0
    %233 = vmatpush1.msra.mxu0 0.0
    %234 = vmatprep.subr.mxu0 0.0
    %235 = vmatpush1.msra.mxu0 0.0
    %236 = vmatprep.subr.mxu0 0.0
    %237 = vmatpush1.msra.mxu0 0.0
    %238 = vmatprep.subr.mxu0 0.0
    %239 = vmatpush1.msra.mxu0 0.0
    %240 = vmatprep.subr.mxu0 0.0
    %241 = vmatpush1.msra.mxu0 0.0
    %242 = vmatprep.subr.mxu0 0.0
    %243 = vmatpush1.msra.mxu0 0.0
    %244 = vmatprep.subr.mxu0 0.0
    %245 = vmatpush1.msra.mxu0 0.0
    %246 = vmatprep.subr.mxu0 0.0
    %247 = vmatpush1.msra.mxu0 0.0
    %248 = vmatprep.subr.mxu0 0.0
    %249 = vmatpush1.msra.mxu0 0.0
    %250 = vmatprep.subr.mxu0 0.0
    %251 = vmatpush1.msra.mxu0 0.0
    %252 = vmatprep.subr.mxu0 0.0
    %253 = vmatpush1.msra.mxu0 0.0
    %254 = vmatprep.subr.mxu0 0.0
    %255 = vmatpush1.msra.mxu0 0.0
    %256 = vmatprep.subr.mxu0 0.0
    %257 = vmatpush1.msra.mxu0 0.0
    %258 = vmatprep.subr.mxu0 0.0
    %259 = vmatpush1.msra.mxu0 0.0
    %260 = vmatprep.mubr.f32.mxu0 0.0
    %261 = vmatmul.mubr.f32.gmra.mrb[0].mxu0 %v106
    %v262 = vpop.f32.mrb[0].mxu0
    %v263 = vadd.f32 %v184, %v262
    %v264 = vpop.f32.mrb[0].mxu0
    %v265 = vadd.f32 %v188, %v264
    %266 = vmatprep.mubr.f32.mxu0 0.0
    %267 = vmatmul.mubr.f32.gmra.mrb[0].mxu0 %v107
    %v268 = vpop.f32.mrb[0].mxu0
    %v269 = vadd.f32 %v184, %v268
    %v270 = vpop.f32.mrb[0].mxu0
    %v271 = vadd.f32 %v188, %v270
    %272 = vmatprep.mubr.f32.mxu0 0.0
    %273 = vmatmul.mubr.f32.gmra.mrb[0].mxu0 %v108
    %v274 = vpop.f32.mrb[0].mxu0
    %v275 = vadd.f32 %v184, %v274
    %v276 = vpop.f32.mrb[0].mxu0
    %v277 = vadd.f32 %v188, %v276
    %278 = vmatprep.mubr.f32.mxu0 0.0
    %279 = vmatmul.mubr.f32.gmra.mrb[0].mxu0 %v109
    %v280 = vpop.f32.mrb[0].mxu0
    %v281 = vadd.f32 %v184, %v280
    %v282 = vpop.f32.mrb[0].mxu0
    %v283 = vadd.f32 %v188, %v282
    %284 = vdwg.mxu0
    %285 = vmatprep.subr.mxu0 0.0
    %286 = vmatpush1.msra.mxu0 %v132
    %287 = vmatprep.subr.mxu0 0.0
    %288 = vmatpush1.msra.mxu0 %v135
    %289 = vmatprep.subr.mxu0 0.0
    %290 = vmatpush1.msra.mxu0 %v138
    %291 = vmatprep.subr.mxu0 0.0
    %292 = vmatpush1.msra.mxu0 %v141
    %293 = vmatprep.subr.mxu0 0.0
    %294 = vmatpush1.msra.mxu0 %v144
    %295 = vmatprep.subr.mxu0 0.0
    %296 = vmatpush1.msra.mxu0 %v147
    %297 = vmatprep.subr.mxu0 0.0
    %298 = vmatpush1.msra.mxu0 %v150
    %299 = vmatprep.subr.mxu0 0.0
    %300 = vmatpush1.msra.mxu0 %v153
    %301 = vmatprep.subr.mxu0 0.0
    %302 = vmatpush1.msra.mxu0 %v156
    %303 = vmatprep.subr.mxu0 0.0
    %304 = vmatpush1.msra.mxu0 %v159
    %305 = vmatprep.subr.mxu0 0.0
    %306 = vmatpush1.msra.mxu0 %v162
    %307 = vmatprep.subr.mxu0 0.0
    %308 = vmatpush1.msra.mxu0 %v165
    %309 = vmatprep.subr.mxu0 0.0
    %310 = vmatpush1.msra.mxu0 %v168
    %311 = vmatprep.subr.mxu0 0.0
    %312 = vmatpush1.msra.mxu0 %v171
    %313 = vmatprep.subr.mxu0 0.0
    %314 = vmatpush1.msra.mxu0 %v174
    %315 = vmatprep.subr.mxu0 0.0
    %316 = vmatpush1.msra.mxu0 %v177
    %317 = vmatprep.subr.mxu0 0.0
    %318 = vmatpush1.msra.mxu0 0.0
    %319 = vmatprep.subr.mxu0 0.0
    %320 = vmatpush1.msra.mxu0 0.0
    %321 = vmatprep.subr.mxu0 0.0
    %322 = vmatpush1.msra.mxu0 0.0
    %323 = vmatprep.subr.mxu0 0.0
    %324 = vmatpush1.msra.mxu0 0.0
    %325 = vmatprep.subr.mxu0 0.0
    %326 = vmatpush1.msra.mxu0 0.0
    %327 = vmatprep.subr.mxu0 0.0
    %328 = vmatpush1.msra.mxu0 0.0
    %329 = vmatprep.subr.mxu0 0.0
    %330 = vmatpush1.msra.mxu0 0.0
    %331 = vmatprep.subr.mxu0 0.0
    %332 = vmatpush1.msra.mxu0 0.0
    %333 = vmatprep.subr.mxu0 0.0
    %334 = vmatpush1.msra.mxu0 0.0
    %335 = vmatprep.subr.mxu0 0.0
    %336 = vmatpush1.msra.mxu0 0.0
    %337 = vmatprep.subr.mxu0 0.0
    %338 = vmatpush1.msra.mxu0 0.0
    %339 = vmatprep.subr.mxu0 0.0
    %340 = vmatpush1.msra.mxu0 0.0
    %341 = vmatprep.subr.mxu0 0.0
    %342 = vmatpush1.msra.mxu0 0.0
    %343 = vmatprep.subr.mxu0 0.0
    %344 = vmatpush1.msra.mxu0 0.0
    %345 = vmatprep.subr.mxu0 0.0
    %346 = vmatpush1.msra.mxu0 0.0
    %347 = vmatprep.subr.mxu0 0.0
    %348 = vmatpush1.msra.mxu0 0.0
    %349 = vmatprep.mubr.f32.mxu0 0.0
    %350 = vmatmul.mubr.f32.gmra.mrb[0].mxu0 %v106
    %v351 = vpop.f32.mrb[0].mxu0
    %v352 = vadd.f32 %v192, %v351
    %v353 = vpop.f32.mrb[0].mxu0
    %354 = vmatprep.mubr.f32.mxu0 0.0
    %355 = vmatmul.mubr.f32.gmra.mrb[0].mxu0 %v107
    %v356 = vpop.f32.mrb[0].mxu0
    %v357 = vadd.f32 %v192, %v356
    %v358 = vpop.f32.mrb[0].mxu0
    %359 = vmatprep.mubr.f32.mxu0 0.0
    %360 = vmatmul.mubr.f32.gmra.mrb[0].mxu0 %v108
    %v361 = vpop.f32.mrb[0].mxu0
    %v362 = vadd.f32 %v192, %v361
    %v363 = vpop.f32.mrb[0].mxu0
    %364 = vmatprep.mubr.f32.mxu0 0.0
    %365 = vmatmul.mubr.f32.gmra.mrb[0].mxu0 %v109
    %v366 = vpop.f32.mrb[0].mxu0
    %v367 = vadd.f32 %v192, %v366
    %v368 = vpop.f32.mrb[0].mxu0
    %369 = vdwg.mxu0
    %v370 = vmul.f32 %v265, %v114
    %v371 = vmul.f32 %v271, %v115
    %v372 = vmul.f32 %v277, %v116
    %v373 = vmul.f32 %v283, %v117
    %v374 = vmul.f32 %v265, %v118
    %v375 = vmul.f32 %v271, %v119
    %v376 = vmul.f32 %v277, %v120
    %v377 = vmul.f32 %v283, %v121
    %v378 = vmul.f32 %v265, %v122
    %v379 = vmul.f32 %v271, %v123
    %v380 = vmul.f32 %v277, %v124
    %v381 = vmul.f32 %v283, %v125
    %v382 = vmul.f32 %v265, %v126
    %v383 = vmul.f32 %v271, %v127
    %v384 = vmul.f32 %v277, %v128
    %v385 = vmul.f32 %v283, %v129
    %v386 = vmul.f32 %v352, %v114
    %v387 = vmul.f32 %v357, %v115
    %v388 = vmul.f32 %v362, %v116
    %v389 = vmul.f32 %v367, %v117
    %v390 = vmul.f32 %v352, %v118
    %v391 = vmul.f32 %v357, %v119
    %v392 = vmul.f32 %v362, %v120
    %v393 = vmul.f32 %v367, %v121
    %v394 = vmul.f32 %v352, %v122
    %v395 = vmul.f32 %v357, %v123
    %v396 = vmul.f32 %v362, %v124
    %v397 = vmul.f32 %v367, %v125
    %v398 = vmul.f32 %v352, %v126
    %v399 = vmul.f32 %v357, %v127
    %v400 = vmul.f32 %v362, %v128
    %v401 = vmul.f32 %v367, %v129
    %402 = vmatprep.subr.mxu0 0.0
    %403 = vmatpush1.xpose.msra.mxu0 %v370
    %404 = vmatprep.subr.mxu0 0.0
    %405 = vmatpush1.xpose.msra.mxu0 %v371
    %406 = vmatprep.subr.mxu0 0.0
    %407 = vmatpush1.xpose.msra.mxu0 %v372
    %408 = vmatprep.subr.mxu0 0.0
    %409 = vmatpush1.xpose.msra.mxu0 %v373
    %410 = vmatprep.subr.mxu0 0.0
    %411 = vmatpush1.xpose.msra.mxu0 %v374
    %412 = vmatprep.subr.mxu0 0.0
    %413 = vmatpush1.xpose.msra.mxu0 %v375
    %414 = vmatprep.subr.mxu0 0.0
    %415 = vmatpush1.xpose.msra.mxu0 %v376
    %416 = vmatprep.subr.mxu0 0.0
    %417 = vmatpush1.xpose.msra.mxu0 %v377
    %418 = vmatprep.subr.mxu0 0.0
    %419 = vmatpush1.xpose.msra.mxu0 %v378
    %420 = vmatprep.subr.mxu0 0.0
    %421 = vmatpush1.xpose.msra.mxu0 %v379
    %422 = vmatprep.subr.mxu0 0.0
    %423 = vmatpush1.xpose.msra.mxu0 %v380
    %424 = vmatprep.subr.mxu0 0.0
    %425 = vmatpush1.xpose.msra.mxu0 %v381
    %426 = vmatprep.subr.mxu0 0.0
    %427 = vmatpush1.xpose.msra.mxu0 %v382
    %428 = vmatprep.subr.mxu0 0.0
    %429 = vmatpush1.xpose.msra.mxu0 %v383
    %430 = vmatprep.subr.mxu0 0.0
    %431 = vmatpush1.xpose.msra.mxu0 %v384
    %432 = vmatprep.subr.mxu0 0.0
    %433 = vmatpush1.xpose.msra.mxu0 %v385
    %434 = vmatprep.subr.mxu0 0.0
    %435 = vmatpush1.xpose.msra.mxu0 0.0
    %436 = vmatprep.subr.mxu0 0.0
    %437 = vmatpush1.xpose.msra.mxu0 0.0
    %438 = vmatprep.subr.mxu0 0.0
    %439 = vmatpush1.xpose.msra.mxu0 0.0
    %440 = vmatprep.subr.mxu0 0.0
    %441 = vmatpush1.xpose.msra.mxu0 0.0
    %442 = vmatprep.subr.mxu0 0.0
    %443 = vmatpush1.xpose.msra.mxu0 0.0
    %444 = vmatprep.subr.mxu0 0.0
    %445 = vmatpush1.xpose.msra.mxu0 0.0
    %446 = vmatprep.subr.mxu0 0.0
    %447 = vmatpush1.xpose.msra.mxu0 0.0
    %448 = vmatprep.subr.mxu0 0.0
    %449 = vmatpush1.xpose.msra.mxu0 0.0
    %450 = vmatprep.subr.mxu0 0.0
    %451 = vmatpush1.xpose.msra.mxu0 0.0
    %452 = vmatprep.subr.mxu0 0.0
    %453 = vmatpush1.xpose.msra.mxu0 0.0
    %454 = vmatprep.subr.mxu0 0.0
    %455 = vmatpush1.xpose.msra.mxu0 0.0
    %456 = vmatprep.subr.mxu0 0.0
    %457 = vmatpush1.xpose.msra.mxu0 0.0
    %458 = vmatprep.subr.mxu0 0.0
    %459 = vmatpush1.xpose.msra.mxu0 0.0
    %460 = vmatprep.subr.mxu0 0.0
    %461 = vmatpush1.xpose.msra.mxu0 0.0
    %462 = vmatprep.subr.mxu0 0.0
    %463 = vmatpush1.xpose.msra.mxu0 0.0
    %464 = vmatprep.subr.mxu0 0.0
    %465 = vmatpush1.xpose.msra.mxu0 0.0
    %466 = vmatprep.mubr.f32.mxu0 0.0
    %467 = vmatmul.mubr.f32.gmra.mrb[0].mxu0 %v263
    %v468 = vpop.f32.mrb[0].mxu0
    %v469 = vadd.f32 %v110, %v468
    %v470 = vpop.f32.mrb[0].mxu0
    %471 = vmatprep.mubr.f32.mxu0 0.0
    %472 = vmatmul.mubr.f32.gmra.mrb[0].mxu0 %v269
    %v473 = vpop.f32.mrb[0].mxu0
    %v474 = vadd.f32 %v111, %v473
    %v475 = vpop.f32.mrb[0].mxu0
    %476 = vmatprep.mubr.f32.mxu0 0.0
    %477 = vmatmul.mubr.f32.gmra.mrb[0].mxu0 %v275
    %v478 = vpop.f32.mrb[0].mxu0
    %v479 = vadd.f32 %v112, %v478
    %v480 = vpop.f32.mrb[0].mxu0
    %481 = vmatprep.mubr.f32.mxu0 0.0
    %482 = vmatmul.mubr.f32.gmra.mrb[0].mxu0 %v281
    %v483 = vpop.f32.mrb[0].mxu0
    %v484 = vadd.f32 %v113, %v483
    %v485 = vpop.f32.mrb[0].mxu0
    %486 = vdwg.mxu0
    %487 = vmax.xlane.f32.xlu0 %v469
    %v488 = vpop.xlane.xlu0 %487
    %489 = vmax.xlane.f32.xlu0 %v474
    %v490 = vpop.xlane.xlu0 %489
    %491 = vmax.xlane.f32.xlu0 %v479
    %v492 = vpop.xlane.xlu0 %491
    %493 = vmax.xlane.f32.xlu0 %v484
    %v494 = vpop.xlane.xlu0 %493
    %v495 = vsub.f32 %v469, %v488
    %v496 = vsub.f32 %v474, %v490
    %v497 = vsub.f32 %v479, %v492
    %v498 = vsub.f32 %v484, %v494
    %v499 = vmul.f32 %v495, 1.442695
    %v500 = vpow.pop %v499
    %v501 = vmul.f32 %v496, 1.442695
    %v502 = vpow.pop %v501
    %v503 = vmul.f32 %v497, 1.442695
    %v504 = vpow.pop %v503
    %v505 = vmul.f32 %v498, 1.442695
    %v506 = vpow.pop %v505
    %507 = vmatprep.subr.mxu0 0.0
    %508 = vmatpush1.msra.mxu0 %v386
    %509 = vmatprep.subr.mxu0 0.0
    %510 = vmatpush1.msra.mxu0 %v387
    %511 = vmatprep.subr.mxu0 0.0
    %512 = vmatpush1.msra.mxu0 %v388
    %513 = vmatprep.subr.mxu0 0.0
    %514 = vmatpush1.msra.mxu0 %v389
    %515 = vmatprep.subr.mxu0 0.0
    %516 = vmatpush1.msra.mxu0 %v390
    %517 = vmatprep.subr.mxu0 0.0
    %518 = vmatpush1.msra.mxu0 %v391
    %519 = vmatprep.subr.mxu0 0.0
    %520 = vmatpush1.msra.mxu0 %v392
    %521 = vmatprep.subr.mxu0 0.0
    %522 = vmatpush1.msra.mxu0 %v393
    %523 = vmatprep.subr.mxu0 0.0
    %524 = vmatpush1.msra.mxu0 %v394
    %525 = vmatprep.subr.mxu0 0.0
    %526 = vmatpush1.msra.mxu0 %v395
    %527 = vmatprep.subr.mxu0 0.0
    %528 = vmatpush1.msra.mxu0 %v396
    %529 = vmatprep.subr.mxu0 0.0
    %530 = vmatpush1.msra.mxu0 %v397
    %531 = vmatprep.subr.mxu0 0.0
    %532 = vmatpush1.msra.mxu0 %v398
    %533 = vmatprep.subr.mxu0 0.0
    %534 = vmatpush1.msra.mxu0 %v399
    %535 = vmatprep.subr.mxu0 0.0
    %536 = vmatpush1.msra.mxu0 %v400
    %537 = vmatprep.subr.mxu0 0.0
    %538 = vmatpush1.msra.mxu0 %v401
    %539 = vmatprep.subr.mxu0 0.0
    %540 = vmatpush1.msra.mxu0 0.0
    %541 = vmatprep.subr.mxu0 0.0
    %542 = vmatpush1.msra.mxu0 0.0
    %543 = vmatprep.subr.mxu0 0.0
    %544 = vmatpush1.msra.mxu0 0.0
    %545 = vmatprep.subr.mxu0 0.0
    %546 = vmatpush1.msra.mxu0 0.0
    %547 = vmatprep.subr.mxu0 0.0
    %548 = vmatpush1.msra.mxu0 0.0
    %549 = vmatprep.subr.mxu0 0.0
    %550 = vmatpush1.msra.mxu0 0.0
    %551 = vmatprep.subr.mxu0 0.0
    %552 = vmatpush1.msra.mxu0 0.0
    %553 = vmatprep.subr.mxu0 0.0
    %554 = vmatpush1.msra.mxu0 0.0
    %555 = vmatprep.subr.mxu0 0.0
    %556 = vmatpush1.msra.mxu0 0.0
    %557 = vmatprep.subr.mxu0 0.0
    %558 = vmatpush1.msra.mxu0 0.0
    %559 = vmatprep.subr.mxu0 0.0
    %560 = vmatpush1.msra.mxu0 0.0
    %561 = vmatprep.subr.mxu0 0.0
    %562 = vmatpush1.msra.mxu0 0.0
    %563 = vmatprep.subr.mxu0 0.0
    %564 = vmatpush1.msra.mxu0 0.0
    %565 = vmatprep.subr.mxu0 0.0
    %566 = vmatpush1.msra.mxu0 0.0
    %567 = vmatprep.subr.mxu0 0.0
    %568 = vmatpush1.msra.mxu0 0.0
    %569 = vmatprep.subr.mxu0 0.0
    %570 = vmatpush1.msra.mxu0 0.0
    %571 = vmatprep.mubr.f32.mxu0 0.0
    %572 = vmatmul.mubr.f32.gmra.mrb[0].mxu0 %v500
    %v573 = vpop.f32.mrb[0].mxu0
    %v574 = vadd.f32 0.0, %v573
    %v575 = vpop.f32.mrb[0].mxu0
    %576 = vmatprep.mubr.f32.mxu0 0.0
    %577 = vmatmul.mubr.f32.gmra.mrb[0].mxu0 %v502
    %v578 = vpop.f32.mrb[0].mxu0
    %v579 = vadd.f32 0.0, %v578
    %v580 = vpop.f32.mrb[0].mxu0
    %581 = vmatprep.mubr.f32.mxu0 0.0
    %582 = vmatmul.mubr.f32.gmra.mrb[0].mxu0 %v504
    %v583 = vpop.f32.mrb[0].mxu0
    %v584 = vadd.f32 0.0, %v583
    %v585 = vpop.f32.mrb[0].mxu0
    %586 = vmatprep.mubr.f32.mxu0 0.0
    %587 = vmatmul.mubr.f32.gmra.mrb[0].mxu0 %v506
    %v588 = vpop.f32.mrb[0].mxu0
    %v589 = vadd.f32 0.0, %v588
    %v590 = vpop.f32.mrb[0].mxu0
    %591 = vdwg.mxu0
    %592 = vmatprep.subr.mxu0 0.0
    %593 = vmatpush1.msra.mxu0 %v114
    %594 = vmatprep.subr.mxu0 0.0
    %595 = vmatpush1.msra.mxu0 %v115
    %596 = vmatprep.subr.mxu0 0.0
    %597 = vmatpush1.msra.mxu0 %v116
    %598 = vmatprep.subr.mxu0 0.0
    %599 = vmatpush1.msra.mxu0 %v117
    %600 = vmatprep.subr.mxu0 0.0
    %601 = vmatpush1.msra.mxu0 %v118
    %602 = vmatprep.subr.mxu0 0.0
    %603 = vmatpush1.msra.mxu0 %v119
    %604 = vmatprep.subr.mxu0 0.0
    %605 = vmatpush1.msra.mxu0 %v120
    %606 = vmatprep.subr.mxu0 0.0
    %607 = vmatpush1.msra.mxu0 %v121
    %608 = vmatprep.subr.mxu0 0.0
    %609 = vmatpush1.msra.mxu0 %v122
    %610 = vmatprep.subr.mxu0 0.0
    %611 = vmatpush1.msra.mxu0 %v123
    %612 = vmatprep.subr.mxu0 0.0
    %613 = vmatpush1.msra.mxu0 %v124
    %614 = vmatprep.subr.mxu0 0.0
    %615 = vmatpush1.msra.mxu0 %v125
    %616 = vmatprep.subr.mxu0 0.0
    %617 = vmatpush1.msra.mxu0 %v126
    %618 = vmatprep.subr.mxu0 0.0
    %619 = vmatpush1.msra.mxu0 %v127
    %620 = vmatprep.subr.mxu0 0.0
    %621 = vmatpush1.msra.mxu0 %v128
    %622 = vmatprep.subr.mxu0 0.0
    %623 = vmatpush1.msra.mxu0 %v129
    %624 = vmatprep.subr.mxu0 0.0
    %625 = vmatpush1.msra.mxu0 0.0
    %626 = vmatprep.subr.mxu0 0.0
    %627 = vmatpush1.msra.mxu0 0.0
    %628 = vmatprep.subr.mxu0 0.0
    %629 = vmatpush1.msra.mxu0 0.0
    %630 = vmatprep.subr.mxu0 0.0
    %631 = vmatpush1.msra.mxu0 0.0
    %632 = vmatprep.subr.mxu0 0.0
    %633 = vmatpush1.msra.mxu0 0.0
    %634 = vmatprep.subr.mxu0 0.0
    %635 = vmatpush1.msra.mxu0 0.0
    %636 = vmatprep.subr.mxu0 0.0
    %637 = vmatpush1.msra.mxu0 0.0
    %638 = vmatprep.subr.mxu0 0.0
    %639 = vmatpush1.msra.mxu0 0.0
    %640 = vmatprep.subr.mxu0 0.0
    %641 = vmatpush1.msra.mxu0 0.0
    %642 = vmatprep.subr.mxu0 0.0
    %643 = vmatpush1.msra.mxu0 0.0
    %644 = vmatprep.subr.mxu0 0.0
    %645 = vmatpush1.msra.mxu0 0.0
    %646 = vmatprep.subr.mxu0 0.0
    %647 = vmatpush1.msra.mxu0 0.0
    %648 = vmatprep.subr.mxu0 0.0
    %649 = vmatpush1.msra.mxu0 0.0
    %650 = vmatprep.subr.mxu0 0.0
    %651 = vmatpush1.msra.mxu0 0.0
    %652 = vmatprep.subr.mxu0 0.0
    %653 = vmatpush1.msra.mxu0 0.0
    %654 = vmatprep.subr.mxu0 0.0
    %655 = vmatpush1.msra.mxu0 0.0
    %656 = vmatprep.mubr.f32.mxu0 0.0
    %657 = vmatmul.mubr.f32.gmra.mrb[0].mxu0 %v500
    %v658 = vpop.f32.mrb[0].mxu0
    %v659 = vadd.f32 0.0, %v658
    %v660 = vpop.f32.mrb[0].mxu0
    %661 = vmatprep.mubr.f32.mxu0 0.0
    %662 = vmatmul.mubr.f32.gmra.mrb[0].mxu0 %v502
    %v663 = vpop.f32.mrb[0].mxu0
    %v664 = vadd.f32 0.0, %v663
    %v665 = vpop.f32.mrb[0].mxu0
    %666 = vmatprep.mubr.f32.mxu0 0.0
    %667 = vmatmul.mubr.f32.gmra.mrb[0].mxu0 %v504
    %v668 = vpop.f32.mrb[0].mxu0
    %v669 = vadd.f32 0.0, %v668
    %v670 = vpop.f32.mrb[0].mxu0
    %671 = vmatprep.mubr.f32.mxu0 0.0
    %672 = vmatmul.mubr.f32.gmra.mrb[0].mxu0 %v506
    %v673 = vpop.f32.mrb[0].mxu0
    %v674 = vadd.f32 0.0, %v673
    %v675 = vpop.f32.mrb[0].mxu0
    %676 = vdwg.mxu0
    %v677 = vmax.f32 %v659, 1e-30
    %v678 = vmax.f32 %v664, 1e-30
    %v679 = vmax.f32 %v669, 1e-30
    %v680 = vmax.f32 %v674, 1e-30
    %v681 = vrcp.pop %v677
    %v682 = vrcp.pop %v678
    %v683 = vrcp.pop %v679
    %v684 = vrcp.pop %v680
    %v685 = vmul.f32 %v574, %v681
    %v686 = vmul.f32 %v579, %v682
    %v687 = vmul.f32 %v584, %v683
    %v688 = vmul.f32 %v589, %v684
    %v689 = vld [vmem:[%s6] sm:$0xff]
    %v690 = vld [vmem:[%s6 + $0x8] sm:$0xff]
    %v691 = vld [vmem:[%s6 + $0x10] sm:$0xff]
    %v692 = vld [vmem:[%s6 + $0x18] sm:$0xff]
    %v693 = vld [vmem:[%s6 + $0x20] sm:$0xff]
    %v694 = vld [vmem:[%s6 + $0x28] sm:$0xff]
    %v695 = vld [vmem:[%s6 + $0x30] sm:$0xff]
    %v696 = vld [vmem:[%s6 + $0x38] sm:$0xff]
    %v697 = vld [vmem:[%s6 + $0x40] sm:$0xff]
    %v698 = vld [vmem:[%s6 + $0x48] sm:$0xff]
    %v699 = vld [vmem:[%s6 + $0x50] sm:$0xff]
    %v700 = vld [vmem:[%s6 + $0x58] sm:$0xff]
    %v701 = vld [vmem:[%s6 + $0x60] sm:$0xff]
    %v702 = vld [vmem:[%s6 + $0x68] sm:$0xff]
    %v703 = vld [vmem:[%s6 + $0x70] sm:$0xff]
    %v704 = vld [vmem:[%s6 + $0x78] sm:$0xff]
    %s705 = scalar_lea.vmem %s4, 9
    %v706 = vld [vmem:[%s705] sm:$0x7]
    %v708 = vlaneseq
    %v709 = vshrl.u32 %v708, 7
    %v710 = vsub.s32 0, %v709
    %v711 = vrot.slane %v706, %v710
    %713 = vmatprep.subr.mxu0 0.0
    %714 = vmatpush1.msra.mxu0 %v689
    %715 = vmatprep.subr.mxu0 0.0
    %716 = vmatpush1.msra.mxu0 %v690
    %717 = vmatprep.subr.mxu0 0.0
    %718 = vmatpush1.msra.mxu0 %v691
    %719 = vmatprep.subr.mxu0 0.0
    %720 = vmatpush1.msra.mxu0 %v692
    %721 = vmatprep.subr.mxu0 0.0
    %722 = vmatpush1.msra.mxu0 %v693
    %723 = vmatprep.subr.mxu0 0.0
    %724 = vmatpush1.msra.mxu0 %v694
    %725 = vmatprep.subr.mxu0 0.0
    %726 = vmatpush1.msra.mxu0 %v695
    %727 = vmatprep.subr.mxu0 0.0
    %728 = vmatpush1.msra.mxu0 %v696
    %729 = vmatprep.subr.mxu0 0.0
    %730 = vmatpush1.msra.mxu0 %v697
    %731 = vmatprep.subr.mxu0 0.0
    %732 = vmatpush1.msra.mxu0 %v698
    %733 = vmatprep.subr.mxu0 0.0
    %734 = vmatpush1.msra.mxu0 %v699
    %735 = vmatprep.subr.mxu0 0.0
    %736 = vmatpush1.msra.mxu0 %v700
    %737 = vmatprep.subr.mxu0 0.0
    %738 = vmatpush1.msra.mxu0 %v701
    %739 = vmatprep.subr.mxu0 0.0
    %740 = vmatpush1.msra.mxu0 %v702
    %741 = vmatprep.subr.mxu0 0.0
    %742 = vmatpush1.msra.mxu0 %v703
    %743 = vmatprep.subr.mxu0 0.0
    %744 = vmatpush1.msra.mxu0 %v704
    %745 = vmatprep.subr.mxu0 0.0
    %746 = vmatpush1.msra.mxu0 0.0
    %747 = vmatprep.subr.mxu0 0.0
    %748 = vmatpush1.msra.mxu0 0.0
    %749 = vmatprep.subr.mxu0 0.0
    %750 = vmatpush1.msra.mxu0 0.0
    %751 = vmatprep.subr.mxu0 0.0
    %752 = vmatpush1.msra.mxu0 0.0
    %753 = vmatprep.subr.mxu0 0.0
    %754 = vmatpush1.msra.mxu0 0.0
    %755 = vmatprep.subr.mxu0 0.0
    %756 = vmatpush1.msra.mxu0 0.0
    %757 = vmatprep.subr.mxu0 0.0
    %758 = vmatpush1.msra.mxu0 0.0
    %759 = vmatprep.subr.mxu0 0.0
    %760 = vmatpush1.msra.mxu0 0.0
    %761 = vmatprep.subr.mxu0 0.0
    %762 = vmatpush1.msra.mxu0 0.0
    %763 = vmatprep.subr.mxu0 0.0
    %764 = vmatpush1.msra.mxu0 0.0
    %765 = vmatprep.subr.mxu0 0.0
    %766 = vmatpush1.msra.mxu0 0.0
    %767 = vmatprep.subr.mxu0 0.0
    %768 = vmatpush1.msra.mxu0 0.0
    %769 = vmatprep.subr.mxu0 0.0
    %770 = vmatpush1.msra.mxu0 0.0
    %771 = vmatprep.subr.mxu0 0.0
    %772 = vmatpush1.msra.mxu0 0.0
    %773 = vmatprep.subr.mxu0 0.0
    %774 = vmatpush1.msra.mxu0 0.0
    %775 = vmatprep.subr.mxu0 0.0
    %776 = vmatpush1.msra.mxu0 0.0
    %777 = vmatprep.mubr.f32.mxu0 0.0
    %778 = vmatmul.mubr.f32.gmra.mrb[0].mxu0 %v685
    %v779 = vpop.f32.mrb[0].mxu0
    %v780 = vadd.f32 %v711, %v779
    %v781 = vpop.f32.mrb[0].mxu0
    %782 = vmatprep.mubr.f32.mxu0 0.0
    %783 = vmatmul.mubr.f32.gmra.mrb[0].mxu0 %v686
    %v784 = vpop.f32.mrb[0].mxu0
    %v785 = vadd.f32 %v711, %v784
    %v786 = vpop.f32.mrb[0].mxu0
    %787 = vmatprep.mubr.f32.mxu0 0.0
    %788 = vmatmul.mubr.f32.gmra.mrb[0].mxu0 %v687
    %v789 = vpop.f32.mrb[0].mxu0
    %v790 = vadd.f32 %v711, %v789
    %v791 = vpop.f32.mrb[0].mxu0
    %792 = vmatprep.mubr.f32.mxu0 0.0
    %793 = vmatmul.mubr.f32.gmra.mrb[0].mxu0 %v688
    %v794 = vpop.f32.mrb[0].mxu0
    %v795 = vadd.f32 %v711, %v794
    %v796 = vpop.f32.mrb[0].mxu0
    %797 = vdwg.mxu0
    %v798 = vadd.f32 %v780, %v106
    %v799 = vadd.f32 %v785, %v107
    %v800 = vadd.f32 %v790, %v108
    %v801 = vadd.f32 %v795, %v109
    %s802 = scalar_lea.vmem %s4, 12
    %v803 = vld [vmem:[%s802] sm:$0x7]
    %s804 = scalar_lea.vmem %s4, 15
    %v805 = vld [vmem:[%s804] sm:$0x7]
    %806 = vadd.xlane.f32.xlu0 %v798
    %v807 = vpop.xlane.xlu0 %806
    %808 = vadd.xlane.f32.xlu0 %v799
    %v809 = vpop.xlane.xlu0 %808
    %810 = vadd.xlane.f32.xlu0 %v800
    %v811 = vpop.xlane.xlu0 %810
    %812 = vadd.xlane.f32.xlu0 %v801
    %v813 = vpop.xlane.xlu0 %812
    %v814 = vmul.f32 %v807, %v53
    %v815 = vmul.f32 %v809, %v53
    %v816 = vmul.f32 %v811, %v53
    %v817 = vmul.f32 %v813, %v53
    %v818 = vsub.f32 %v798, %v814
    %v819 = vsub.f32 %v799, %v815
    %v820 = vsub.f32 %v800, %v816
    %v821 = vsub.f32 %v801, %v817
    %v822 = vmul.f32 %v818, %v818
    %v823 = vmul.f32 %v819, %v819
    %v824 = vmul.f32 %v820, %v820
    %v825 = vmul.f32 %v821, %v821
    %826 = vadd.xlane.f32.xlu0 %v822
    %v827 = vpop.xlane.xlu0 %826
    %828 = vadd.xlane.f32.xlu0 %v823
    %v829 = vpop.xlane.xlu0 %828
    %830 = vadd.xlane.f32.xlu0 %v824
    %v831 = vpop.xlane.xlu0 %830
    %832 = vadd.xlane.f32.xlu0 %v825
    %v833 = vpop.xlane.xlu0 %832
    %v834 = vmul.f32 %v827, %v53
    %v835 = vmul.f32 %v829, %v53
    %v836 = vmul.f32 %v831, %v53
    %v837 = vmul.f32 %v833, %v53
    %v838 = vadd.f32 %v834, 1e-05
    %v839 = vadd.f32 %v835, 1e-05
    %v840 = vadd.f32 %v836, 1e-05
    %v841 = vadd.f32 %v837, 1e-05
    %v842 = vrsqrt.pop %v838
    %v843 = vrsqrt.pop %v839
    %v844 = vrsqrt.pop %v840
    %v845 = vrsqrt.pop %v841
    %v846 = vmul.f32 %v818, %v842
    %v847 = vmul.f32 %v819, %v843
    %v848 = vmul.f32 %v820, %v844
    %v849 = vmul.f32 %v821, %v845
    %v851 = vlaneseq
    %v852 = vshrl.u32 %v851, 7
    %v853 = vsub.s32 0, %v852
    %v854 = vrot.slane %v803, %v853
    %v856 = vmul.f32 %v846, %v854
    %v857 = vmul.f32 %v847, %v854
    %v858 = vmul.f32 %v848, %v854
    %v859 = vmul.f32 %v849, %v854
    %v861 = vlaneseq
    %v862 = vshrl.u32 %v861, 7
    %v863 = vsub.s32 0, %v862
    %v864 = vrot.slane %v805, %v863
    %v866 = vadd.f32 %v856, %v864
    %v867 = vadd.f32 %v857, %v864
    %v868 = vadd.f32 %v858, %v864
    %v869 = vadd.f32 %v859, %v864
    %v870 = vld [vmem:[%s7] sm:$0xff]
    %v871 = vld [vmem:[%s7 + $0x8] sm:$0xff]
    %v872 = vld [vmem:[%s7 + $0x10] sm:$0xff]
    %v873 = vld [vmem:[%s7 + $0x18] sm:$0xff]
    %v874 = vld [vmem:[%s7 + $0x20] sm:$0xff]
    %v875 = vld [vmem:[%s7 + $0x28] sm:$0xff]
    %v876 = vld [vmem:[%s7 + $0x30] sm:$0xff]
    %v877 = vld [vmem:[%s7 + $0x38] sm:$0xff]
    %v878 = vld [vmem:[%s7 + $0x40] sm:$0xff]
    %v879 = vld [vmem:[%s7 + $0x48] sm:$0xff]
    %v880 = vld [vmem:[%s7 + $0x50] sm:$0xff]
    %v881 = vld [vmem:[%s7 + $0x58] sm:$0xff]
    %v882 = vld [vmem:[%s7 + $0x60] sm:$0xff]
    %v883 = vld [vmem:[%s7 + $0x68] sm:$0xff]
    %v884 = vld [vmem:[%s7 + $0x70] sm:$0xff]
    %v885 = vld [vmem:[%s7 + $0x78] sm:$0xff]
    %v886 = vld [vmem:[%s7 + $0x80] sm:$0xff]
    %v887 = vld [vmem:[%s7 + $0x88] sm:$0xff]
    %v888 = vld [vmem:[%s7 + $0x90] sm:$0xff]
    %v889 = vld [vmem:[%s7 + $0x98] sm:$0xff]
    %v890 = vld [vmem:[%s7 + $0xa0] sm:$0xff]
    %v891 = vld [vmem:[%s7 + $0xa8] sm:$0xff]
    %v892 = vld [vmem:[%s7 + $0xb0] sm:$0xff]
    %v893 = vld [vmem:[%s7 + $0xb8] sm:$0xff]
    %v894 = vld [vmem:[%s7 + $0xc0] sm:$0xff]
    %v895 = vld [vmem:[%s7 + $0xc8] sm:$0xff]
    %v896 = vld [vmem:[%s7 + $0xd0] sm:$0xff]
    %v897 = vld [vmem:[%s7 + $0xd8] sm:$0xff]
    %v898 = vld [vmem:[%s7 + $0xe0] sm:$0xff]
    %v899 = vld [vmem:[%s7 + $0xe8] sm:$0xff]
    %v900 = vld [vmem:[%s7 + $0xf0] sm:$0xff]
    %v901 = vld [vmem:[%s7 + $0xf8] sm:$0xff]
    %s902 = scalar_lea.vmem %s4, 18
    %v903 = vld [vmem:[%s902] sm:$0x7]
    %v905 = vlaneseq
    %v906 = vshrl.u32 %v905, 7
    %v907 = vsub.s32 0, %v906
    %v908 = vrot.slane %v903, %v907
    %v909 = vlaneseq
    %v910 = vshrl.u32 %v909, 7
    %v911 = vsub.s32 1, %v910
    %v912 = vrot.slane %v903, %v911
    %915 = vmatprep.subr.mxu0 %v871
    %916 = vmatpush1.msra.mxu0 %v870
    %917 = vmatprep.subr.mxu0 %v873
    %918 = vmatpush1.msra.mxu0 %v872
    %919 = vmatprep.subr.mxu0 %v875
    %920 = vmatpush1.msra.mxu0 %v874
    %921 = vmatprep.subr.mxu0 %v877
    %922 = vmatpush1.msra.mxu0 %v876
    %923 = vmatprep.subr.mxu0 %v879
    %924 = vmatpush1.msra.mxu0 %v878
    %925 = vmatprep.subr.mxu0 %v881
    %926 = vmatpush1.msra.mxu0 %v880
    %927 = vmatprep.subr.mxu0 %v883
    %928 = vmatpush1.msra.mxu0 %v882
    %929 = vmatprep.subr.mxu0 %v885
    %930 = vmatpush1.msra.mxu0 %v884
    %931 = vmatprep.subr.mxu0 %v887
    %932 = vmatpush1.msra.mxu0 %v886
    %933 = vmatprep.subr.mxu0 %v889
    %934 = vmatpush1.msra.mxu0 %v888
    %935 = vmatprep.subr.mxu0 %v891
    %936 = vmatpush1.msra.mxu0 %v890
    %937 = vmatprep.subr.mxu0 %v893
    %938 = vmatpush1.msra.mxu0 %v892
    %939 = vmatprep.subr.mxu0 %v895
    %940 = vmatpush1.msra.mxu0 %v894
    %941 = vmatprep.subr.mxu0 %v897
    %942 = vmatpush1.msra.mxu0 %v896
    %943 = vmatprep.subr.mxu0 %v899
    %944 = vmatpush1.msra.mxu0 %v898
    %945 = vmatprep.subr.mxu0 %v901
    %946 = vmatpush1.msra.mxu0 %v900
    %947 = vmatprep.subr.mxu0 0.0
    %948 = vmatpush1.msra.mxu0 0.0
    %949 = vmatprep.subr.mxu0 0.0
    %950 = vmatpush1.msra.mxu0 0.0
    %951 = vmatprep.subr.mxu0 0.0
    %952 = vmatpush1.msra.mxu0 0.0
    %953 = vmatprep.subr.mxu0 0.0
    %954 = vmatpush1.msra.mxu0 0.0
    %955 = vmatprep.subr.mxu0 0.0
    %956 = vmatpush1.msra.mxu0 0.0
    %957 = vmatprep.subr.mxu0 0.0
    %958 = vmatpush1.msra.mxu0 0.0
    %959 = vmatprep.subr.mxu0 0.0
    %960 = vmatpush1.msra.mxu0 0.0
    %961 = vmatprep.subr.mxu0 0.0
    %962 = vmatpush1.msra.mxu0 0.0
    %963 = vmatprep.subr.mxu0 0.0
    %964 = vmatpush1.msra.mxu0 0.0
    %965 = vmatprep.subr.mxu0 0.0
    %966 = vmatpush1.msra.mxu0 0.0
    %967 = vmatprep.subr.mxu0 0.0
    %968 = vmatpush1.msra.mxu0 0.0
    %969 = vmatprep.subr.mxu0 0.0
    %970 = vmatpush1.msra.mxu0 0.0
    %971 = vmatprep.subr.mxu0 0.0
    %972 = vmatpush1.msra.mxu0 0.0
    %973 = vmatprep.subr.mxu0 0.0
    %974 = vmatpush1.msra.mxu0 0.0
    %975 = vmatprep.subr.mxu0 0.0
    %976 = vmatpush1.msra.mxu0 0.0
    %977 = vmatprep.subr.mxu0 0.0
    %978 = vmatpush1.msra.mxu0 0.0
    %979 = vmatprep.mubr.f32.mxu0 0.0
    %980 = vmatmul.mubr.f32.gmra.mrb[0].mxu0 %v866
    %v981 = vpop.f32.mrb[0].mxu0
    %v982 = vadd.f32 %v908, %v981
    %v983 = vpop.f32.mrb[0].mxu0
    %v984 = vadd.f32 %v912, %v983
    %985 = vmatprep.mubr.f32.mxu0 0.0
    %986 = vmatmul.mubr.f32.gmra.mrb[0].mxu0 %v867
    %v987 = vpop.f32.mrb[0].mxu0
    %v988 = vadd.f32 %v908, %v987
    %v989 = vpop.f32.mrb[0].mxu0
    %v990 = vadd.f32 %v912, %v989
    %991 = vmatprep.mubr.f32.mxu0 0.0
    %992 = vmatmul.mubr.f32.gmra.mrb[0].mxu0 %v868
    %v993 = vpop.f32.mrb[0].mxu0
    %v994 = vadd.f32 %v908, %v993
    %v995 = vpop.f32.mrb[0].mxu0
    %v996 = vadd.f32 %v912, %v995
    %997 = vmatprep.mubr.f32.mxu0 0.0
    %998 = vmatmul.mubr.f32.gmra.mrb[0].mxu0 %v869
    %v999 = vpop.f32.mrb[0].mxu0
    %v1000 = vadd.f32 %v908, %v999
    %v1001 = vpop.f32.mrb[0].mxu0
    %v1002 = vadd.f32 %v912, %v1001
    %1003 = vdwg.mxu0
    %v1004 = vmul.f32 %v982, 0.5
    %v1005 = vmul.f32 %v984, 0.5
    %v1006 = vmul.f32 %v988, 0.5
    %v1007 = vmul.f32 %v990, 0.5
    %v1008 = vmul.f32 %v994, 0.5
    %v1009 = vmul.f32 %v996, 0.5
    %v1010 = vmul.f32 %v1000, 0.5
    %v1011 = vmul.f32 %v1002, 0.5
    %v1012 = vmul.f32 %v982, 0.044715
    %v1013 = vmul.f32 %v984, 0.044715
    %v1014 = vmul.f32 %v988, 0.044715
    %v1015 = vmul.f32 %v990, 0.044715
    %v1016 = vmul.f32 %v994, 0.044715
    %v1017 = vmul.f32 %v996, 0.044715
    %v1018 = vmul.f32 %v1000, 0.044715
    %v1019 = vmul.f32 %v1002, 0.044715
    %v1020 = vmul.f32 %v1012, %v982
    %v1021 = vmul.f32 %v1013, %v984
    %v1022 = vmul.f32 %v1014, %v988
    %v1023 = vmul.f32 %v1015, %v990
    %v1024 = vmul.f32 %v1016, %v994
    %v1025 = vmul.f32 %v1017, %v996
    %v1026 = vmul.f32 %v1018, %v1000
    %v1027 = vmul.f32 %v1019, %v1002
    %v1028 = vmul.f32 %v1020, %v982
    %v1029 = vmul.f32 %v1021, %v984
    %v1030 = vmul.f32 %v1022, %v988
    %v1031 = vmul.f32 %v1023, %v990
    %v1032 = vmul.f32 %v1024, %v994
    %v1033 = vmul.f32 %v1025, %v996
    %v1034 = vmul.f32 %v1026, %v1000
    %v1035 = vmul.f32 %v1027, %v1002
    %v1036 = vadd.f32 %v982, %v1028
    %v1037 = vadd.f32 %v984, %v1029
    %v1038 = vadd.f32 %v988, %v1030
    %v1039 = vadd.f32 %v990, %v1031
    %v1040 = vadd.f32 %v994, %v1032
    %v1041 = vadd.f32 %v996, %v1033
    %v1042 = vadd.f32 %v1000, %v1034
    %v1043 = vadd.f32 %v1002, %v1035
    %v1044 = vmul.f32 %v1036, 0.7978846
    %v1045 = vmul.f32 %v1037, 0.7978846
    %v1046 = vmul.f32 %v1038, 0.7978846
    %v1047 = vmul.f32 %v1039, 0.7978846
    %v1048 = vmul.f32 %v1040, 0.7978846
    %v1049 = vmul.f32 %v1041, 0.7978846
    %v1050 = vmul.f32 %v1042, 0.7978846
    %v1051 = vmul.f32 %v1043, 0.7978846
    %v1052 = vtanh.pop %v1044
    %v1053 = vtanh.pop %v1045
    %v1054 = vtanh.pop %v1046
    %v1055 = vtanh.pop %v1047
    %v1056 = vtanh.pop %v1048
    %v1057 = vtanh.pop %v1049
    %v1058 = vtanh.pop %v1050
    %v1059 = vtanh.pop %v1051
    %v1060 = vadd.f32 %v1052, 1.0
    %v1061 = vadd.f32 %v1053, 1.0
    %v1062 = vadd.f32 %v1054, 1.0
    %v1063 = vadd.f32 %v1055, 1.0
    %v1064 = vadd.f32 %v1056, 1.0
    %v1065 = vadd.f32 %v1057, 1.0
    %v1066 = vadd.f32 %v1058, 1.0
    %v1067 = vadd.f32 %v1059, 1.0
    %v1068 = vmul.f32 %v1004, %v1060
    %v1069 = vmul.f32 %v1005, %v1061
    %v1070 = vmul.f32 %v1006, %v1062
    %v1071 = vmul.f32 %v1007, %v1063
    %v1072 = vmul.f32 %v1008, %v1064
    %v1073 = vmul.f32 %v1009, %v1065
    %v1074 = vmul.f32 %v1010, %v1066
    %v1075 = vmul.f32 %v1011, %v1067
    %v1076 = vld [vmem:[%s8] sm:$0xff]
    %v1077 = vld [vmem:[%s8 + $0x8] sm:$0xff]
    %v1078 = vld [vmem:[%s8 + $0x10] sm:$0xff]
    %v1079 = vld [vmem:[%s8 + $0x18] sm:$0xff]
    %v1080 = vld [vmem:[%s8 + $0x20] sm:$0xff]
    %v1081 = vld [vmem:[%s8 + $0x28] sm:$0xff]
    %v1082 = vld [vmem:[%s8 + $0x30] sm:$0xff]
    %v1083 = vld [vmem:[%s8 + $0x38] sm:$0xff]
    %v1084 = vld [vmem:[%s8 + $0x40] sm:$0xff]
    %v1085 = vld [vmem:[%s8 + $0x48] sm:$0xff]
    %v1086 = vld [vmem:[%s8 + $0x50] sm:$0xff]
    %v1087 = vld [vmem:[%s8 + $0x58] sm:$0xff]
    %v1088 = vld [vmem:[%s8 + $0x60] sm:$0xff]
    %v1089 = vld [vmem:[%s8 + $0x68] sm:$0xff]
    %v1090 = vld [vmem:[%s8 + $0x70] sm:$0xff]
    %v1091 = vld [vmem:[%s8 + $0x78] sm:$0xff]
    %v1092 = vld [vmem:[%s8 + $0x80] sm:$0xff]
    %v1093 = vld [vmem:[%s8 + $0x88] sm:$0xff]
    %v1094 = vld [vmem:[%s8 + $0x90] sm:$0xff]
    %v1095 = vld [vmem:[%s8 + $0x98] sm:$0xff]
    %v1096 = vld [vmem:[%s8 + $0xa0] sm:$0xff]
    %v1097 = vld [vmem:[%s8 + $0xa8] sm:$0xff]
    %v1098 = vld [vmem:[%s8 + $0xb0] sm:$0xff]
    %v1099 = vld [vmem:[%s8 + $0xb8] sm:$0xff]
    %v1100 = vld [vmem:[%s8 + $0xc0] sm:$0xff]
    %v1101 = vld [vmem:[%s8 + $0xc8] sm:$0xff]
    %v1102 = vld [vmem:[%s8 + $0xd0] sm:$0xff]
    %v1103 = vld [vmem:[%s8 + $0xd8] sm:$0xff]
    %v1104 = vld [vmem:[%s8 + $0xe0] sm:$0xff]
    %v1105 = vld [vmem:[%s8 + $0xe8] sm:$0xff]
    %v1106 = vld [vmem:[%s8 + $0xf0] sm:$0xff]
    %v1107 = vld [vmem:[%s8 + $0xf8] sm:$0xff]
    %s1108 = scalar_lea.vmem %s4, 21
    %v1109 = vld [vmem:[%s1108] sm:$0x7]
    %v1111 = vlaneseq
    %v1112 = vshrl.u32 %v1111, 7
    %v1113 = vsub.s32 0, %v1112
    %v1114 = vrot.slane %v1109, %v1113
    %1116 = vmatprep.subr.mxu0 0.0
    %1117 = vmatpush1.msra.mxu0 %v1076
    %1118 = vmatprep.subr.mxu0 0.0
    %1119 = vmatpush1.msra.mxu0 %v1077
    %1120 = vmatprep.subr.mxu0 0.0
    %1121 = vmatpush1.msra.mxu0 %v1078
    %1122 = vmatprep.subr.mxu0 0.0
    %1123 = vmatpush1.msra.mxu0 %v1079
    %1124 = vmatprep.subr.mxu0 0.0
    %1125 = vmatpush1.msra.mxu0 %v1080
    %1126 = vmatprep.subr.mxu0 0.0
    %1127 = vmatpush1.msra.mxu0 %v1081
    %1128 = vmatprep.subr.mxu0 0.0
    %1129 = vmatpush1.msra.mxu0 %v1082
    %1130 = vmatprep.subr.mxu0 0.0
    %1131 = vmatpush1.msra.mxu0 %v1083
    %1132 = vmatprep.subr.mxu0 0.0
    %1133 = vmatpush1.msra.mxu0 %v1084
    %1134 = vmatprep.subr.mxu0 0.0
    %1135 = vmatpush1.msra.mxu0 %v1085
    %1136 = vmatprep.subr.mxu0 0.0
    %1137 = vmatpush1.msra.mxu0 %v1086
    %1138 = vmatprep.subr.mxu0 0.0
    %1139 = vmatpush1.msra.mxu0 %v1087
    %1140 = vmatprep.subr.mxu0 0.0
    %1141 = vmatpush1.msra.mxu0 %v1088
    %1142 = vmatprep.subr.mxu0 0.0
    %1143 = vmatpush1.msra.mxu0 %v1089
    %1144 = vmatprep.subr.mxu0 0.0
    %1145 = vmatpush1.msra.mxu0 %v1090
    %1146 = vmatprep.subr.mxu0 0.0
    %1147 = vmatpush1.msra.mxu0 %v1091
    %1148 = vmatprep.subr.mxu0 0.0
    %1149 = vmatpush1.msra.mxu0 %v1092
    %1150 = vmatprep.subr.mxu0 0.0
    %1151 = vmatpush1.msra.mxu0 %v1093
    %1152 = vmatprep.subr.mxu0 0.0
    %1153 = vmatpush1.msra.mxu0 %v1094
    %1154 = vmatprep.subr.mxu0 0.0
    %1155 = vmatpush1.msra.mxu0 %v1095
    %1156 = vmatprep.subr.mxu0 0.0
    %1157 = vmatpush1.msra.mxu0 %v1096
    %1158 = vmatprep.subr.mxu0 0.0
    %1159 = vmatpush1.msra.mxu0 %v1097
    %1160 = vmatprep.subr.mxu0 0.0
    %1161 = vmatpush1.msra.mxu0 %v1098
    %1162 = vmatprep.subr.mxu0 0.0
    %1163 = vmatpush1.msra.mxu0 %v1099
    %1164 = vmatprep.subr.mxu0 0.0
    %1165 = vmatpush1.msra.mxu0 %v1100
    %1166 = vmatprep.subr.mxu0 0.0
    %1167 = vmatpush1.msra.mxu0 %v1101
    %1168 = vmatprep.subr.mxu0 0.0
    %1169 = vmatpush1.msra.mxu0 %v1102
    %1170 = vmatprep.subr.mxu0 0.0
    %1171 = vmatpush1.msra.mxu0 %v1103
    %1172 = vmatprep.subr.mxu0 0.0
    %1173 = vmatpush1.msra.mxu0 %v1104
    %1174 = vmatprep.subr.mxu0 0.0
    %1175 = vmatpush1.msra.mxu0 %v1105
    %1176 = vmatprep.subr.mxu0 0.0
    %1177 = vmatpush1.msra.mxu0 %v1106
    %1178 = vmatprep.subr.mxu0 0.0
    %1179 = vmatpush1.msra.mxu0 %v1107
    %1180 = vmatprep.mubr.f32.mxu0 %v1069
    %1181 = vmatmul.mubr.f32.gmra.mrb[0].mxu0 %v1068
    %v1182 = vpop.f32.mrb[0].mxu0
    %v1183 = vadd.f32 %v1114, %v1182
    %v1184 = vpop.f32.mrb[0].mxu0
    %1185 = vmatprep.mubr.f32.mxu0 %v1071
    %1186 = vmatmul.mubr.f32.gmra.mrb[0].mxu0 %v1070
    %v1187 = vpop.f32.mrb[0].mxu0
    %v1188 = vadd.f32 %v1114, %v1187
    %v1189 = vpop.f32.mrb[0].mxu0
    %1190 = vmatprep.mubr.f32.mxu0 %v1073
    %1191 = vmatmul.mubr.f32.gmra.mrb[0].mxu0 %v1072
    %v1192 = vpop.f32.mrb[0].mxu0
    %v1193 = vadd.f32 %v1114, %v1192
    %v1194 = vpop.f32.mrb[0].mxu0
    %1195 = vmatprep.mubr.f32.mxu0 %v1075
    %1196 = vmatmul.mubr.f32.gmra.mrb[0].mxu0 %v1074
    %v1197 = vpop.f32.mrb[0].mxu0
    %v1198 = vadd.f32 %v1114, %v1197
    %v1199 = vpop.f32.mrb[0].mxu0
    %1200 = vdwg.mxu0
    %v1201 = vadd.f32 %v1183, %v866
    %v1202 = vadd.f32 %v1188, %v867
    %v1203 = vadd.f32 %v1193, %v868
    %v1204 = vadd.f32 %v1198, %v869
    %s1205 = scalar_lea.vmem %s4, 24
    %v1206 = vld [vmem:[%s1205] sm:$0x7]
    %s1207 = scalar_lea.vmem %s4, 27
    %v1208 = vld [vmem:[%s1207] sm:$0x7]
    %1209 = vadd.xlane.f32.xlu0 %v1201
    %v1210 = vpop.xlane.xlu0 %1209
    %1211 = vadd.xlane.f32.xlu0 %v1202
    %v1212 = vpop.xlane.xlu0 %1211
    %1213 = vadd.xlane.f32.xlu0 %v1203
    %v1214 = vpop.xlane.xlu0 %1213
    %1215 = vadd.xlane.f32.xlu0 %v1204
    %v1216 = vpop.xlane.xlu0 %1215
    %v1217 = vmul.f32 %v1210, %v53
    %v1218 = vmul.f32 %v1212, %v53
    %v1219 = vmul.f32 %v1214, %v53
    %v1220 = vmul.f32 %v1216, %v53
    %v1221 = vsub.f32 %v1201, %v1217
    %v1222 = vsub.f32 %v1202, %v1218
    %v1223 = vsub.f32 %v1203, %v1219
    %v1224 = vsub.f32 %v1204, %v1220
    %v1225 = vmul.f32 %v1221, %v1221
    %v1226 = vmul.f32 %v1222, %v1222
    %v1227 = vmul.f32 %v1223, %v1223
    %v1228 = vmul.f32 %v1224, %v1224
    %1229 = vadd.xlane.f32.xlu0 %v1225
    %v1230 = vpop.xlane.xlu0 %1229
    %1231 = vadd.xlane.f32.xlu0 %v1226
    %v1232 = vpop.xlane.xlu0 %1231
    %1233 = vadd.xlane.f32.xlu0 %v1227
    %v1234 = vpop.xlane.xlu0 %1233
    %1235 = vadd.xlane.f32.xlu0 %v1228
    %v1236 = vpop.xlane.xlu0 %1235
    %v1237 = vmul.f32 %v1230, %v53
    %v1238 = vmul.f32 %v1232, %v53
    %v1239 = vmul.f32 %v1234, %v53
    %v1240 = vmul.f32 %v1236, %v53
    %v1241 = vadd.f32 %v1237, 1e-05
    %v1242 = vadd.f32 %v1238, 1e-05
    %v1243 = vadd.f32 %v1239, 1e-05
    %v1244 = vadd.f32 %v1240, 1e-05
    %v1245 = vrsqrt.pop %v1241
    %v1246 = vrsqrt.pop %v1242
    %v1247 = vrsqrt.pop %v1243
    %v1248 = vrsqrt.pop %v1244
    %v1249 = vmul.f32 %v1221, %v1245
    %v1250 = vmul.f32 %v1222, %v1246
    %v1251 = vmul.f32 %v1223, %v1247
    %v1252 = vmul.f32 %v1224, %v1248
    %v1254 = vlaneseq
    %v1255 = vshrl.u32 %v1254, 7
    %v1256 = vsub.s32 0, %v1255
    %v1257 = vrot.slane %v1206, %v1256
    %v1259 = vmul.f32 %v1249, %v1257
    %v1260 = vmul.f32 %v1250, %v1257
    %v1261 = vmul.f32 %v1251, %v1257
    %v1262 = vmul.f32 %v1252, %v1257
    %v1264 = vlaneseq
    %v1265 = vshrl.u32 %v1264, 7
    %v1266 = vsub.s32 0, %v1265
    %v1267 = vrot.slane %v1208, %v1266
    %v1269 = vadd.f32 %v1259, %v1267
    %v1270 = vadd.f32 %v1260, %v1267
    %v1271 = vadd.f32 %v1261, %v1267
    %v1272 = vadd.f32 %v1262, %v1267
    %s1273 = scalar_lea.vmem %s5, 384
    %v1274 = vld [vmem:[%s1273] sm:$0xff]
    %v1275 = vld [vmem:[%s1273 + $0x8] sm:$0xff]
    %v1276 = vld [vmem:[%s1273 + $0x10] sm:$0xff]
    %v1277 = vld [vmem:[%s1273 + $0x18] sm:$0xff]
    %v1278 = vld [vmem:[%s1273 + $0x20] sm:$0xff]
    %v1279 = vld [vmem:[%s1273 + $0x28] sm:$0xff]
    %v1280 = vld [vmem:[%s1273 + $0x30] sm:$0xff]
    %v1281 = vld [vmem:[%s1273 + $0x38] sm:$0xff]
    %v1282 = vld [vmem:[%s1273 + $0x40] sm:$0xff]
    %v1283 = vld [vmem:[%s1273 + $0x48] sm:$0xff]
    %v1284 = vld [vmem:[%s1273 + $0x50] sm:$0xff]
    %v1285 = vld [vmem:[%s1273 + $0x58] sm:$0xff]
    %v1286 = vld [vmem:[%s1273 + $0x60] sm:$0xff]
    %v1287 = vld [vmem:[%s1273 + $0x68] sm:$0xff]
    %v1288 = vld [vmem:[%s1273 + $0x70] sm:$0xff]
    %v1289 = vld [vmem:[%s1273 + $0x78] sm:$0xff]
    %v1290 = vld [vmem:[%s1273 + $0x80] sm:$0xff]
    %v1291 = vld [vmem:[%s1273 + $0x88] sm:$0xff]
    %v1292 = vld [vmem:[%s1273 + $0x90] sm:$0xff]
    %v1293 = vld [vmem:[%s1273 + $0x98] sm:$0xff]
    %v1294 = vld [vmem:[%s1273 + $0xa0] sm:$0xff]
    %v1295 = vld [vmem:[%s1273 + $0xa8] sm:$0xff]
    %v1296 = vld [vmem:[%s1273 + $0xb0] sm:$0xff]
    %v1297 = vld [vmem:[%s1273 + $0xb8] sm:$0xff]
    %v1298 = vld [vmem:[%s1273 + $0xc0] sm:$0xff]
    %v1299 = vld [vmem:[%s1273 + $0xc8] sm:$0xff]
    %v1300 = vld [vmem:[%s1273 + $0xd0] sm:$0xff]
    %v1301 = vld [vmem:[%s1273 + $0xd8] sm:$0xff]
    %v1302 = vld [vmem:[%s1273 + $0xe0] sm:$0xff]
    %v1303 = vld [vmem:[%s1273 + $0xe8] sm:$0xff]
    %v1304 = vld [vmem:[%s1273 + $0xf0] sm:$0xff]
    %v1305 = vld [vmem:[%s1273 + $0xf8] sm:$0xff]
    %v1306 = vld [vmem:[%s1273 + $0x100] sm:$0xff]
    %v1307 = vld [vmem:[%s1273 + $0x108] sm:$0xff]
    %v1308 = vld [vmem:[%s1273 + $0x110] sm:$0xff]
    %v1309 = vld [vmem:[%s1273 + $0x118] sm:$0xff]
    %v1310 = vld [vmem:[%s1273 + $0x120] sm:$0xff]
    %v1311 = vld [vmem:[%s1273 + $0x128] sm:$0xff]
    %v1312 = vld [vmem:[%s1273 + $0x130] sm:$0xff]
    %v1313 = vld [vmem:[%s1273 + $0x138] sm:$0xff]
    %v1314 = vld [vmem:[%s1273 + $0x140] sm:$0xff]
    %v1315 = vld [vmem:[%s1273 + $0x148] sm:$0xff]
    %v1316 = vld [vmem:[%s1273 + $0x150] sm:$0xff]
    %v1317 = vld [vmem:[%s1273 + $0x158] sm:$0xff]
    %v1318 = vld [vmem:[%s1273 + $0x160] sm:$0xff]
    %v1319 = vld [vmem:[%s1273 + $0x168] sm:$0xff]
    %v1320 = vld [vmem:[%s1273 + $0x170] sm:$0xff]
    %v1321 = vld [vmem:[%s1273 + $0x178] sm:$0xff]
    %s1322 = scalar_lea.vmem %s4, 30
    %v1323 = vld [vmem:[%s1322] sm:$0x7]
    %v1325 = vlaneseq
    %v1326 = vshrl.u32 %v1325, 7
    %v1327 = vsub.s32 0, %v1326
    %v1328 = vrot.slane %v1323, %v1327
    %v1329 = vlaneseq
    %v1330 = vshrl.u32 %v1329, 7
    %v1331 = vsub.s32 1, %v1330
    %v1332 = vrot.slane %v1323, %v1331
    %v1333 = vlaneseq
    %v1334 = vshrl.u32 %v1333, 7
    %v1335 = vsub.s32 2, %v1334
    %v1336 = vrot.slane %v1323, %v1335
    %1340 = vmatprep.subr.mxu0 %v1275
    %1341 = vmatpush1.msra.mxu0 %v1274
    %1342 = vmatprep.subr.mxu0 %v1278
    %1343 = vmatpush1.msra.mxu0 %v1277
    %1344 = vmatprep.subr.mxu0 %v1281
    %1345 = vmatpush1.msra.mxu0 %v1280
    %1346 = vmatprep.subr.mxu0 %v1284
    %1347 = vmatpush1.msra.mxu0 %v1283
    %1348 = vmatprep.subr.mxu0 %v1287
    %1349 = vmatpush1.msra.mxu0 %v1286
    %1350 = vmatprep.subr.mxu0 %v1290
    %1351 = vmatpush1.msra.mxu0 %v1289
    %1352 = vmatprep.subr.mxu0 %v1293
    %1353 = vmatpush1.msra.mxu0 %v1292
    %1354 = vmatprep.subr.mxu0 %v1296
    %1355 = vmatpush1.msra.mxu0 %v1295
    %1356 = vmatprep.subr.mxu0 %v1299
    %1357 = vmatpush1.msra.mxu0 %v1298
    %1358 = vmatprep.subr.mxu0 %v1302
    %1359 = vmatpush1.msra.mxu0 %v1301
    %1360 = vmatprep.subr.mxu0 %v1305
    %1361 = vmatpush1.msra.mxu0 %v1304
    %1362 = vmatprep.subr.mxu0 %v1308
    %1363 = vmatpush1.msra.mxu0 %v1307
    %1364 = vmatprep.subr.mxu0 %v1311
    %1365 = vmatpush1.msra.mxu0 %v1310
    %1366 = vmatprep.subr.mxu0 %v1314
    %1367 = vmatpush1.msra.mxu0 %v1313
    %1368 = vmatprep.subr.mxu0 %v1317
    %1369 = vmatpush1.msra.mxu0 %v1316
    %1370 = vmatprep.subr.mxu0 %v1320
    %1371 = vmatpush1.msra.mxu0 %v1319
    %1372 = vmatprep.subr.mxu0 0.0
    %1373 = vmatpush1.msra.mxu0 0.0
    %1374 = vmatprep.subr.mxu0 0.0
    %1375 = vmatpush1.msra.mxu0 0.0
    %1376 = vmatprep.subr.mxu0 0.0
    %1377 = vmatpush1.msra.mxu0 0.0
    %1378 = vmatprep.subr.mxu0 0.0
    %1379 = vmatpush1.msra.mxu0 0.0
    %1380 = vmatprep.subr.mxu0 0.0
    %1381 = vmatpush1.msra.mxu0 0.0
    %1382 = vmatprep.subr.mxu0 0.0
    %1383 = vmatpush1.msra.mxu0 0.0
    %1384 = vmatprep.subr.mxu0 0.0
    %1385 = vmatpush1.msra.mxu0 0.0
    %1386 = vmatprep.subr.mxu0 0.0
    %1387 = vmatpush1.msra.mxu0 0.0
    %1388 = vmatprep.subr.mxu0 0.0
    %1389 = vmatpush1.msra.mxu0 0.0
    %1390 = vmatprep.subr.mxu0 0.0
    %1391 = vmatpush1.msra.mxu0 0.0
    %1392 = vmatprep.subr.mxu0 0.0
    %1393 = vmatpush1.msra.mxu0 0.0
    %1394 = vmatprep.subr.mxu0 0.0
    %1395 = vmatpush1.msra.mxu0 0.0
    %1396 = vmatprep.subr.mxu0 0.0
    %1397 = vmatpush1.msra.mxu0 0.0
    %1398 = vmatprep.subr.mxu0 0.0
    %1399 = vmatpush1.msra.mxu0 0.0
    %1400 = vmatprep.subr.mxu0 0.0
    %1401 = vmatpush1.msra.mxu0 0.0
    %1402 = vmatprep.subr.mxu0 0.0
    %1403 = vmatpush1.msra.mxu0 0.0
    %1404 = vmatprep.mubr.f32.mxu0 0.0
    %1405 = vmatmul.mubr.f32.gmra.mrb[0].mxu0 %v1269
    %v1406 = vpop.f32.mrb[0].mxu0
    %v1407 = vadd.f32 %v1328, %v1406
    %v1408 = vpop.f32.mrb[0].mxu0
    %v1409 = vadd.f32 %v1332, %v1408
    %1410 = vmatprep.mubr.f32.mxu0 0.0
    %1411 = vmatmul.mubr.f32.gmra.mrb[0].mxu0 %v1270
    %v1412 = vpop.f32.mrb[0].mxu0
    %v1413 = vadd.f32 %v1328, %v1412
    %v1414 = vpop.f32.mrb[0].mxu0
    %v1415 = vadd.f32 %v1332, %v1414
    %1416 = vmatprep.mubr.f32.mxu0 0.0
    %1417 = vmatmul.mubr.f32.gmra.mrb[0].mxu0 %v1271
    %v1418 = vpop.f32.mrb[0].mxu0
    %v1419 = vadd.f32 %v1328, %v1418
    %v1420 = vpop.f32.mrb[0].mxu0
    %v1421 = vadd.f32 %v1332, %v1420
    %1422 = vmatprep.mubr.f32.mxu0 0.0
    %1423 = vmatmul.mubr.f32.gmra.mrb[0].mxu0 %v1272
    %v1424 = vpop.f32.mrb[0].mxu0
    %v1425 = vadd.f32 %v1328, %v1424
    %v1426 = vpop.f32.mrb[0].mxu0
    %v1427 = vadd.f32 %v1332, %v1426
    %1428 = vdwg.mxu0
    %1429 = vmatprep.subr.mxu0 0.0
    %1430 = vmatpush1.msra.mxu0 %v1276
    %1431 = vmatprep.subr.mxu0 0.0
    %1432 = vmatpush1.msra.mxu0 %v1279
    %1433 = vmatprep.subr.mxu0 0.0
    %1434 = vmatpush1.msra.mxu0 %v1282
    %1435 = vmatprep.subr.mxu0 0.0
    %1436 = vmatpush1.msra.mxu0 %v1285
    %1437 = vmatprep.subr.mxu0 0.0
    %1438 = vmatpush1.msra.mxu0 %v1288
    %1439 = vmatprep.subr.mxu0 0.0
    %1440 = vmatpush1.msra.mxu0 %v1291
    %1441 = vmatprep.subr.mxu0 0.0
    %1442 = vmatpush1.msra.mxu0 %v1294
    %1443 = vmatprep.subr.mxu0 0.0
    %1444 = vmatpush1.msra.mxu0 %v1297
    %1445 = vmatprep.subr.mxu0 0.0
    %1446 = vmatpush1.msra.mxu0 %v1300
    %1447 = vmatprep.subr.mxu0 0.0
    %1448 = vmatpush1.msra.mxu0 %v1303
    %1449 = vmatprep.subr.mxu0 0.0
    %1450 = vmatpush1.msra.mxu0 %v1306
    %1451 = vmatprep.subr.mxu0 0.0
    %1452 = vmatpush1.msra.mxu0 %v1309
    %1453 = vmatprep.subr.mxu0 0.0
    %1454 = vmatpush1.msra.mxu0 %v1312
    %1455 = vmatprep.subr.mxu0 0.0
    %1456 = vmatpush1.msra.mxu0 %v1315
    %1457 = vmatprep.subr.mxu0 0.0
    %1458 = vmatpush1.msra.mxu0 %v1318
    %1459 = vmatprep.subr.mxu0 0.0
    %1460 = vmatpush1.msra.mxu0 %v1321
    %1461 = vmatprep.subr.mxu0 0.0
    %1462 = vmatpush1.msra.mxu0 0.0
    %1463 = vmatprep.subr.mxu0 0.0
    %1464 = vmatpush1.msra.mxu0 0.0
    %1465 = vmatprep.subr.mxu0 0.0
    %1466 = vmatpush1.msra.mxu0 0.0
    %1467 = vmatprep.subr.mxu0 0.0
    %1468 = vmatpush1.msra.mxu0 0.0
    %1469 = vmatprep.subr.mxu0 0.0
    %1470 = vmatpush1.msra.mxu0 0.0
    %1471 = vmatprep.subr.mxu0 0.0
    %1472 = vmatpush1.msra.mxu0 0.0
    %1473 = vmatprep.subr.mxu0 0.0
    %1474 = vmatpush1.msra.mxu0 0.0
    %1475 = vmatprep.subr.mxu0 0.0
    %1476 = vmatpush1.msra.mxu0 0.0
    %1477 = vmatprep.subr.mxu0 0.0
    %1478 = vmatpush1.msra.mxu0 0.0
    %1479 = vmatprep.subr.mxu0 0.0
    %1480 = vmatpush1.msra.mxu0 0.0
    %1481 = vmatprep.subr.mxu0 0.0
    %1482 = vmatpush1.msra.mxu0 0.0
    %1483 = vmatprep.subr.mxu0 0.0
    %1484 = vmatpush1.msra.mxu0 0.0
    %1485 = vmatprep.subr.mxu0 0.0
    %1486 = vmatpush1.msra.mxu0 0.0
    %1487 = vmatprep.subr.mxu0 0.0
    %1488 = vmatpush1.msra.mxu0 0.0
    %1489 = vmatprep.subr.mxu0 0.0
    %1490 = vmatpush1.msra.mxu0 0.0
    %1491 = vmatprep.subr.mxu0 0.0
    %1492 = vmatpush1.msra.mxu0 0.0
    %1493 = vmatprep.mubr.f32.mxu0 0.0
    %1494 = vmatmul.mubr.f32.gmra.mrb[0].mxu0 %v1269
    %v1495 = vpop.f32.mrb[0].mxu0
    %v1496 = vadd.f32 %v1336, %v1495
    %v1497 = vpop.f32.mrb[0].mxu0
    %1498 = vmatprep.mubr.f32.mxu0 0.0
    %1499 = vmatmul.mubr.f32.gmra.mrb[0].mxu0 %v1270
    %v1500 = vpop.f32.mrb[0].mxu0
    %v1501 = vadd.f32 %v1336, %v1500
    %v1502 = vpop.f32.mrb[0].mxu0
    %1503 = vmatprep.mubr.f32.mxu0 0.0
    %1504 = vmatmul.mubr.f32.gmra.mrb[0].mxu0 %v1271
    %v1505 = vpop.f32.mrb[0].mxu0
    %v1506 = vadd.f32 %v1336, %v1505
    %v1507 = vpop.f32.mrb[0].mxu0
    %1508 = vmatprep.mubr.f32.mxu0 0.0
    %1509 = vmatmul.mubr.f32.gmra.mrb[0].mxu0 %v1272
    %v1510 = vpop.f32.mrb[0].mxu0
    %v1511 = vadd.f32 %v1336, %v1510
    %v1512 = vpop.f32.mrb[0].mxu0
    %1513 = vdwg.mxu0
    %v1514 = vmul.f32 %v1409, %v114
    %v1515 = vmul.f32 %v1415, %v115
    %v1516 = vmul.f32 %v1421, %v116
    %v1517 = vmul.f32 %v1427, %v117
    %v1518 = vmul.f32 %v1409, %v118
    %v1519 = vmul.f32 %v1415, %v119
    %v1520 = vmul.f32 %v1421, %v120
    %v1521 = vmul.f32 %v1427, %v121
    %v1522 = vmul.f32 %v1409, %v122
    %v1523 = vmul.f32 %v1415, %v123
    %v1524 = vmul.f32 %v1421, %v124
    %v1525 = vmul.f32 %v1427, %v125
    %v1526 = vmul.f32 %v1409, %v126
    %v1527 = vmul.f32 %v1415, %v127
    %v1528 = vmul.f32 %v1421, %v128
    %v1529 = vmul.f32 %v1427, %v129
    %v1530 = vmul.f32 %v1496, %v114
    %v1531 = vmul.f32 %v1501, %v115
    %v1532 = vmul.f32 %v1506, %v116
    %v1533 = vmul.f32 %v1511, %v117
    %v1534 = vmul.f32 %v1496, %v118
    %v1535 = vmul.f32 %v1501, %v119
    %v1536 = vmul.f32 %v1506, %v120
    %v1537 = vmul.f32 %v1511, %v121
    %v1538 = vmul.f32 %v1496, %v122
    %v1539 = vmul.f32 %v1501, %v123
    %v1540 = vmul.f32 %v1506, %v124
    %v1541 = vmul.f32 %v1511, %v125
    %v1542 = vmul.f32 %v1496, %v126
    %v1543 = vmul.f32 %v1501, %v127
    %v1544 = vmul.f32 %v1506, %v128
    %v1545 = vmul.f32 %v1511, %v129
    %1546 = vmatprep.subr.mxu0 0.0
    %1547 = vmatpush1.xpose.msra.mxu0 %v1514
    %1548 = vmatprep.subr.mxu0 0.0
    %1549 = vmatpush1.xpose.msra.mxu0 %v1515
    %1550 = vmatprep.subr.mxu0 0.0
    %1551 = vmatpush1.xpose.msra.mxu0 %v1516
    %1552 = vmatprep.subr.mxu0 0.0
    %1553 = vmatpush1.xpose.msra.mxu0 %v1517
    %1554 = vmatprep.subr.mxu0 0.0
    %1555 = vmatpush1.xpose.msra.mxu0 %v1518
    %1556 = vmatprep.subr.mxu0 0.0
    %1557 = vmatpush1.xpose.msra.mxu0 %v1519
    %1558 = vmatprep.subr.mxu0 0.0
    %1559 = vmatpush1.xpose.msra.mxu0 %v1520
    %1560 = vmatprep.subr.mxu0 0.0
    %1561 = vmatpush1.xpose.msra.mxu0 %v1521
    %1562 = vmatprep.subr.mxu0 0.0
    %1563 = vmatpush1.xpose.msra.mxu0 %v1522
    %1564 = vmatprep.subr.mxu0 0.0
    %1565 = vmatpush1.xpose.msra.mxu0 %v1523
    %1566 = vmatprep.subr.mxu0 0.0
    %1567 = vmatpush1.xpose.msra.mxu0 %v1524
    %1568 = vmatprep.subr.mxu0 0.0
    %1569 = vmatpush1.xpose.msra.mxu0 %v1525
    %1570 = vmatprep.subr.mxu0 0.0
    %1571 = vmatpush1.xpose.msra.mxu0 %v1526
    %1572 = vmatprep.subr.mxu0 0.0
    %1573 = vmatpush1.xpose.msra.mxu0 %v1527
    %1574 = vmatprep.subr.mxu0 0.0
    %1575 = vmatpush1.xpose.msra.mxu0 %v1528
    %1576 = vmatprep.subr.mxu0 0.0
    %1577 = vmatpush1.xpose.msra.mxu0 %v1529
    %1578 = vmatprep.subr.mxu0 0.0
    %1579 = vmatpush1.xpose.msra.mxu0 0.0
    %1580 = vmatprep.subr.mxu0 0.0
    %1581 = vmatpush1.xpose.msra.mxu0 0.0
    %1582 = vmatprep.subr.mxu0 0.0
    %1583 = vmatpush1.xpose.msra.mxu0 0.0
    %1584 = vmatprep.subr.mxu0 0.0
    %1585 = vmatpush1.xpose.msra.mxu0 0.0
    %1586 = vmatprep.subr.mxu0 0.0
    %1587 = vmatpush1.xpose.msra.mxu0 0.0
    %1588 = vmatprep.subr.mxu0 0.0
    %1589 = vmatpush1.xpose.msra.mxu0 0.0
    %1590 = vmatprep.subr.mxu0 0.0
    %1591 = vmatpush1.xpose.msra.mxu0 0.0
    %1592 = vmatprep.subr.mxu0 0.0
    %1593 = vmatpush1.xpose.msra.mxu0 0.0
    %1594 = vmatprep.subr.mxu0 0.0
    %1595 = vmatpush1.xpose.msra.mxu0 0.0
    %1596 = vmatprep.subr.mxu0 0.0
    %1597 = vmatpush1.xpose.msra.mxu0 0.0
    %1598 = vmatprep.subr.mxu0 0.0
    %1599 = vmatpush1.xpose.msra.mxu0 0.0
    %1600 = vmatprep.subr.mxu0 0.0
    %1601 = vmatpush1.xpose.msra.mxu0 0.0
    %1602 = vmatprep.subr.mxu0 0.0
    %1603 = vmatpush1.xpose.msra.mxu0 0.0
    %1604 = vmatprep.subr.mxu0 0.0
    %1605 = vmatpush1.xpose.msra.mxu0 0.0
    %1606 = vmatprep.subr.mxu0 0.0
    %1607 = vmatpush1.xpose.msra.mxu0 0.0
    %1608 = vmatprep.subr.mxu0 0.0
    %1609 = vmatpush1.xpose.msra.mxu0 0.0
    %1610 = vmatprep.mubr.f32.mxu0 0.0
    %1611 = vmatmul.mubr.f32.gmra.mrb[0].mxu0 %v1407
    %v1612 = vpop.f32.mrb[0].mxu0
    %v1613 = vadd.f32 %v110, %v1612
    %v1614 = vpop.f32.mrb[0].mxu0
    %1615 = vmatprep.mubr.f32.mxu0 0.0
    %1616 = vmatmul.mubr.f32.gmra.mrb[0].mxu0 %v1413
    %v1617 = vpop.f32.mrb[0].mxu0
    %v1618 = vadd.f32 %v111, %v1617
    %v1619 = vpop.f32.mrb[0].mxu0
    %1620 = vmatprep.mubr.f32.mxu0 0.0
    %1621 = vmatmul.mubr.f32.gmra.mrb[0].mxu0 %v1419
    %v1622 = vpop.f32.mrb[0].mxu0
    %v1623 = vadd.f32 %v112, %v1622
    %v1624 = vpop.f32.mrb[0].mxu0
    %1625 = vmatprep.mubr.f32.mxu0 0.0
    %1626 = vmatmul.mubr.f32.gmra.mrb[0].mxu0 %v1425
    %v1627 = vpop.f32.mrb[0].mxu0
    %v1628 = vadd.f32 %v113, %v1627
    %v1629 = vpop.f32.mrb[0].mxu0
    %1630 = vdwg.mxu0
    %1631 = vmax.xlane.f32.xlu0 %v1613
    %v1632 = vpop.xlane.xlu0 %1631
    %1633 = vmax.xlane.f32.xlu0 %v1618
    %v1634 = vpop.xlane.xlu0 %1633
    %1635 = vmax.xlane.f32.xlu0 %v1623
    %v1636 = vpop.xlane.xlu0 %1635
    %1637 = vmax.xlane.f32.xlu0 %v1628
    %v1638 = vpop.xlane.xlu0 %1637
    %v1639 = vsub.f32 %v1613, %v1632
    %v1640 = vsub.f32 %v1618, %v1634
    %v1641 = vsub.f32 %v1623, %v1636
    %v1642 = vsub.f32 %v1628, %v1638
    %v1643 = vmul.f32 %v1639, 1.442695
    %v1644 = vpow.pop %v1643
    %v1645 = vmul.f32 %v1640, 1.442695
    %v1646 = vpow.pop %v1645
    %v1647 = vmul.f32 %v1641, 1.442695
    %v1648 = vpow.pop %v1647
    %v1649 = vmul.f32 %v1642, 1.442695
    %v1650 = vpow.pop %v1649
    %1651 = vmatprep.subr.mxu0 0.0
    %1652 = vmatpush1.msra.mxu0 %v1530
    %1653 = vmatprep.subr.mxu0 0.0
    %1654 = vmatpush1.msra.mxu0 %v1531
    %1655 = vmatprep.subr.mxu0 0.0
    %1656 = vmatpush1.msra.mxu0 %v1532
    %1657 = vmatprep.subr.mxu0 0.0
    %1658 = vmatpush1.msra.mxu0 %v1533
    %1659 = vmatprep.subr.mxu0 0.0
    %1660 = vmatpush1.msra.mxu0 %v1534
    %1661 = vmatprep.subr.mxu0 0.0
    %1662 = vmatpush1.msra.mxu0 %v1535
    %1663 = vmatprep.subr.mxu0 0.0
    %1664 = vmatpush1.msra.mxu0 %v1536
    %1665 = vmatprep.subr.mxu0 0.0
    %1666 = vmatpush1.msra.mxu0 %v1537
    %1667 = vmatprep.subr.mxu0 0.0
    %1668 = vmatpush1.msra.mxu0 %v1538
    %1669 = vmatprep.subr.mxu0 0.0
    %1670 = vmatpush1.msra.mxu0 %v1539
    %1671 = vmatprep.subr.mxu0 0.0
    %1672 = vmatpush1.msra.mxu0 %v1540
    %1673 = vmatprep.subr.mxu0 0.0
    %1674 = vmatpush1.msra.mxu0 %v1541
    %1675 = vmatprep.subr.mxu0 0.0
    %1676 = vmatpush1.msra.mxu0 %v1542
    %1677 = vmatprep.subr.mxu0 0.0
    %1678 = vmatpush1.msra.mxu0 %v1543
    %1679 = vmatprep.subr.mxu0 0.0
    %1680 = vmatpush1.msra.mxu0 %v1544
    %1681 = vmatprep.subr.mxu0 0.0
    %1682 = vmatpush1.msra.mxu0 %v1545
    %1683 = vmatprep.subr.mxu0 0.0
    %1684 = vmatpush1.msra.mxu0 0.0
    %1685 = vmatprep.subr.mxu0 0.0
    %1686 = vmatpush1.msra.mxu0 0.0
    %1687 = vmatprep.subr.mxu0 0.0
    %1688 = vmatpush1.msra.mxu0 0.0
    %1689 = vmatprep.subr.mxu0 0.0
    %1690 = vmatpush1.msra.mxu0 0.0
    %1691 = vmatprep.subr.mxu0 0.0
    %1692 = vmatpush1.msra.mxu0 0.0
    %1693 = vmatprep.subr.mxu0 0.0
    %1694 = vmatpush1.msra.mxu0 0.0
    %1695 = vmatprep.subr.mxu0 0.0
    %1696 = vmatpush1.msra.mxu0 0.0
    %1697 = vmatprep.subr.mxu0 0.0
    %1698 = vmatpush1.msra.mxu0 0.0
    %1699 = vmatprep.subr.mxu0 0.0
    %1700 = vmatpush1.msra.mxu0 0.0
    %1701 = vmatprep.subr.mxu0 0.0
    %1702 = vmatpush1.msra.mxu0 0.0
    %1703 = vmatprep.subr.mxu0 0.0
    %1704 = vmatpush1.msra.mxu0 0.0
    %1705 = vmatprep.subr.mxu0 0.0
    %1706 = vmatpush1.msra.mxu0 0.0
    %1707 = vmatprep.subr.mxu0 0.0
    %1708 = vmatpush1.msra.mxu0 0.0
    %1709 = vmatprep.subr.mxu0 0.0
    %1710 = vmatpush1.msra.mxu0 0.0
    %1711 = vmatprep.subr.mxu0 0.0
    %1712 = vmatpush1.msra.mxu0 0.0
    %1713 = vmatprep.subr.mxu0 0.0
    %1714 = vmatpush1.msra.mxu0 0.0
    %1715 = vmatprep.mubr.f32.mxu0 0.0
    %1716 = vmatmul.mubr.f32.gmra.mrb[0].mxu0 %v1644
    %v1717 = vpop.f32.mrb[0].mxu0
    %v1718 = vadd.f32 0.0, %v1717
    %v1719 = vpop.f32.mrb[0].mxu0
    %1720 = vmatprep.mubr.f32.mxu0 0.0
    %1721 = vmatmul.mubr.f32.gmra.mrb[0].mxu0 %v1646
    %v1722 = vpop.f32.mrb[0].mxu0
    %v1723 = vadd.f32 0.0, %v1722
    %v1724 = vpop.f32.mrb[0].mxu0
    %1725 = vmatprep.mubr.f32.mxu0 0.0
    %1726 = vmatmul.mubr.f32.gmra.mrb[0].mxu0 %v1648
    %v1727 = vpop.f32.mrb[0].mxu0
    %v1728 = vadd.f32 0.0, %v1727
    %v1729 = vpop.f32.mrb[0].mxu0
    %1730 = vmatprep.mubr.f32.mxu0 0.0
    %1731 = vmatmul.mubr.f32.gmra.mrb[0].mxu0 %v1650
    %v1732 = vpop.f32.mrb[0].mxu0
    %v1733 = vadd.f32 0.0, %v1732
    %v1734 = vpop.f32.mrb[0].mxu0
    %1735 = vdwg.mxu0
    %1736 = vmatprep.subr.mxu0 0.0
    %1737 = vmatpush1.msra.mxu0 %v114
    %1738 = vmatprep.subr.mxu0 0.0
    %1739 = vmatpush1.msra.mxu0 %v115
    %1740 = vmatprep.subr.mxu0 0.0
    %1741 = vmatpush1.msra.mxu0 %v116
    %1742 = vmatprep.subr.mxu0 0.0
    %1743 = vmatpush1.msra.mxu0 %v117
    %1744 = vmatprep.subr.mxu0 0.0
    %1745 = vmatpush1.msra.mxu0 %v118
    %1746 = vmatprep.subr.mxu0 0.0
    %1747 = vmatpush1.msra.mxu0 %v119
    %1748 = vmatprep.subr.mxu0 0.0
    %1749 = vmatpush1.msra.mxu0 %v120
    %1750 = vmatprep.subr.mxu0 0.0
    %1751 = vmatpush1.msra.mxu0 %v121
    %1752 = vmatprep.subr.mxu0 0.0
    %1753 = vmatpush1.msra.mxu0 %v122
    %1754 = vmatprep.subr.mxu0 0.0
    %1755 = vmatpush1.msra.mxu0 %v123
    %1756 = vmatprep.subr.mxu0 0.0
    %1757 = vmatpush1.msra.mxu0 %v124
    %1758 = vmatprep.subr.mxu0 0.0
    %1759 = vmatpush1.msra.mxu0 %v125
    %1760 = vmatprep.subr.mxu0 0.0
    %1761 = vmatpush1.msra.mxu0 %v126
    %1762 = vmatprep.subr.mxu0 0.0
    %1763 = vmatpush1.msra.mxu0 %v127
    %1764 = vmatprep.subr.mxu0 0.0
    %1765 = vmatpush1.msra.mxu0 %v128
    %1766 = vmatprep.subr.mxu0 0.0
    %1767 = vmatpush1.msra.mxu0 %v129
    %1768 = vmatprep.subr.mxu0 0.0
    %1769 = vmatpush1.msra.mxu0 0.0
    %1770 = vmatprep.subr.mxu0 0.0
    %1771 = vmatpush1.msra.mxu0 0.0
    %1772 = vmatprep.subr.mxu0 0.0
    %1773 = vmatpush1.msra.mxu0 0.0
    %1774 = vmatprep.subr.mxu0 0.0
    %1775 = vmatpush1.msra.mxu0 0.0
    %1776 = vmatprep.subr.mxu0 0.0
    %1777 = vmatpush1.msra.mxu0 0.0
    %1778 = vmatprep.subr.mxu0 0.0
    %1779 = vmatpush1.msra.mxu0 0.0
    %1780 = vmatprep.subr.mxu0 0.0
    %1781 = vmatpush1.msra.mxu0 0.0
    %1782 = vmatprep.subr.mxu0 0.0
    %1783 = vmatpush1.msra.mxu0 0.0
    %1784 = vmatprep.subr.mxu0 0.0
    %1785 = vmatpush1.msra.mxu0 0.0
    %1786 = vmatprep.subr.mxu0 0.0
    %1787 = vmatpush1.msra.mxu0 0.0
    %1788 = vmatprep.subr.mxu0 0.0
    %1789 = vmatpush1.msra.mxu0 0.0
    %1790 = vmatprep.subr.mxu0 0.0
    %1791 = vmatpush1.msra.mxu0 0.0
    %1792 = vmatprep.subr.mxu0 0.0
    %1793 = vmatpush1.msra.mxu0 0.0
    %1794 = vmatprep.subr.mxu0 0.0
    %1795 = vmatpush1.msra.mxu0 0.0
    %1796 = vmatprep.subr.mxu0 0.0
    %1797 = vmatpush1.msra.mxu0 0.0
    %1798 = vmatprep.subr.mxu0 0.0
    %1799 = vmatpush1.msra.mxu0 0.0
    %1800 = vmatprep.mubr.f32.mxu0 0.0
    %1801 = vmatmul.mubr.f32.gmra.mrb[0].mxu0 %v1644
    %v1802 = vpop.f32.mrb[0].mxu0
    %v1803 = vadd.f32 0.0, %v1802
    %v1804 = vpop.f32.mrb[0].mxu0
    %1805 = vmatprep.mubr.f32.mxu0 0.0
    %1806 = vmatmul.mubr.f32.gmra.mrb[0].mxu0 %v1646
    %v1807 = vpop.f32.mrb[0].mxu0
    %v1808 = vadd.f32 0.0, %v1807
    %v1809 = vpop.f32.mrb[0].mxu0
    %1810 = vmatprep.mubr.f32.mxu0 0.0
    %1811 = vmatmul.mubr.f32.gmra.mrb[0].mxu0 %v1648
    %v1812 = vpop.f32.mrb[0].mxu0
    %v1813 = vadd.f32 0.0, %v1812
    %v1814 = vpop.f32.mrb[0].mxu0
    %1815 = vmatprep.mubr.f32.mxu0 0.0
    %1816 = vmatmul.mubr.f32.gmra.mrb[0].mxu0 %v1650
    %v1817 = vpop.f32.mrb[0].mxu0
    %v1818 = vadd.f32 0.0, %v1817
    %v1819 = vpop.f32.mrb[0].mxu0
    %1820 = vdwg.mxu0
    %v1821 = vmax.f32 %v1803, 1e-30
    %v1822 = vmax.f32 %v1808, 1e-30
    %v1823 = vmax.f32 %v1813, 1e-30
    %v1824 = vmax.f32 %v1818, 1e-30
    %v1825 = vrcp.pop %v1821
    %v1826 = vrcp.pop %v1822
    %v1827 = vrcp.pop %v1823
    %v1828 = vrcp.pop %v1824
    %v1829 = vmul.f32 %v1718, %v1825
    %v1830 = vmul.f32 %v1723, %v1826
    %v1831 = vmul.f32 %v1728, %v1827
    %v1832 = vmul.f32 %v1733, %v1828
    %s1833 = scalar_lea.vmem %s6, 128
    %v1834 = vld [vmem:[%s1833] sm:$0xff]
    %v1835 = vld [vmem:[%s1833 + $0x8] sm:$0xff]
    %v1836 = vld [vmem:[%s1833 + $0x10] sm:$0xff]
    %v1837 = vld [vmem:[%s1833 + $0x18] sm:$0xff]
    %v1838 = vld [vmem:[%s1833 + $0x20] sm:$0xff]
    %v1839 = vld [vmem:[%s1833 + $0x28] sm:$0xff]
    %v1840 = vld [vmem:[%s1833 + $0x30] sm:$0xff]
    %v1841 = vld [vmem:[%s1833 + $0x38] sm:$0xff]
    %v1842 = vld [vmem:[%s1833 + $0x40] sm:$0xff]
    %v1843 = vld [vmem:[%s1833 + $0x48] sm:$0xff]
    %v1844 = vld [vmem:[%s1833 + $0x50] sm:$0xff]
    %v1845 = vld [vmem:[%s1833 + $0x58] sm:$0xff]
    %v1846 = vld [vmem:[%s1833 + $0x60] sm:$0xff]
    %v1847 = vld [vmem:[%s1833 + $0x68] sm:$0xff]
    %v1848 = vld [vmem:[%s1833 + $0x70] sm:$0xff]
    %v1849 = vld [vmem:[%s1833 + $0x78] sm:$0xff]
    %s1850 = scalar_lea.vmem %s4, 33
    %v1851 = vld [vmem:[%s1850] sm:$0x7]
    %v1853 = vlaneseq
    %v1854 = vshrl.u32 %v1853, 7
    %v1855 = vsub.s32 0, %v1854
    %v1856 = vrot.slane %v1851, %v1855
    %1858 = vmatprep.subr.mxu0 0.0
    %1859 = vmatpush1.msra.mxu0 %v1834
    %1860 = vmatprep.subr.mxu0 0.0
    %1861 = vmatpush1.msra.mxu0 %v1835
    %1862 = vmatprep.subr.mxu0 0.0
    %1863 = vmatpush1.msra.mxu0 %v1836
    %1864 = vmatprep.subr.mxu0 0.0
    %1865 = vmatpush1.msra.mxu0 %v1837
    %1866 = vmatprep.subr.mxu0 0.0
    %1867 = vmatpush1.msra.mxu0 %v1838
    %1868 = vmatprep.subr.mxu0 0.0
    %1869 = vmatpush1.msra.mxu0 %v1839
    %1870 = vmatprep.subr.mxu0 0.0
    %1871 = vmatpush1.msra.mxu0 %v1840
    %1872 = vmatprep.subr.mxu0 0.0
    %1873 = vmatpush1.msra.mxu0 %v1841
    %1874 = vmatprep.subr.mxu0 0.0
    %1875 = vmatpush1.msra.mxu0 %v1842
    %1876 = vmatprep.subr.mxu0 0.0
    %1877 = vmatpush1.msra.mxu0 %v1843
    %1878 = vmatprep.subr.mxu0 0.0
    %1879 = vmatpush1.msra.mxu0 %v1844
    %1880 = vmatprep.subr.mxu0 0.0
    %1881 = vmatpush1.msra.mxu0 %v1845
    %1882 = vmatprep.subr.mxu0 0.0
    %1883 = vmatpush1.msra.mxu0 %v1846
    %1884 = vmatprep.subr.mxu0 0.0
    %1885 = vmatpush1.msra.mxu0 %v1847
    %1886 = vmatprep.subr.mxu0 0.0
    %1887 = vmatpush1.msra.mxu0 %v1848
    %1888 = vmatprep.subr.mxu0 0.0
    %1889 = vmatpush1.msra.mxu0 %v1849
    %1890 = vmatprep.subr.mxu0 0.0
    %1891 = vmatpush1.msra.mxu0 0.0
    %1892 = vmatprep.subr.mxu0 0.0
    %1893 = vmatpush1.msra.mxu0 0.0
    %1894 = vmatprep.subr.mxu0 0.0
    %1895 = vmatpush1.msra.mxu0 0.0
    %1896 = vmatprep.subr.mxu0 0.0
    %1897 = vmatpush1.msra.mxu0 0.0
    %1898 = vmatprep.subr.mxu0 0.0
    %1899 = vmatpush1.msra.mxu0 0.0
    %1900 = vmatprep.subr.mxu0 0.0
    %1901 = vmatpush1.msra.mxu0 0.0
    %1902 = vmatprep.subr.mxu0 0.0
    %1903 = vmatpush1.msra.mxu0 0.0
    %1904 = vmatprep.subr.mxu0 0.0
    %1905 = vmatpush1.msra.mxu0 0.0
    %1906 = vmatprep.subr.mxu0 0.0
    %1907 = vmatpush1.msra.mxu0 0.0
    %1908 = vmatprep.subr.mxu0 0.0
    %1909 = vmatpush1.msra.mxu0 0.0
    %1910 = vmatprep.subr.mxu0 0.0
    %1911 = vmatpush1.msra.mxu0 0.0
    %1912 = vmatprep.subr.mxu0 0.0
    %1913 = vmatpush1.msra.mxu0 0.0
    %1914 = vmatprep.subr.mxu0 0.0
    %1915 = vmatpush1.msra.mxu0 0.0
    %1916 = vmatprep.subr.mxu0 0.0
    %1917 = vmatpush1.msra.mxu0 0.0
    %1918 = vmatprep.subr.mxu0 0.0
    %1919 = vmatpush1.msra.mxu0 0.0
    %1920 = vmatprep.subr.mxu0 0.0
    %1921 = vmatpush1.msra.mxu0 0.0
    %1922 = vmatprep.mubr.f32.mxu0 0.0
    %1923 = vmatmul.mubr.f32.gmra.mrb[0].mxu0 %v1829
    %v1924 = vpop.f32.mrb[0].mxu0
    %v1925 = vadd.f32 %v1856, %v1924
    %v1926 = vpop.f32.mrb[0].mxu0
    %1927 = vmatprep.mubr.f32.mxu0 0.0
    %1928 = vmatmul.mubr.f32.gmra.mrb[0].mxu0 %v1830
    %v1929 = vpop.f32.mrb[0].mxu0
    %v1930 = vadd.f32 %v1856, %v1929
    %v1931 = vpop.f32.mrb[0].mxu0
    %1932 = vmatprep.mubr.f32.mxu0 0.0
    %1933 = vmatmul.mubr.f32.gmra.mrb[0].mxu0 %v1831
    %v1934 = vpop.f32.mrb[0].mxu0
    %v1935 = vadd.f32 %v1856, %v1934
    %v1936 = vpop.f32.mrb[0].mxu0
    %1937 = vmatprep.mubr.f32.mxu0 0.0
    %1938 = vmatmul.mubr.f32.gmra.mrb[0].mxu0 %v1832
    %v1939 = vpop.f32.mrb[0].mxu0
    %v1940 = vadd.f32 %v1856, %v1939
    %v1941 = vpop.f32.mrb[0].mxu0
    %1942 = vdwg.mxu0
    %v1943 = vadd.f32 %v1925, %v1269
    %v1944 = vadd.f32 %v1930, %v1270
    %v1945 = vadd.f32 %v1935, %v1271
    %v1946 = vadd.f32 %v1940, %v1272
    %s1947 = scalar_lea.vmem %s4, 36
    %v1948 = vld [vmem:[%s1947] sm:$0x7]
    %s1949 = scalar_lea.vmem %s4, 39
    %v1950 = vld [vmem:[%s1949] sm:$0x7]
    %1951 = vadd.xlane.f32.xlu0 %v1943
    %v1952 = vpop.xlane.xlu0 %1951
    %1953 = vadd.xlane.f32.xlu0 %v1944
    %v1954 = vpop.xlane.xlu0 %1953
    %1955 = vadd.xlane.f32.xlu0 %v1945
    %v1956 = vpop.xlane.xlu0 %1955
    %1957 = vadd.xlane.f32.xlu0 %v1946
    %v1958 = vpop.xlane.xlu0 %1957
    %v1959 = vmul.f32 %v1952, %v53
    %v1960 = vmul.f32 %v1954, %v53
    %v1961 = vmul.f32 %v1956, %v53
    %v1962 = vmul.f32 %v1958, %v53
    %v1963 = vsub.f32 %v1943, %v1959
    %v1964 = vsub.f32 %v1944, %v1960
    %v1965 = vsub.f32 %v1945, %v1961
    %v1966 = vsub.f32 %v1946, %v1962
    %v1967 = vmul.f32 %v1963, %v1963
    %v1968 = vmul.f32 %v1964, %v1964
    %v1969 = vmul.f32 %v1965, %v1965
    %v1970 = vmul.f32 %v1966, %v1966
    %1971 = vadd.xlane.f32.xlu0 %v1967
    %v1972 = vpop.xlane.xlu0 %1971
    %1973 = vadd.xlane.f32.xlu0 %v1968
    %v1974 = vpop.xlane.xlu0 %1973
    %1975 = vadd.xlane.f32.xlu0 %v1969
    %v1976 = vpop.xlane.xlu0 %1975
    %1977 = vadd.xlane.f32.xlu0 %v1970
    %v1978 = vpop.xlane.xlu0 %1977
    %v1979 = vmul.f32 %v1972, %v53
    %v1980 = vmul.f32 %v1974, %v53
    %v1981 = vmul.f32 %v1976, %v53
    %v1982 = vmul.f32 %v1978, %v53
    %v1983 = vadd.f32 %v1979, 1e-05
    %v1984 = vadd.f32 %v1980, 1e-05
    %v1985 = vadd.f32 %v1981, 1e-05
    %v1986 = vadd.f32 %v1982, 1e-05
    %v1987 = vrsqrt.pop %v1983
    %v1988 = vrsqrt.pop %v1984
    %v1989 = vrsqrt.pop %v1985
    %v1990 = vrsqrt.pop %v1986
    %v1991 = vmul.f32 %v1963, %v1987
    %v1992 = vmul.f32 %v1964, %v1988
    %v1993 = vmul.f32 %v1965, %v1989
    %v1994 = vmul.f32 %v1966, %v1990
    %v1996 = vlaneseq
    %v1997 = vshrl.u32 %v1996, 7
    %v1998 = vsub.s32 0, %v1997
    %v1999 = vrot.slane %v1948, %v1998
    %v2001 = vmul.f32 %v1991, %v1999
    %v2002 = vmul.f32 %v1992, %v1999
    %v2003 = vmul.f32 %v1993, %v1999
    %v2004 = vmul.f32 %v1994, %v1999
    %v2006 = vlaneseq
    %v2007 = vshrl.u32 %v2006, 7
    %v2008 = vsub.s32 0, %v2007
    %v2009 = vrot.slane %v1950, %v2008
    %v2011 = vadd.f32 %v2001, %v2009
    %v2012 = vadd.f32 %v2002, %v2009
    %v2013 = vadd.f32 %v2003, %v2009
    %v2014 = vadd.f32 %v2004, %v2009
    %s2015 = scalar_lea.vmem %s7, 256
    %v2016 = vld [vmem:[%s2015] sm:$0xff]
    %v2017 = vld [vmem:[%s2015 + $0x8] sm:$0xff]
    %v2018 = vld [vmem:[%s2015 + $0x10] sm:$0xff]
    %v2019 = vld [vmem:[%s2015 + $0x18] sm:$0xff]
    %v2020 = vld [vmem:[%s2015 + $0x20] sm:$0xff]
    %v2021 = vld [vmem:[%s2015 + $0x28] sm:$0xff]
    %v2022 = vld [vmem:[%s2015 + $0x30] sm:$0xff]
    %v2023 = vld [vmem:[%s2015 + $0x38] sm:$0xff]
    %v2024 = vld [vmem:[%s2015 + $0x40] sm:$0xff]
    %v2025 = vld [vmem:[%s2015 + $0x48] sm:$0xff]
    %v2026 = vld [vmem:[%s2015 + $0x50] sm:$0xff]
    %v2027 = vld [vmem:[%s2015 + $0x58] sm:$0xff]
    %v2028 = vld [vmem:[%s2015 + $0x60] sm:$0xff]
    %v2029 = vld [vmem:[%s2015 + $0x68] sm:$0xff]
    %v2030 = vld [vmem:[%s2015 + $0x70] sm:$0xff]
    %v2031 = vld [vmem:[%s2015 + $0x78] sm:$0xff]
    %v2032 = vld [vmem:[%s2015 + $0x80] sm:$0xff]
    %v2033 = vld [vmem:[%s2015 + $0x88] sm:$0xff]
    %v2034 = vld [vmem:[%s2015 + $0x90] sm:$0xff]
    %v2035 = vld [vmem:[%s2015 + $0x98] sm:$0xff]
    %v2036 = vld [vmem:[%s2015 + $0xa0] sm:$0xff]
    %v2037 = vld [vmem:[%s2015 + $0xa8] sm:$0xff]
    %v2038 = vld [vmem:[%s2015 + $0xb0] sm:$0xff]
    %v2039 = vld [vmem:[%s2015 + $0xb8] sm:$0xff]
    %v2040 = vld [vmem:[%s2015 + $0xc0] sm:$0xff]
    %v2041 = vld [vmem:[%s2015 + $0xc8] sm:$0xff]
    %v2042 = vld [vmem:[%s2015 + $0xd0] sm:$0xff]
    %v2043 = vld [vmem:[%s2015 + $0xd8] sm:$0xff]
    %v2044 = vld [vmem:[%s2015 + $0xe0] sm:$0xff]
    %v2045 = vld [vmem:[%s2015 + $0xe8] sm:$0xff]
    %v2046 = vld [vmem:[%s2015 + $0xf0] sm:$0xff]
    %v2047 = vld [vmem:[%s2015 + $0xf8] sm:$0xff]
    %s2048 = scalar_lea.vmem %s4, 42
    %v2049 = vld [vmem:[%s2048] sm:$0x7]
    %v2051 = vlaneseq
    %v2052 = vshrl.u32 %v2051, 7
    %v2053 = vsub.s32 0, %v2052
    %v2054 = vrot.slane %v2049, %v2053
    %v2055 = vlaneseq
    %v2056 = vshrl.u32 %v2055, 7
    %v2057 = vsub.s32 1, %v2056
    %v2058 = vrot.slane %v2049, %v2057
    %2061 = vmatprep.subr.mxu0 %v2017
    %2062 = vmatpush1.msra.mxu0 %v2016
    %2063 = vmatprep.subr.mxu0 %v2019
    %2064 = vmatpush1.msra.mxu0 %v2018
    %2065 = vmatprep.subr.mxu0 %v2021
    %2066 = vmatpush1.msra.mxu0 %v2020
    %2067 = vmatprep.subr.mxu0 %v2023
    %2068 = vmatpush1.msra.mxu0 %v2022
    %2069 = vmatprep.subr.mxu0 %v2025
    %2070 = vmatpush1.msra.mxu0 %v2024
    %2071 = vmatprep.subr.mxu0 %v2027
    %2072 = vmatpush1.msra.mxu0 %v2026
    %2073 = vmatprep.subr.mxu0 %v2029
    %2074 = vmatpush1.msra.mxu0 %v2028
    %2075 = vmatprep.subr.mxu0 %v2031
    %2076 = vmatpush1.msra.mxu0 %v2030
    %2077 = vmatprep.subr.mxu0 %v2033
    %2078 = vmatpush1.msra.mxu0 %v2032
    %2079 = vmatprep.subr.mxu0 %v2035
    %2080 = vmatpush1.msra.mxu0 %v2034
    %2081 = vmatprep.subr.mxu0 %v2037
    %2082 = vmatpush1.msra.mxu0 %v2036
    %2083 = vmatprep.subr.mxu0 %v2039
    %2084 = vmatpush1.msra.mxu0 %v2038
    %2085 = vmatprep.subr.mxu0 %v2041
    %2086 = vmatpush1.msra.mxu0 %v2040
    %2087 = vmatprep.subr.mxu0 %v2043
    %2088 = vmatpush1.msra.mxu0 %v2042
    %2089 = vmatprep.subr.mxu0 %v2045
    %2090 = vmatpush1.msra.mxu0 %v2044
    %2091 = vmatprep.subr.mxu0 %v2047
    %2092 = vmatpush1.msra.mxu0 %v2046
    %2093 = vmatprep.subr.mxu0 0.0
    %2094 = vmatpush1.msra.mxu0 0.0
    %2095 = vmatprep.subr.mxu0 0.0
    %2096 = vmatpush1.msra.mxu0 0.0
    %2097 = vmatprep.subr.mxu0 0.0
    %2098 = vmatpush1.msra.mxu0 0.0
    %2099 = vmatprep.subr.mxu0 0.0
    %2100 = vmatpush1.msra.mxu0 0.0
    %2101 = vmatprep.subr.mxu0 0.0
    %2102 = vmatpush1.msra.mxu0 0.0
    %2103 = vmatprep.subr.mxu0 0.0
    %2104 = vmatpush1.msra.mxu0 0.0
    %2105 = vmatprep.subr.mxu0 0.0
    %2106 = vmatpush1.msra.mxu0 0.0
    %2107 = vmatprep.subr.mxu0 0.0
    %2108 = vmatpush1.msra.mxu0 0.0
    %2109 = vmatprep.subr.mxu0 0.0
    %2110 = vmatpush1.msra.mxu0 0.0
    %2111 = vmatprep.subr.mxu0 0.0
    %2112 = vmatpush1.msra.mxu0 0.0
    %2113 = vmatprep.subr.mxu0 0.0
    %2114 = vmatpush1.msra.mxu0 0.0
    %2115 = vmatprep.subr.mxu0 0.0
    %2116 = vmatpush1.msra.mxu0 0.0
    %2117 = vmatprep.subr.mxu0 0.0
    %2118 = vmatpush1.msra.mxu0 0.0
    %2119 = vmatprep.subr.mxu0 0.0
    %2120 = vmatpush1.msra.mxu0 0.0
    %2121 = vmatprep.subr.mxu0 0.0
    %2122 = vmatpush1.msra.mxu0 0.0
    %2123 = vmatprep.subr.mxu0 0.0
    %2124 = vmatpush1.msra.mxu0 0.0
    %2125 = vmatprep.mubr.f32.mxu0 0.0
    %2126 = vmatmul.mubr.f32.gmra.mrb[0].mxu0 %v2011
    %v2127 = vpop.f32.mrb[0].mxu0
    %v2128 = vadd.f32 %v2054, %v2127
    %v2129 = vpop.f32.mrb[0].mxu0
    %v2130 = vadd.f32 %v2058, %v2129
    %2131 = vmatprep.mubr.f32.mxu0 0.0
    %2132 = vmatmul.mubr.f32.gmra.mrb[0].mxu0 %v2012
    %v2133 = vpop.f32.mrb[0].mxu0
    %v2134 = vadd.f32 %v2054, %v2133
    %v2135 = vpop.f32.mrb[0].mxu0
    %v2136 = vadd.f32 %v2058, %v2135
    %2137 = vmatprep.mubr.f32.mxu0 0.0
    %2138 = vmatmul.mubr.f32.gmra.mrb[0].mxu0 %v2013
    %v2139 = vpop.f32.mrb[0].mxu0
    %v2140 = vadd.f32 %v2054, %v2139
    %v2141 = vpop.f32.mrb[0].mxu0
    %v2142 = vadd.f32 %v2058, %v2141
    %2143 = vmatprep.mubr.f32.mxu0 0.0
    %2144 = vmatmul.mubr.f32.gmra.mrb[0].mxu0 %v2014
    %v2145 = vpop.f32.mrb[0].mxu0
    %v2146 = vadd.f32 %v2054, %v2145
    %v2147 = vpop.f32.mrb[0].mxu0
    %v2148 = vadd.f32 %v2058, %v2147
    %2149 = vdwg.mxu0
    %v2150 = vmul.f32 %v2128, 0.5
    %v2151 = vmul.f32 %v2130, 0.5
    %v2152 = vmul.f32 %v2134, 0.5
    %v2153 = vmul.f32 %v2136, 0.5
    %v2154 = vmul.f32 %v2140, 0.5
    %v2155 = vmul.f32 %v2142, 0.5
    %v2156 = vmul.f32 %v2146, 0.5
    %v2157 = vmul.f32 %v2148, 0.5
    %v2158 = vmul.f32 %v2128, 0.044715
    %v2159 = vmul.f32 %v2130, 0.044715
    %v2160 = vmul.f32 %v2134, 0.044715
    %v2161 = vmul.f32 %v2136, 0.044715
    %v2162 = vmul.f32 %v2140, 0.044715
    %v2163 = vmul.f32 %v2142, 0.044715
    %v2164 = vmul.f32 %v2146, 0.044715
    %v2165 = vmul.f32 %v2148, 0.044715
    %v2166 = vmul.f32 %v2158, %v2128
    %v2167 = vmul.f32 %v2159, %v2130
    %v2168 = vmul.f32 %v2160, %v2134
    %v2169 = vmul.f32 %v2161, %v2136
    %v2170 = vmul.f32 %v2162, %v2140
    %v2171 = vmul.f32 %v2163, %v2142
    %v2172 = vmul.f32 %v2164, %v2146
    %v2173 = vmul.f32 %v2165, %v2148
    %v2174 = vmul.f32 %v2166, %v2128
    %v2175 = vmul.f32 %v2167, %v2130
    %v2176 = vmul.f32 %v2168, %v2134
    %v2177 = vmul.f32 %v2169, %v2136
    %v2178 = vmul.f32 %v2170, %v2140
    %v2179 = vmul.f32 %v2171, %v2142
    %v2180 = vmul.f32 %v2172, %v2146
    %v2181 = vmul.f32 %v2173, %v2148
    %v2182 = vadd.f32 %v2128, %v2174
    %v2183 = vadd.f32 %v2130, %v2175
    %v2184 = vadd.f32 %v2134, %v2176
    %v2185 = vadd.f32 %v2136, %v2177
    %v2186 = vadd.f32 %v2140, %v2178
    %v2187 = vadd.f32 %v2142, %v2179
    %v2188 = vadd.f32 %v2146, %v2180
    %v2189 = vadd.f32 %v2148, %v2181
    %v2190 = vmul.f32 %v2182, 0.7978846
    %v2191 = vmul.f32 %v2183, 0.7978846
    %v2192 = vmul.f32 %v2184, 0.7978846
    %v2193 = vmul.f32 %v2185, 0.7978846
    %v2194 = vmul.f32 %v2186, 0.7978846
    %v2195 = vmul.f32 %v2187, 0.7978846
    %v2196 = vmul.f32 %v2188, 0.7978846
    %v2197 = vmul.f32 %v2189, 0.7978846
    %v2198 = vtanh.pop %v2190
    %v2199 = vtanh.pop %v2191
    %v2200 = vtanh.pop %v2192
    %v2201 = vtanh.pop %v2193
    %v2202 = vtanh.pop %v2194
    %v2203 = vtanh.pop %v2195
    %v2204 = vtanh.pop %v2196
    %v2205 = vtanh.pop %v2197
    %v2206 = vadd.f32 %v2198, 1.0
    %v2207 = vadd.f32 %v2199, 1.0
    %v2208 = vadd.f32 %v2200, 1.0
    %v2209 = vadd.f32 %v2201, 1.0
    %v2210 = vadd.f32 %v2202, 1.0
    %v2211 = vadd.f32 %v2203, 1.0
    %v2212 = vadd.f32 %v2204, 1.0
    %v2213 = vadd.f32 %v2205, 1.0
    %v2214 = vmul.f32 %v2150, %v2206
    %v2215 = vmul.f32 %v2151, %v2207
    %v2216 = vmul.f32 %v2152, %v2208
    %v2217 = vmul.f32 %v2153, %v2209
    %v2218 = vmul.f32 %v2154, %v2210
    %v2219 = vmul.f32 %v2155, %v2211
    %v2220 = vmul.f32 %v2156, %v2212
    %v2221 = vmul.f32 %v2157, %v2213
    %s2222 = scalar_lea.vmem %s8, 256
    %v2223 = vld [vmem:[%s2222] sm:$0xff]
    %v2224 = vld [vmem:[%s2222 + $0x8] sm:$0xff]
    %v2225 = vld [vmem:[%s2222 + $0x10] sm:$0xff]
    %v2226 = vld [vmem:[%s2222 + $0x18] sm:$0xff]
    %v2227 = vld [vmem:[%s2222 + $0x20] sm:$0xff]
    %v2228 = vld [vmem:[%s2222 + $0x28] sm:$0xff]
    %v2229 = vld [vmem:[%s2222 + $0x30] sm:$0xff]
    %v2230 = vld [vmem:[%s2222 + $0x38] sm:$0xff]
    %v2231 = vld [vmem:[%s2222 + $0x40] sm:$0xff]
    %v2232 = vld [vmem:[%s2222 + $0x48] sm:$0xff]
    %v2233 = vld [vmem:[%s2222 + $0x50] sm:$0xff]
    %v2234 = vld [vmem:[%s2222 + $0x58] sm:$0xff]
    %v2235 = vld [vmem:[%s2222 + $0x60] sm:$0xff]
    %v2236 = vld [vmem:[%s2222 + $0x68] sm:$0xff]
    %v2237 = vld [vmem:[%s2222 + $0x70] sm:$0xff]
    %v2238 = vld [vmem:[%s2222 + $0x78] sm:$0xff]
    %v2239 = vld [vmem:[%s2222 + $0x80] sm:$0xff]
    %v2240 = vld [vmem:[%s2222 + $0x88] sm:$0xff]
    %v2241 = vld [vmem:[%s2222 + $0x90] sm:$0xff]
    %v2242 = vld [vmem:[%s2222 + $0x98] sm:$0xff]
    %v2243 = vld [vmem:[%s2222 + $0xa0] sm:$0xff]
    %v2244 = vld [vmem:[%s2222 + $0xa8] sm:$0xff]
    %v2245 = vld [vmem:[%s2222 + $0xb0] sm:$0xff]
    %v2246 = vld [vmem:[%s2222 + $0xb8] sm:$0xff]
    %v2247 = vld [vmem:[%s2222 + $0xc0] sm:$0xff]
    %v2248 = vld [vmem:[%s2222 + $0xc8] sm:$0xff]
    %v2249 = vld [vmem:[%s2222 + $0xd0] sm:$0xff]
    %v2250 = vld [vmem:[%s2222 + $0xd8] sm:$0xff]
    %v2251 = vld [vmem:[%s2222 + $0xe0] sm:$0xff]
    %v2252 = vld [vmem:[%s2222 + $0xe8] sm:$0xff]
    %v2253 = vld [vmem:[%s2222 + $0xf0] sm:$0xff]
    %v2254 = vld [vmem:[%s2222 + $0xf8] sm:$0xff]
    %s2255 = scalar_lea.vmem %s4, 45
    %v2256 = vld [vmem:[%s2255] sm:$0x7]
    %v2258 = vlaneseq
    %v2259 = vshrl.u32 %v2258, 7
    %v2260 = vsub.s32 0, %v2259
    %v2261 = vrot.slane %v2256, %v2260
    %2263 = vmatprep.subr.mxu0 0.0
    %2264 = vmatpush1.msra.mxu0 %v2223
    %2265 = vmatprep.subr.mxu0 0.0
    %2266 = vmatpush1.msra.mxu0 %v2224
    %2267 = vmatprep.subr.mxu0 0.0
    %2268 = vmatpush1.msra.mxu0 %v2225
    %2269 = vmatprep.subr.mxu0 0.0
    %2270 = vmatpush1.msra.mxu0 %v2226
    %2271 = vmatprep.subr.mxu0 0.0
    %2272 = vmatpush1.msra.mxu0 %v2227
    %2273 = vmatprep.subr.mxu0 0.0
    %2274 = vmatpush1.msra.mxu0 %v2228
    %2275 = vmatprep.subr.mxu0 0.0
    %2276 = vmatpush1.msra.mxu0 %v2229
    %2277 = vmatprep.subr.mxu0 0.0
    %2278 = vmatpush1.msra.mxu0 %v2230
    %2279 = vmatprep.subr.mxu0 0.0
    %2280 = vmatpush1.msra.mxu0 %v2231
    %2281 = vmatprep.subr.mxu0 0.0
    %2282 = vmatpush1.msra.mxu0 %v2232
    %2283 = vmatprep.subr.mxu0 0.0
    %2284 = vmatpush1.msra.mxu0 %v2233
    %2285 = vmatprep.subr.mxu0 0.0
    %2286 = vmatpush1.msra.mxu0 %v2234
    %2287 = vmatprep.subr.mxu0 0.0
    %2288 = vmatpush1.msra.mxu0 %v2235
    %2289 = vmatprep.subr.mxu0 0.0
    %2290 = vmatpush1.msra.mxu0 %v2236
    %2291 = vmatprep.subr.mxu0 0.0
    %2292 = vmatpush1.msra.mxu0 %v2237
    %2293 = vmatprep.subr.mxu0 0.0
    %2294 = vmatpush1.msra.mxu0 %v2238
    %2295 = vmatprep.subr.mxu0 0.0
    %2296 = vmatpush1.msra.mxu0 %v2239
    %2297 = vmatprep.subr.mxu0 0.0
    %2298 = vmatpush1.msra.mxu0 %v2240
    %2299 = vmatprep.subr.mxu0 0.0
    %2300 = vmatpush1.msra.mxu0 %v2241
    %2301 = vmatprep.subr.mxu0 0.0
    %2302 = vmatpush1.msra.mxu0 %v2242
    %2303 = vmatprep.subr.mxu0 0.0
    %2304 = vmatpush1.msra.mxu0 %v2243
    %2305 = vmatprep.subr.mxu0 0.0
    %2306 = vmatpush1.msra.mxu0 %v2244
    %2307 = vmatprep.subr.mxu0 0.0
    %2308 = vmatpush1.msra.mxu0 %v2245
    %2309 = vmatprep.subr.mxu0 0.0
    %2310 = vmatpush1.msra.mxu0 %v2246
    %2311 = vmatprep.subr.mxu0 0.0
    %2312 = vmatpush1.msra.mxu0 %v2247
    %2313 = vmatprep.subr.mxu0 0.0
    %2314 = vmatpush1.msra.mxu0 %v2248
    %2315 = vmatprep.subr.mxu0 0.0
    %2316 = vmatpush1.msra.mxu0 %v2249
    %2317 = vmatprep.subr.mxu0 0.0
    %2318 = vmatpush1.msra.mxu0 %v2250
    %2319 = vmatprep.subr.mxu0 0.0
    %2320 = vmatpush1.msra.mxu0 %v2251
    %2321 = vmatprep.subr.mxu0 0.0
    %2322 = vmatpush1.msra.mxu0 %v2252
    %2323 = vmatprep.subr.mxu0 0.0
    %2324 = vmatpush1.msra.mxu0 %v2253
    %2325 = vmatprep.subr.mxu0 0.0
    %2326 = vmatpush1.msra.mxu0 %v2254
    %2327 = vmatprep.mubr.f32.mxu0 %v2215
    %2328 = vmatmul.mubr.f32.gmra.mrb[0].mxu0 %v2214
    %v2329 = vpop.f32.mrb[0].mxu0
    %v2330 = vadd.f32 %v2261, %v2329
    %v2331 = vpop.f32.mrb[0].mxu0
    %2332 = vmatprep.mubr.f32.mxu0 %v2217
    %2333 = vmatmul.mubr.f32.gmra.mrb[0].mxu0 %v2216
    %v2334 = vpop.f32.mrb[0].mxu0
    %v2335 = vadd.f32 %v2261, %v2334
    %v2336 = vpop.f32.mrb[0].mxu0
    %2337 = vmatprep.mubr.f32.mxu0 %v2219
    %2338 = vmatmul.mubr.f32.gmra.mrb[0].mxu0 %v2218
    %v2339 = vpop.f32.mrb[0].mxu0
    %v2340 = vadd.f32 %v2261, %v2339
    %v2341 = vpop.f32.mrb[0].mxu0
    %2342 = vmatprep.mubr.f32.mxu0 %v2221
    %2343 = vmatmul.mubr.f32.gmra.mrb[0].mxu0 %v2220
    %v2344 = vpop.f32.mrb[0].mxu0
    %v2345 = vadd.f32 %v2261, %v2344
    %v2346 = vpop.f32.mrb[0].mxu0
    %2347 = vdwg.mxu0
    %v2348 = vadd.f32 %v2330, %v2011
    %v2349 = vadd.f32 %v2335, %v2012
    %v2350 = vadd.f32 %v2340, %v2013
    %v2351 = vadd.f32 %v2345, %v2014
    %s2352 = scalar_lea.vmem %s4, 48
    %v2353 = vld [vmem:[%s2352] sm:$0x7]
    %s2354 = scalar_lea.vmem %s4, 51
    %v2355 = vld [vmem:[%s2354] sm:$0x7]
    %2356 = vadd.xlane.f32.xlu0 %v2348
    %v2357 = vpop.xlane.xlu0 %2356
    %2358 = vadd.xlane.f32.xlu0 %v2349
    %v2359 = vpop.xlane.xlu0 %2358
    %2360 = vadd.xlane.f32.xlu0 %v2350
    %v2361 = vpop.xlane.xlu0 %2360
    %2362 = vadd.xlane.f32.xlu0 %v2351
    %v2363 = vpop.xlane.xlu0 %2362
    %v2364 = vmul.f32 %v2357, %v53
    %v2365 = vmul.f32 %v2359, %v53
    %v2366 = vmul.f32 %v2361, %v53
    %v2367 = vmul.f32 %v2363, %v53
    %v2368 = vsub.f32 %v2348, %v2364
    %v2369 = vsub.f32 %v2349, %v2365
    %v2370 = vsub.f32 %v2350, %v2366
    %v2371 = vsub.f32 %v2351, %v2367
    %v2372 = vmul.f32 %v2368, %v2368
    %v2373 = vmul.f32 %v2369, %v2369
    %v2374 = vmul.f32 %v2370, %v2370
    %v2375 = vmul.f32 %v2371, %v2371
    %2376 = vadd.xlane.f32.xlu0 %v2372
    %v2377 = vpop.xlane.xlu0 %2376
    %2378 = vadd.xlane.f32.xlu0 %v2373
    %v2379 = vpop.xlane.xlu0 %2378
    %2380 = vadd.xlane.f32.xlu0 %v2374
    %v2381 = vpop.xlane.xlu0 %2380
    %2382 = vadd.xlane.f32.xlu0 %v2375
    %v2383 = vpop.xlane.xlu0 %2382
    %v2384 = vmul.f32 %v2377, %v53
    %v2385 = vmul.f32 %v2379, %v53
    %v2386 = vmul.f32 %v2381, %v53
    %v2387 = vmul.f32 %v2383, %v53
    %v2388 = vadd.f32 %v2384, 1e-05
    %v2389 = vadd.f32 %v2385, 1e-05
    %v2390 = vadd.f32 %v2386, 1e-05
    %v2391 = vadd.f32 %v2387, 1e-05
    %v2392 = vrsqrt.pop %v2388
    %v2393 = vrsqrt.pop %v2389
    %v2394 = vrsqrt.pop %v2390
    %v2395 = vrsqrt.pop %v2391
    %v2396 = vmul.f32 %v2368, %v2392
    %v2397 = vmul.f32 %v2369, %v2393
    %v2398 = vmul.f32 %v2370, %v2394
    %v2399 = vmul.f32 %v2371, %v2395
    %v2401 = vlaneseq
    %v2402 = vshrl.u32 %v2401, 7
    %v2403 = vsub.s32 0, %v2402
    %v2404 = vrot.slane %v2353, %v2403
    %v2406 = vmul.f32 %v2396, %v2404
    %v2407 = vmul.f32 %v2397, %v2404
    %v2408 = vmul.f32 %v2398, %v2404
    %v2409 = vmul.f32 %v2399, %v2404
    %v2411 = vlaneseq
    %v2412 = vshrl.u32 %v2411, 7
    %v2413 = vsub.s32 0, %v2412
    %v2414 = vrot.slane %v2355, %v2413
    %v2416 = vadd.f32 %v2406, %v2414
    %v2417 = vadd.f32 %v2407, %v2414
    %v2418 = vadd.f32 %v2408, %v2414
    %v2419 = vadd.f32 %v2409, %v2414
    %v2420 = vld [vmem:[%s9] sm:$0xff]
    %v2421 = vld [vmem:[%s9 + $0x8] sm:$0xff]
    %v2422 = vld [vmem:[%s9 + $0x10] sm:$0xff]
    %v2423 = vld [vmem:[%s9 + $0x18] sm:$0xff]
    %v2424 = vld [vmem:[%s9 + $0x20] sm:$0xff]
    %v2425 = vld [vmem:[%s9 + $0x28] sm:$0xff]
    %v2426 = vld [vmem:[%s9 + $0x30] sm:$0xff]
    %v2427 = vld [vmem:[%s9 + $0x38] sm:$0xff]
    %v2428 = vld [vmem:[%s9 + $0x40] sm:$0xff]
    %v2429 = vld [vmem:[%s9 + $0x48] sm:$0xff]
    %v2430 = vld [vmem:[%s9 + $0x50] sm:$0xff]
    %v2431 = vld [vmem:[%s9 + $0x58] sm:$0xff]
    %v2432 = vld [vmem:[%s9 + $0x60] sm:$0xff]
    %v2433 = vld [vmem:[%s9 + $0x68] sm:$0xff]
    %v2434 = vld [vmem:[%s9 + $0x70] sm:$0xff]
    %v2435 = vld [vmem:[%s9 + $0x78] sm:$0xff]
    %s2436 = scalar_lea.vmem %s4, 54
    %v2437 = vld [vmem:[%s2436] sm:$0x7]
    %v2439 = vlaneseq
    %v2440 = vshrl.u32 %v2439, 7
    %v2441 = vsub.s32 0, %v2440
    %v2442 = vrot.slane %v2437, %v2441
    %2444 = vmatprep.subr.mxu0 0.0
    %2445 = vmatpush1.msra.mxu0 %v2420
    %2446 = vmatprep.subr.mxu0 0.0
    %2447 = vmatpush1.msra.mxu0 %v2421
    %2448 = vmatprep.subr.mxu0 0.0
    %2449 = vmatpush1.msra.mxu0 %v2422
    %2450 = vmatprep.subr.mxu0 0.0
    %2451 = vmatpush1.msra.mxu0 %v2423
    %2452 = vmatprep.subr.mxu0 0.0
    %2453 = vmatpush1.msra.mxu0 %v2424
    %2454 = vmatprep.subr.mxu0 0.0
    %2455 = vmatpush1.msra.mxu0 %v2425
    %2456 = vmatprep.subr.mxu0 0.0
    %2457 = vmatpush1.msra.mxu0 %v2426
    %2458 = vmatprep.subr.mxu0 0.0
    %2459 = vmatpush1.msra.mxu0 %v2427
    %2460 = vmatprep.subr.mxu0 0.0
    %2461 = vmatpush1.msra.mxu0 %v2428
    %2462 = vmatprep.subr.mxu0 0.0
    %2463 = vmatpush1.msra.mxu0 %v2429
    %2464 = vmatprep.subr.mxu0 0.0
    %2465 = vmatpush1.msra.mxu0 %v2430
    %2466 = vmatprep.subr.mxu0 0.0
    %2467 = vmatpush1.msra.mxu0 %v2431
    %2468 = vmatprep.subr.mxu0 0.0
    %2469 = vmatpush1.msra.mxu0 %v2432
    %2470 = vmatprep.subr.mxu0 0.0
    %2471 = vmatpush1.msra.mxu0 %v2433
    %2472 = vmatprep.subr.mxu0 0.0
    %2473 = vmatpush1.msra.mxu0 %v2434
    %2474 = vmatprep.subr.mxu0 0.0
    %2475 = vmatpush1.msra.mxu0 %v2435
    %2476 = vmatprep.subr.mxu0 0.0
    %2477 = vmatpush1.msra.mxu0 0.0
    %2478 = vmatprep.subr.mxu0 0.0
    %2479 = vmatpush1.msra.mxu0 0.0
    %2480 = vmatprep.subr.mxu0 0.0
    %2481 = vmatpush1.msra.mxu0 0.0
    %2482 = vmatprep.subr.mxu0 0.0
    %2483 = vmatpush1.msra.mxu0 0.0
    %2484 = vmatprep.subr.mxu0 0.0
    %2485 = vmatpush1.msra.mxu0 0.0
    %2486 = vmatprep.subr.mxu0 0.0
    %2487 = vmatpush1.msra.mxu0 0.0
    %2488 = vmatprep.subr.mxu0 0.0
    %2489 = vmatpush1.msra.mxu0 0.0
    %2490 = vmatprep.subr.mxu0 0.0
    %2491 = vmatpush1.msra.mxu0 0.0
    %2492 = vmatprep.subr.mxu0 0.0
    %2493 = vmatpush1.msra.mxu0 0.0
    %2494 = vmatprep.subr.mxu0 0.0
    %2495 = vmatpush1.msra.mxu0 0.0
    %2496 = vmatprep.subr.mxu0 0.0
    %2497 = vmatpush1.msra.mxu0 0.0
    %2498 = vmatprep.subr.mxu0 0.0
    %2499 = vmatpush1.msra.mxu0 0.0
    %2500 = vmatprep.subr.mxu0 0.0
    %2501 = vmatpush1.msra.mxu0 0.0
    %2502 = vmatprep.subr.mxu0 0.0
    %2503 = vmatpush1.msra.mxu0 0.0
    %2504 = vmatprep.subr.mxu0 0.0
    %2505 = vmatpush1.msra.mxu0 0.0
    %2506 = vmatprep.subr.mxu0 0.0
    %2507 = vmatpush1.msra.mxu0 0.0
    %2508 = vmatprep.mubr.f32.mxu0 0.0
    %2509 = vmatmul.mubr.f32.gmra.mrb[0].mxu0 %v2416
    %v2510 = vpop.f32.mrb[0].mxu0
    %v2511 = vadd.f32 %v2442, %v2510
    %v2512 = vpop.f32.mrb[0].mxu0
    %2513 = vmatprep.mubr.f32.mxu0 0.0
    %2514 = vmatmul.mubr.f32.gmra.mrb[0].mxu0 %v2417
    %v2515 = vpop.f32.mrb[0].mxu0
    %v2516 = vadd.f32 %v2442, %v2515
    %v2517 = vpop.f32.mrb[0].mxu0
    %2518 = vmatprep.mubr.f32.mxu0 0.0
    %2519 = vmatmul.mubr.f32.gmra.mrb[0].mxu0 %v2418
    %v2520 = vpop.f32.mrb[0].mxu0
    %v2521 = vadd.f32 %v2442, %v2520
    %v2522 = vpop.f32.mrb[0].mxu0
    %2523 = vmatprep.mubr.f32.mxu0 0.0
    %2524 = vmatmul.mubr.f32.gmra.mrb[0].mxu0 %v2419
    %v2525 = vpop.f32.mrb[0].mxu0
    %v2526 = vadd.f32 %v2442, %v2525
    %v2527 = vpop.f32.mrb[0].mxu0
    %2528 = vdwg.mxu0
    %2529 = vst [vmem:[%s10] sm:$0xff] %v2511
    %2530 = vst [vmem:[%s10 + $0x8] sm:$0xff] %v2516
    %2531 = vst [vmem:[%s10 + $0x10] sm:$0xff] %v2521
    %2532 = vst [vmem:[%s10 + $0x18] sm:$0xff] %v2526
    %v2533 = vlaneseq
    %v2534 = vand.u32 %v2533, 127
    %vm2535 = vcmp.lt.s32.totalorder %v2534, 6
    %v2536 = vsel %vm2535, %v2511, -1e+30
    %v2537 = vsel %vm2535, %v2516, -1e+30
    %v2538 = vsel %vm2535, %v2521, -1e+30
    %v2539 = vsel %vm2535, %v2526, -1e+30
    %2540 = vmax.xlane.f32.xlu0 %v2536
    %v2541 = vpop.xlane.xlu0 %2540
    %2542 = vmax.xlane.f32.xlu0 %v2537
    %v2543 = vpop.xlane.xlu0 %2542
    %2544 = vmax.xlane.f32.xlu0 %v2538
    %v2545 = vpop.xlane.xlu0 %2544
    %2546 = vmax.xlane.f32.xlu0 %v2539
    %v2547 = vpop.xlane.xlu0 %2546
    %v2548 = vsub.f32 %v2536, %v2541
    %v2549 = vsub.f32 %v2537, %v2543
    %v2550 = vsub.f32 %v2538, %v2545
    %v2551 = vsub.f32 %v2539, %v2547
    %v2552 = vmul.f32 %v2548, 1.442695
    %v2553 = vpow.pop %v2552
    %v2554 = vmul.f32 %v2549, 1.442695
    %v2555 = vpow.pop %v2554
    %v2556 = vmul.f32 %v2550, 1.442695
    %v2557 = vpow.pop %v2556
    %v2558 = vmul.f32 %v2551, 1.442695
    %v2559 = vpow.pop %v2558
    %2560 = vadd.xlane.f32.xlu0 %v2553
    %v2561 = vpop.xlane.xlu0 %2560
    %2562 = vadd.xlane.f32.xlu0 %v2555
    %v2563 = vpop.xlane.xlu0 %2562
    %2564 = vadd.xlane.f32.xlu0 %v2557
    %v2565 = vpop.xlane.xlu0 %2564
    %2566 = vadd.xlane.f32.xlu0 %v2559
    %v2567 = vpop.xlane.xlu0 %2566
    %v2568 = vlog2.pop %v2561
    %v2569 = vmul.f32 %v2568, 0.6931472
    %v2570 = vlog2.pop %v2563
    %v2571 = vmul.f32 %v2570, 0.6931472
    %v2572 = vlog2.pop %v2565
    %v2573 = vmul.f32 %v2572, 0.6931472
    %v2574 = vlog2.pop %v2567
    %v2575 = vmul.f32 %v2574, 0.6931472
    %v2576 = vadd.f32 %v2569, %v2541
    %v2577 = vadd.f32 %v2571, %v2543
    %v2578 = vadd.f32 %v2573, %v2545
    %v2579 = vadd.f32 %v2575, %v2547
    %v2580 = vld [vmem:[%s3] sm:$0xff]
    %v2581 = vld [vmem:[%s3 + $0x8] sm:$0xff]
    %v2582 = vld [vmem:[%s3 + $0x10] sm:$0xff]
    %v2583 = vld [vmem:[%s3 + $0x18] sm:$0xff]
    %2584 = vset.pattern.permute.xlu0 0
    %2585 = vperm.xlu0 %2584, %v2580
    %v2586 = vpop.permute.xlu0 %2585
    %2587 = vset.pattern.permute.xlu0 0
    %2588 = vperm.xlu0 %2587, %v2581
    %v2589 = vpop.permute.xlu0 %2588
    %2590 = vset.pattern.permute.xlu0 0
    %2591 = vperm.xlu0 %2590, %v2582
    %v2592 = vpop.permute.xlu0 %2591
    %2593 = vset.pattern.permute.xlu0 0
    %2594 = vperm.xlu0 %2593, %v2583
    %v2595 = vpop.permute.xlu0 %2594
    %vm2596 = vcmp.eq.s32.totalorder %v2534, %v2586
    %vm2597 = vcmp.eq.s32.totalorder %v2534, %v2589
    %vm2598 = vcmp.eq.s32.totalorder %v2534, %v2592
    %vm2599 = vcmp.eq.s32.totalorder %v2534, %v2595
    %v2600 = vsel %vm2596, %v2511, 0.0
    %v2601 = vsel %vm2597, %v2516, 0.0
    %v2602 = vsel %vm2598, %v2521, 0.0
    %v2603 = vsel %vm2599, %v2526, 0.0
    %2604 = vadd.xlane.f32.xlu0 %v2600
    %v2605 = vpop.xlane.xlu0 %2604
    %2606 = vadd.xlane.f32.xlu0 %v2601
    %v2607 = vpop.xlane.xlu0 %2606
    %2608 = vadd.xlane.f32.xlu0 %v2602
    %v2609 = vpop.xlane.xlu0 %2608
    %2610 = vadd.xlane.f32.xlu0 %v2603
    %v2611 = vpop.xlane.xlu0 %2610
    %vm2612 = vcmp.ge.s32.totalorder %v2580, 0
    %vm2613 = vcmp.ge.s32.totalorder %v2581, 0
    %vm2614 = vcmp.ge.s32.totalorder %v2582, 0
    %vm2615 = vcmp.ge.s32.totalorder %v2583, 0
    %v2616 = vsel %vm2612, 1, 0
    %v2617 = vsel %vm2613, 1, 0
    %v2618 = vsel %vm2614, 1, 0
    %v2619 = vsel %vm2615, 1, 0
    %v2620 = vcvt.s32.f32 %v2616
    %v2621 = vcvt.s32.f32 %v2617
    %v2622 = vcvt.s32.f32 %v2618
    %v2623 = vcvt.s32.f32 %v2619
    %v2624 = vsub.f32 %v2576, %v2605
    %v2625 = vsub.f32 %v2577, %v2607
    %v2626 = vsub.f32 %v2578, %v2609
    %v2627 = vsub.f32 %v2579, %v2611
    %v2628 = vmul.f32 %v2624, %v2620
    %v2629 = vmul.f32 %v2625, %v2621
    %v2630 = vmul.f32 %v2626, %v2622
    %v2631 = vmul.f32 %v2627, %v2623
    %vm2632 = vcmask 7168
    %v2633 = vsel %vm2632, %v2628, 0.0
    %v2634 = vsel %vm2632, %v2629, 0.0
    %v2635 = vadd.f32 %v2633, %v2634
    %v2636 = vsel %vm2632, %v2630, 0.0
    %v2637 = vadd.f32 %v2635, %v2636
    %v2638 = vsel %vm2632, %v2631, 0.0
    %v2639 = vadd.f32 %v2637, %v2638
    %v2640 = vrot.slane %v2639, 4
    %v2641 = vadd.f32 %v2639, %v2640
    %v2642 = vrot.slane %v2641, 2
    %v2643 = vadd.f32 %v2641, %v2642
    %v2644 = vrot.slane %v2643, 1
    %v2645 = vadd.f32 %v2643, %v2644
    %v2646 = vsel %vm2632, %v2620, 0.0
    %v2647 = vsel %vm2632, %v2621, 0.0
    %v2648 = vadd.f32 %v2646, %v2647
    %v2649 = vsel %vm2632, %v2622, 0.0
    %v2650 = vadd.f32 %v2648, %v2649
    %v2651 = vsel %vm2632, %v2623, 0.0
    %v2652 = vadd.f32 %v2650, %v2651
    %v2653 = vrot.slane %v2652, 4
    %v2654 = vadd.f32 %v2652, %v2653
    %v2655 = vrot.slane %v2654, 2
    %v2656 = vadd.f32 %v2654, %v2655
    %v2657 = vrot.slane %v2656, 1
    %v2658 = vadd.f32 %v2656, %v2657
    %v2659 = vrcp.pop %v2658
    %v2660 = vmul.f32 %v2645, %v2659
    %vm2661 = vcmask 0
    %2662 = vst.msk [vmem:[#allocation2] sm:$0x1] %vm2661, %v2660
    // Predicated region
    $region42: #{roberta_token_classifier_forward.1} parent=1 // pred_check
      _
    $region43: #{roberta_token_classifier_forward.1} parent=1 // pred_check_branch
      %2664 = sbr.rel (0) target = $region45
    $region44: #{roberta_token_classifier_forward.1} parent=1 // pred_region
      _
    $region45: #{roberta_token_classifier_forward.1} parent=1 // pred_fallthru
      _
    // Predicated region
    $region46: #{roberta_token_classifier_forward.1} parent=1 // pred_check
      _
    $region47: #{roberta_token_classifier_forward.1} parent=1 // pred_check_branch
      %2666 = sbr.rel (0) target = $region49
    $region48: #{roberta_token_classifier_forward.1} parent=1 // pred_region
      %s2668 = ssub.s32 16, 16
      %2669 = vsyncadd [#allocation3], %s2668
      %s2671 = sshll.u32 [#allocation2], 4
      %s2672 = int_to_ptr.vmem [resolvable:$true] %s2671
      %2674 = dma.vmem_to_hbm [thread:$0]  %s2672, 16, %s11, [#allocation3]
    $region49: #{roberta_token_classifier_forward.1} parent=1 // pred_fallthru
      _
    // Predicated region
    $region50: #{roberta_token_classifier_forward.1} parent=1 // pred_check
      _
    $region51: #{roberta_token_classifier_forward.1} parent=1 // pred_check_branch
      %2676 = sbr.rel (0) target = $region53
    $region52: #{roberta_token_classifier_forward.1} parent=1 // pred_region
      _
    $region53: #{roberta_token_classifier_forward.1} parent=1 // pred_fallthru
      _
    // Predicated region
    $region54: #{roberta_token_classifier_forward.1} parent=1 // pred_check
      _
    $region55: #{roberta_token_classifier_forward.1} parent=1 // pred_check_branch
      %2678 = sbr.rel (0) target = $region57
    $region56: #{roberta_token_classifier_forward.1} parent=1 // pred_region
      %2679 = dma.done [#allocation3], 16
    $region57: #{roberta_token_classifier_forward.1} parent=1 // pred_fallthru
      _
    %2680 = vsyncpa [#allocation3], 1

</llo_original>
